<compile_context>
chip_gen: v7x
topology: tpu7x:2x2x1
jax: 0.10.0
libtpu: 0.0.40
codegen_flags: <defaults>
</compile_context>

<pallas_src>
import functools

import jax
import jax.numpy as jnp
from jax.experimental import pallas as pl
from jax.experimental.pallas import tpu as pltpu


def _round_up(x, m):
    return (x + m - 1) // m * m


def _conv_bn_relu_kernel(x_ref, w_ref, shift_ref, o_ref, xpad_ref, *dma_sem,
                         TILE_H, W, KH, KW, PAD, CIN, COUT_OUT,
                         fat_im2col, with_nonlinearity, dma_input):
    # x_ref:     resident mode: (1, H, W, CIN) VMEM block of the bf16 NHWC image
    #            dma mode:      full (N, H, W, CIN) bf16 NHWC image ref in HBM (pl.ANY)
    # w_ref:     (KH*KW*CIN, COUT_OUT)         BN-scale-folded weights (bf16)
    # shift_ref: (1, COUT_OUT)                 fused conv-bias + BN shift (f32)
    # o_ref:     (1, TILE_H, W, COUT_OUT)      bf16 output row tile
    # xpad_ref:  (TILE_H + 2*PAD, W_SCR, CIN)  VMEM scratch: zero-padded row slab + halo (bf16)
    # dma_sem:   (3,) DMA semaphores (dma mode only)
    n = pl.program_id(0)
    r = pl.program_id(1)
    last_r = pl.num_programs(1) - 1
    r0 = pl.multiple_of(r * TILE_H, TILE_H)
    bt = xpad_ref.dtype

    # ---- build the zero-padded (TILE_H + 2*PAD, W + 2*PAD) slab in VMEM ----
    # Only border regions that the taps actually read are zero-filled (no full-scratch zero fill).
    zero_cols = jnp.zeros((TILE_H + 2 * PAD, PAD, CIN), bt)
    xpad_ref[:, 0:PAD, :] = zero_cols                        # left zero-pad columns
    xpad_ref[:, PAD + W:PAD + W + PAD, :] = zero_cols        # right zero-pad columns

    @pl.when(r == 0)
    def _():                                                 # top halo rows at the image border
        xpad_ref[0:PAD, PAD:PAD + W, :] = jnp.zeros((PAD, W, CIN), bt)

    @pl.when(r == last_r)
    def _():                                                 # bottom halo rows at the image border
        xpad_ref[PAD + TILE_H:PAD + TILE_H + PAD, PAD:PAD + W, :] = jnp.zeros((PAD, W, CIN), bt)

    if dma_input:
        # Large-image path: x lives in HBM; DMA only the rows this step needs, directly into the
        # scratch interior, so VMEM use is independent of H (v7x's 64 MiB stays comfortable).
        # TODO(synk): prefetch the next row slab into a second buffer to overlap DMA with compute.
        sem = dma_sem[0]

        def mid_copy():
            return pltpu.make_async_copy(
                x_ref.at[n, pl.ds(r0, TILE_H), :, :],
                xpad_ref.at[pl.ds(PAD, TILE_H), pl.ds(PAD, W), :],
                sem.at[0])

        def top_copy():
            return pltpu.make_async_copy(
                x_ref.at[n, pl.ds(r0 - PAD, PAD), :, :],
                xpad_ref.at[pl.ds(0, PAD), pl.ds(PAD, W), :],
                sem.at[1])

        def bot_copy():
            return pltpu.make_async_copy(
                x_ref.at[n, pl.ds(r0 + TILE_H, PAD), :, :],
                xpad_ref.at[pl.ds(PAD + TILE_H, PAD), pl.ds(PAD, W), :],
                sem.at[2])

        mid_copy().start()

        @pl.when(r > 0)
        def _(): top_copy().start()

        @pl.when(r < last_r)
        def _(): bot_copy().start()

        mid_copy().wait()

        @pl.when(r > 0)
        def _(): top_copy().wait()

        @pl.when(r < last_r)
        def _(): bot_copy().wait()
    else:
        # Small-image path: the whole bf16 image is VMEM-resident across row tiles.
        xpad_ref[PAD:PAD + TILE_H, PAD:PAD + W, :] = x_ref[0, pl.ds(r0, TILE_H), :, :]

        @pl.when(r > 0)
        def _():  # top halo rows from the previous tile
            xpad_ref[0:PAD, PAD:PAD + W, :] = x_ref[0, pl.ds(r0 - PAD, PAD), :, :]

        @pl.when(r < last_r)
        def _():  # bottom halo rows from the next tile
            xpad_ref[PAD + TILE_H:PAD + TILE_H + PAD, PAD:PAD + W, :] = \
                x_ref[0, pl.ds(r0 + TILE_H, PAD), :, :]

    # ---- conv as matmul(s) on the MXU (bf16 operands, f32 accumulation) ----
    if fat_im2col:
        # Small CIN: fold all KH*KW taps into one fat contraction dim -> a single matmul.
        cols = []
        for kh in range(KH):
            for kw in range(KW):
                cols.append(xpad_ref[kh:kh + TILE_H, kw:kw + W, :].reshape(TILE_H * W, CIN))
        a = jnp.concatenate(cols, axis=-1)                   # (TILE_H*W, KH*KW*CIN)
        acc = jnp.dot(a, w_ref[...], preferred_element_type=jnp.float32)
    else:
        # Large CIN: skip the im2col gather (saves vld/vst/XLU work and the big bf16 temp);
        # run KH*KW accumulating matmuls directly on the tap views (K = CIN each).
        acc = jnp.zeros((TILE_H * W, COUT_OUT), jnp.float32)
        for kh in range(KH):
            for kw in range(KW):
                tap = kh * KW + kw
                a = xpad_ref[kh:kh + TILE_H, kw:kw + W, :].reshape(TILE_H * W, CIN)
                acc = acc + jnp.dot(a, w_ref[tap * CIN:(tap + 1) * CIN, :],
                                    preferred_element_type=jnp.float32)

    y = acc + shift_ref[...]                                 # fused conv-bias + BN shift (f32)
    if with_nonlinearity:
        y = jnp.maximum(y, 0.0)
    o_ref[...] = y.reshape(1, TILE_H, W, COUT_OUT).astype(o_ref.dtype)


def _pick_tile_h(H, W, target_pixels=1024):
    """Largest divisor of H such that TILE_H * W stays near (<=) the target pixel count."""
    cap = max(1, min(H, target_pixels // max(W, 1)))
    for t in range(cap, 0, -1):
        if H % t == 0:
            return t
    return 1


def _vmem_capacity_bytes():
    try:
        return int(pltpu.get_tpu_info().vmem_capacity_bytes)
    except Exception:
        return 64 * 1024 * 1024   # conservative (v7x-sized) fallback


def conv_block_pallas(x_nchw, w_oihw, conv_bias, gamma, beta, running_mean,
                      running_var, *, eps=1e-5, padding=1, stride=1,
                      with_nonlinearity=True, input_mode="auto", tile_h=None):
    N, Cin, H, W = x_nchw.shape
    Cout, Cin_w, KH, KW = w_oihw.shape
    assert Cin_w == Cin
    assert stride == 1, "this kernel implements the default stride=1 ConvBlock"
    assert KH == KW and 2 * padding == KH - 1, \
        "kernel assumes 'same' convolution (2*padding == kernel_size-1)"
    assert input_mode in ("auto", "resident", "dma")

    PAD = padding
    TILE_H = tile_h if tile_h is not None else _pick_tile_h(H, W)
    assert H % TILE_H == 0 and PAD <= TILE_H
    R = H // TILE_H
    K = KH * KW * Cin
    W_SCR = _round_up(W + 2 * PAD, 8)                 # sublane-aligned scratch width

    # Lane-dense output only when the channel-padding overhead is modest; otherwise write the
    # compact Cout (masked stores) to avoid e.g. 16x HBM write amplification for Cout=8.
    cout_aligned = _round_up(Cout, 128)
    COUT_OUT = cout_aligned if 2 * cout_aligned <= 3 * Cout else Cout

    # Matmul strategy: fat im2col (single matmul, K = KH*KW*CIN) only pays off for small CIN.
    fat_im2col = Cin < 64

    # ---- per-step VMEM footprint -> input path + vmem limit (per-generation via get_tpu_info) ----
    img_bytes = H * W * Cin * 2
    w_bytes = K * COUT_OUT * 2
    shift_bytes = COUT_OUT * 4
    out_tile_bytes = TILE_H * W * COUT_OUT * 2
    xpad_bytes = (TILE_H + 2 * PAD) * W_SCR * Cin * 2
    tmp_bytes = TILE_H * W * COUT_OUT * 4 + (TILE_H * W * K * 2 if fat_im2col else 0)
    # TODO(synk): weights/shift/image have constant index_maps and could be single-buffered
    # (pipeline_mode=pl.Buffered(1)) to halve their VMEM share; counted double-buffered here.
    common = 2 * (w_bytes + shift_bytes + out_tile_bytes) + xpad_bytes + tmp_bytes
    resident_need = common + 2 * img_bytes
    dma_need = common

    cap = _vmem_capacity_bytes()
    if input_mode == "auto":
        use_dma = resident_need > int(0.6 * cap)
    else:
        use_dma = input_mode == "dma"
    need = dma_need if use_dma else resident_need
    vmem_limit = min(int(0.9 * cap), max(48 * 1024 * 1024, int(1.25 * need) + (8 << 20)))

    # ---- wrapper glue (plain JAX): layout + eval-mode BN folding ----
    # TODO(synk): the NCHW<->NHWC transposes still cost two XLA passes; they disappear if the
    # surrounding model keeps activations channels-last.
    x_nhwc = jnp.transpose(x_nchw, (0, 2, 3, 1)).astype(jnp.bfloat16)

    inv_std = jax.lax.rsqrt(running_var.astype(jnp.float32) + eps)
    scale = gamma.astype(jnp.float32) * inv_std                        # (Cout,)
    w_hwio = jnp.transpose(w_oihw, (2, 3, 1, 0)).astype(jnp.float32)   # (KH, KW, Cin, Cout)
    w_folded = w_hwio * scale[None, None, None, :]                     # fold BN scale into weights
    w_mat = w_folded.reshape(K, Cout)
    shift = (conv_bias.astype(jnp.float32) - running_mean.astype(jnp.float32)) * scale \
            + beta.astype(jnp.float32)
    if COUT_OUT != Cout:
        w_mat = jnp.pad(w_mat, ((0, 0), (0, COUT_OUT - Cout)))
        shift = jnp.pad(shift, (0, COUT_OUT - Cout))
    w_mat = w_mat.astype(jnp.bfloat16)
    shift = shift.reshape(1, COUT_OUT)

    kernel = functools.partial(
        _conv_bn_relu_kernel, TILE_H=TILE_H, W=W, KH=KH, KW=KW, PAD=PAD, CIN=Cin,
        COUT_OUT=COUT_OUT, fat_im2col=fat_im2col,
        with_nonlinearity=with_nonlinearity, dma_input=use_dma)

    if use_dma:
        x_spec = pl.BlockSpec(memory_space=pl.ANY)        # raw HBM ref; kernel DMAs the row slab
    else:
        x_spec = pl.BlockSpec((1, H, W, Cin), lambda n, r: (n, 0, 0, 0))  # resident over r

    scratch_shapes = [pltpu.VMEM((TILE_H + 2 * PAD, W_SCR, Cin), jnp.bfloat16)]
    if use_dma:
        scratch_shapes.append(pltpu.SemaphoreType.DMA((3,)))

    out_nhwc = pl.pallas_call(
        kernel,
        out_shape=jax.ShapeDtypeStruct((N, H, W, COUT_OUT), jnp.bfloat16),
        grid_spec=pltpu.PrefetchScalarGridSpec(
            num_scalar_prefetch=0,
            grid=(N, R),                                   # N is the leading parallel axis
            in_specs=[
                x_spec,
                pl.BlockSpec((K, COUT_OUT), lambda n, r: (0, 0)),   # folded weights
                pl.BlockSpec((1, COUT_OUT), lambda n, r: (0, 0)),   # fused shift
            ],
            out_specs=pl.BlockSpec((1, TILE_H, W, COUT_OUT), lambda n, r: (n, r, 0, 0)),
            scratch_shapes=scratch_shapes),
        compiler_params=pltpu.CompilerParams(
            dimension_semantics=("parallel", "parallel"),
            vmem_limit_bytes=vmem_limit),
    )(x_nhwc, w_mat, shift)

    # Fused channel-slice + NHWC->NCHW transpose + cast back to the caller's dtype.
    out = out_nhwc if COUT_OUT == Cout else out_nhwc[..., :Cout]
    return jnp.transpose(out, (0, 3, 1, 2)).astype(x_nchw.dtype)


def _reference(x_nchw, w_oihw, conv_bias, gamma, beta, mean, var, *, eps=1e-5,
               with_nonlinearity=True):
    y = jax.lax.conv_general_dilated(
        x_nchw, w_oihw, window_strides=(1, 1), padding=((1, 1), (1, 1)),
        dimension_numbers=("NCHW", "OIHW", "NCHW"))
    y = y + conv_bias[None, :, None, None]
    y = (y - mean[None, :, None, None]) / jnp.sqrt(var[None, :, None, None] + eps)
    y = y * gamma[None, :, None, None] + beta[None, :, None, None]
    if with_nonlinearity:
        y = jnp.maximum(y, 0.0)
    return y


def _run_case(key, *, N, Cin, Cout, H, W, with_nonlinearity, input_mode, tile_h):
    kx, kw, kb, kg, kbe, km, kv = jax.random.split(key, 7)
    x = jax.random.normal(kx, (N, Cin, H, W), dtype=jnp.float32)
    w = jax.random.normal(kw, (Cout, Cin, 3, 3), dtype=jnp.float32) * 0.1
    conv_bias = jax.random.normal(kb, (Cout,), dtype=jnp.float32) * 0.1
    gamma = 1.0 + 0.1 * jax.random.normal(kg, (Cout,), dtype=jnp.float32)
    beta = 0.1 * jax.random.normal(kbe, (Cout,), dtype=jnp.float32)
    running_mean = 0.1 * jax.random.normal(km, (Cout,), dtype=jnp.float32)
    running_var = jnp.abs(1.0 + 0.1 * jax.random.normal(kv, (Cout,), dtype=jnp.float32))
    # TODO(synk): training-mode BatchNorm (batch statistics + running-stat updates) is not
    # implemented; this kernel fuses eval-mode BN (running stats) into the weights and a shift.

    out = conv_block_pallas(x, w, conv_bias, gamma, beta, running_mean, running_var,
                            with_nonlinearity=with_nonlinearity,
                            input_mode=input_mode, tile_h=tile_h)
    out = jax.block_until_ready(out)

    ref = _reference(x, w, conv_bias, gamma, beta, running_mean, running_var,
                     with_nonlinearity=with_nonlinearity)
    assert out.shape == (N, Cout, H, W)
    max_err = float(jnp.max(jnp.abs(out - ref)))
    # bf16 MXU operands + bf16 output store (f32 accumulate) vs. f32 reference -> relaxed tol.
    assert jnp.allclose(out, ref, atol=6e-2, rtol=6e-2), (input_mode, tile_h, max_err)
    return max_err


if __name__ == "__main__":
    key = jax.random.PRNGKey(0)
    keys = jax.random.split(key, 4)

    # Primary case (module defaults): batch=2, channels 4->8, 16x16, auto-selected path.
    _run_case(keys[0], N=2, Cin=4, Cout=8, H=16, W=16,
              with_nonlinearity=True, input_mode="auto", tile_h=None)
    # Resident-image path with multiple row tiles (exercises the halo copies).
    _run_case(keys[1], N=2, Cin=4, Cout=8, H=16, W=16,
              with_nonlinearity=True, input_mode="resident", tile_h=8)
    # Manual-DMA row-slab path (the v7x large-image path) + with_nonlinearity=False.
    _run_case(keys[2], N=2, Cin=4, Cout=8, H=16, W=16,
              with_nonlinearity=False, input_mode="dma", tile_h=4)
    # Large-CIN path: per-tap accumulating matmuls (no im2col concat).
    _run_case(keys[3], N=1, Cin=64, Cout=16, H=8, W=8,
              with_nonlinearity=True, input_mode="auto", tile_h=None)

    print("KERNEL_OK")
</pallas_src>

<mosaic_0001>
module attributes {stable_mosaic.version = 11 : i64} {
  func.func @_conv_bn_relu_kernel(%arg0: i32, %arg1: i32, %arg2: memref<1x16x16x4xbf16, #tpu.memory_space<vmem>>, %arg3: memref<36x8xbf16, #tpu.memory_space<vmem>>, %arg4: memref<1x8xf32, #tpu.memory_space<vmem>>, %arg5: memref<1x16x16x8xbf16, #tpu.memory_space<vmem>>, %arg6: memref<18x24x4xbf16, #tpu.memory_space<vmem>>) attributes {dimension_semantics = [#tpu.dimension_semantics<parallel>, #tpu.dimension_semantics<parallel>], iteration_bounds = array<i64: 2, 1>, scalar_prefetch = 0 : i64, scratch_operands = 1 : i64, tpu.core_type = #tpu.core_type<tc>, window_params = [{transform_indices = @transform_0, window_bounds = array<i64: 1, 16, 16, 4>}, {pipeline_mode = #tpu.pipeline_mode<synchronous>, transform_indices = @transform_1, window_bounds = array<i64: 36, 8>}, {pipeline_mode = #tpu.pipeline_mode<synchronous>, transform_indices = @transform_2, window_bounds = array<i64: 1, 8>}, {transform_indices = @transform_3, window_bounds = array<i64: 1, 16, 16, 8>}]} {
    %c16_i32 = arith.constant 16 : i32
    %0 = arith.muli %arg1, %c16_i32 : i32
    %1 = tpu.assume_multiple %0, 16 : i32
    %cst = arith.constant 0.000000e+00 : bf16
    %2 = vector.broadcast %cst : bf16 to vector<18x1x4xbf16>
    %c0 = arith.constant 0 : index
    %c0_0 = arith.constant 0 : index
    %c0_1 = arith.constant 0 : index
    %3 = vector.load %arg6[%c0, %c0_0, %c0_1] : memref<18x24x4xbf16, #tpu.memory_space<vmem>>, vector<18x1x4xbf16>
    tpu.vector_store %arg6[%c0, %c0_0, %c0_1], %2 {strides = array<i32>} : memref<18x24x4xbf16, #tpu.memory_space<vmem>>, vector<18x1x4xbf16>,
    %c0_2 = arith.constant 0 : index
    %c17 = arith.constant 17 : index
    %c0_3 = arith.constant 0 : index
    %4 = vector.load %arg6[%c0_2, %c17, %c0_3] : memref<18x24x4xbf16, #tpu.memory_space<vmem>>, vector<18x1x4xbf16>
    tpu.vector_store %arg6[%c0_2, %c17, %c0_3], %2 {strides = array<i32>} : memref<18x24x4xbf16, #tpu.memory_space<vmem>>, vector<18x1x4xbf16>,
    %c0_i32 = arith.constant 0 : i32
    %5 = arith.cmpi eq, %arg1, %c0_i32 : i32
    %6 = arith.extui %5 : i1 to i32
    %c0_i32_4 = arith.constant 0 : i32
    %7 = arith.cmpi ne, %6, %c0_i32_4 : i32
    scf.if %7 {
      %cst_52 = arith.constant 0.000000e+00 : bf16
      %50 = vector.broadcast %cst_52 : bf16 to vector<1x16x4xbf16>
      %c0_53 = arith.constant 0 : index
      %c1_54 = arith.constant 1 : index
      %c0_55 = arith.constant 0 : index
      %51 = vector.load %arg6[%c0_53, %c1_54, %c0_55] : memref<18x24x4xbf16, #tpu.memory_space<vmem>>, vector<1x16x4xbf16>
      tpu.vector_store %arg6[%c0_53, %c1_54, %c0_55], %50 {strides = array<i32>} : memref<18x24x4xbf16, #tpu.memory_space<vmem>>, vector<1x16x4xbf16>,
    } else {
    }
    %c0_i32_5 = arith.constant 0 : i32
    %8 = arith.cmpi eq, %arg1, %c0_i32_5 : i32
    %9 = arith.extui %8 : i1 to i32
    %c0_i32_6 = arith.constant 0 : i32
    %10 = arith.cmpi ne, %9, %c0_i32_6 : i32
    scf.if %10 {
      %cst_52 = arith.constant 0.000000e+00 : bf16
      %50 = vector.broadcast %cst_52 : bf16 to vector<1x16x4xbf16>
      %c17_53 = arith.constant 17 : index
      %c1_54 = arith.constant 1 : index
      %c0_55 = arith.constant 0 : index
      %51 = vector.load %arg6[%c17_53, %c1_54, %c0_55] : memref<18x24x4xbf16, #tpu.memory_space<vmem>>, vector<1x16x4xbf16>
      tpu.vector_store %arg6[%c17_53, %c1_54, %c0_55], %50 {strides = array<i32>} : memref<18x24x4xbf16, #tpu.memory_space<vmem>>, vector<1x16x4xbf16>,
    } else {
    }
    %c0_7 = arith.constant 0 : index
    %11 = arith.index_cast %1 : i32 to index
    %c0_8 = arith.constant 0 : index
    %c0_9 = arith.constant 0 : index
    %12 = vector.load %arg2[%c0_7, %11, %c0_8, %c0_9] : memref<1x16x16x4xbf16, #tpu.memory_space<vmem>>, vector<1x16x16x4xbf16>
    %13 = vector.shape_cast %12 : vector<1x16x16x4xbf16> to vector<16x16x4xbf16>
    %c1 = arith.constant 1 : index
    %c1_10 = arith.constant 1 : index
    %c0_11 = arith.constant 0 : index
    %14 = vector.load %arg6[%c1, %c1_10, %c0_11] : memref<18x24x4xbf16, #tpu.memory_space<vmem>>, vector<16x16x4xbf16>
    tpu.vector_store %arg6[%c1, %c1_10, %c0_11], %13 {strides = array<i32>} : memref<18x24x4xbf16, #tpu.memory_space<vmem>>, vector<16x16x4xbf16>,
    %c0_i32_12 = arith.constant 0 : i32
    %15 = arith.cmpi sgt, %arg1, %c0_i32_12 : i32
    %16 = arith.extui %15 : i1 to i32
    %c0_i32_13 = arith.constant 0 : i32
    %17 = arith.cmpi ne, %16, %c0_i32_13 : i32
    scf.if %17 {
      %c1_i32 = arith.constant 1 : i32
      %50 = arith.subi %1, %c1_i32 : i32
      %c0_52 = arith.constant 0 : index
      %51 = arith.index_cast %50 : i32 to index
      %c0_53 = arith.constant 0 : index
      %c0_54 = arith.constant 0 : index
      %52 = vector.load %arg2[%c0_52, %51, %c0_53, %c0_54] : memref<1x16x16x4xbf16, #tpu.memory_space<vmem>>, vector<1x1x16x4xbf16>
      %53 = vector.shape_cast %52 : vector<1x1x16x4xbf16> to vector<1x16x4xbf16>
      %c0_55 = arith.constant 0 : index
      %c1_56 = arith.constant 1 : index
      %c0_57 = arith.constant 0 : index
      %54 = vector.load %arg6[%c0_55, %c1_56, %c0_57] : memref<18x24x4xbf16, #tpu.memory_space<vmem>>, vector<1x16x4xbf16>
      tpu.vector_store %arg6[%c0_55, %c1_56, %c0_57], %53 {strides = array<i32>} : memref<18x24x4xbf16, #tpu.memory_space<vmem>>, vector<1x16x4xbf16>,
    } else {
    }
    %c0_i32_14 = arith.constant 0 : i32
    %18 = arith.cmpi slt, %arg1, %c0_i32_14 : i32
    %19 = arith.extui %18 : i1 to i32
    %c0_i32_15 = arith.constant 0 : i32
    %20 = arith.cmpi ne, %19, %c0_i32_15 : i32
    scf.if %20 {
      %c16_i32_52 = arith.constant 16 : i32
      %50 = arith.addi %1, %c16_i32_52 : i32
      %c0_53 = arith.constant 0 : index
      %51 = arith.index_cast %50 : i32 to index
      %c0_54 = arith.constant 0 : index
      %c0_55 = arith.constant 0 : index
      %52 = vector.load %arg2[%c0_53, %51, %c0_54, %c0_55] : memref<1x16x16x4xbf16, #tpu.memory_space<vmem>>, vector<1x1x16x4xbf16>
      %53 = vector.shape_cast %52 : vector<1x1x16x4xbf16> to vector<1x16x4xbf16>
      %c17_56 = arith.constant 17 : index
      %c1_57 = arith.constant 1 : index
      %c0_58 = arith.constant 0 : index
      %54 = vector.load %arg6[%c17_56, %c1_57, %c0_58] : memref<18x24x4xbf16, #tpu.memory_space<vmem>>, vector<1x16x4xbf16>
      tpu.vector_store %arg6[%c17_56, %c1_57, %c0_58], %53 {strides = array<i32>} : memref<18x24x4xbf16, #tpu.memory_space<vmem>>, vector<1x16x4xbf16>,
    } else {
    }
    %c0_16 = arith.constant 0 : index
    %c0_17 = arith.constant 0 : index
    %c0_18 = arith.constant 0 : index
    %21 = vector.load %arg6[%c0_16, %c0_17, %c0_18] : memref<18x24x4xbf16, #tpu.memory_space<vmem>>, vector<16x16x4xbf16>
    %22 = vector.shape_cast %21 : vector<16x16x4xbf16> to vector<256x4xbf16>
    %c0_19 = arith.constant 0 : index
    %c1_20 = arith.constant 1 : index
    %c0_21 = arith.constant 0 : index
    %23 = vector.load %arg6[%c0_19, %c1_20, %c0_21] : memref<18x24x4xbf16, #tpu.memory_space<vmem>>, vector<16x16x4xbf16>
    %24 = vector.shape_cast %23 : vector<16x16x4xbf16> to vector<256x4xbf16>
    %c0_22 = arith.constant 0 : index
    %c2 = arith.constant 2 : index
    %c0_23 = arith.constant 0 : index
    %25 = vector.load %arg6[%c0_22, %c2, %c0_23] : memref<18x24x4xbf16, #tpu.memory_space<vmem>>, vector<16x16x4xbf16>
    %26 = vector.shape_cast %25 : vector<16x16x4xbf16> to vector<256x4xbf16>
    %c1_24 = arith.constant 1 : index
    %c0_25 = arith.constant 0 : index
    %c0_26 = arith.constant 0 : index
    %27 = vector.load %arg6[%c1_24, %c0_25, %c0_26] : memref<18x24x4xbf16, #tpu.memory_space<vmem>>, vector<16x16x4xbf16>
    %28 = vector.shape_cast %27 : vector<16x16x4xbf16> to vector<256x4xbf16>
    %c1_27 = arith.constant 1 : index
    %c1_28 = arith.constant 1 : index
    %c0_29 = arith.constant 0 : index
    %29 = vector.load %arg6[%c1_27, %c1_28, %c0_29] : memref<18x24x4xbf16, #tpu.memory_space<vmem>>, vector<16x16x4xbf16>
    %30 = vector.shape_cast %29 : vector<16x16x4xbf16> to vector<256x4xbf16>
    %c1_30 = arith.constant 1 : index
    %c2_31 = arith.constant 2 : index
    %c0_32 = arith.constant 0 : index
    %31 = vector.load %arg6[%c1_30, %c2_31, %c0_32] : memref<18x24x4xbf16, #tpu.memory_space<vmem>>, vector<16x16x4xbf16>
    %32 = vector.shape_cast %31 : vector<16x16x4xbf16> to vector<256x4xbf16>
    %c2_33 = arith.constant 2 : index
    %c0_34 = arith.constant 0 : index
    %c0_35 = arith.constant 0 : index
    %33 = vector.load %arg6[%c2_33, %c0_34, %c0_35] : memref<18x24x4xbf16, #tpu.memory_space<vmem>>, vector<16x16x4xbf16>
    %34 = vector.shape_cast %33 : vector<16x16x4xbf16> to vector<256x4xbf16>
    %c2_36 = arith.constant 2 : index
    %c1_37 = arith.constant 1 : index
    %c0_38 = arith.constant 0 : index
    %35 = vector.load %arg6[%c2_36, %c1_37, %c0_38] : memref<18x24x4xbf16, #tpu.memory_space<vmem>>, vector<16x16x4xbf16>
    %36 = vector.shape_cast %35 : vector<16x16x4xbf16> to vector<256x4xbf16>
    %c2_39 = arith.constant 2 : index
    %c2_40 = arith.constant 2 : index
    %c0_41 = arith.constant 0 : index
    %37 = vector.load %arg6[%c2_39, %c2_40, %c0_41] : memref<18x24x4xbf16, #tpu.memory_space<vmem>>, vector<16x16x4xbf16>
    %38 = vector.shape_cast %37 : vector<16x16x4xbf16> to vector<256x4xbf16>
    %39 = tpu.concatenate %22, %24, %26, %28, %30, %32, %34, %36, %38 in 1 : vector<256x4xbf16>, vector<256x4xbf16>, vector<256x4xbf16>, vector<256x4xbf16>, vector<256x4xbf16>, vector<256x4xbf16>, vector<256x4xbf16>, vector<256x4xbf16>, vector<256x4xbf16> -> vector<256x36xbf16>
    %c0_42 = arith.constant 0 : index
    %c0_43 = arith.constant 0 : index
    %40 = vector.load %arg3[%c0_42, %c0_43] : memref<36x8xbf16, #tpu.memory_space<vmem>>, vector<36x8xbf16>
    %cst_44 = arith.constant dense<0.000000e+00> : vector<256x8xf32>
    %41 = tpu.matmul %39, %40, %cst_44 {dimension_numbers = #tpu.dot_dimension_numbers<[1], [0], [0], [1], [0, 0, 1, 1], [], []>} : vector<256x36xbf16>, vector<36x8xbf16>, vector<256x8xf32> -> vector<256x8xf32>
    %c0_45 = arith.constant 0 : index
    %c0_46 = arith.constant 0 : index
    %42 = vector.load %arg4[%c0_45, %c0_46] : memref<1x8xf32, #tpu.memory_space<vmem>>, vector<1x8xf32>
    %43 = vector.broadcast %42 : vector<1x8xf32> to vector<256x8xf32>
    %44 = arith.addf %41, %43 : vector<256x8xf32>
    %cst_47 = arith.constant 0.000000e+00 : f32
    %45 = vector.broadcast %cst_47 : f32 to vector<256x8xf32>
    %46 = arith.maximumf %44, %45 : vector<256x8xf32>
    %47 = vector.shape_cast %46 : vector<256x8xf32> to vector<1x16x16x8xf32>
    %48 = arith.truncf %47 : vector<1x16x16x8xf32> to vector<1x16x16x8xbf16>
    %c0_48 = arith.constant 0 : index
    %c0_49 = arith.constant 0 : index
    %c0_50 = arith.constant 0 : index
    %c0_51 = arith.constant 0 : index
    %49 = vector.load %arg5[%c0_48, %c0_49, %c0_50, %c0_51] : memref<1x16x16x8xbf16, #tpu.memory_space<vmem>>, vector<1x16x16x8xbf16>
    tpu.vector_store %arg5[%c0_48, %c0_49, %c0_50, %c0_51], %48 {strides = array<i32>} : memref<1x16x16x8xbf16, #tpu.memory_space<vmem>>, vector<1x16x16x8xbf16>,
    return
  }
  func.func @transform_0(%arg0: i32, %arg1: i32) -> (i32, i32, i32, i32) {
    %c0_i32 = arith.constant 0 : i32
    %c0_i32_0 = arith.constant 0 : i32
    %c0_i32_1 = arith.constant 0 : i32
    %c0_i32_2 = arith.constant 0 : i32
    return %arg0, %c0_i32, %c0_i32_0, %c0_i32_1 : i32, i32, i32, i32
  }
  func.func @transform_1(%arg0: i32, %arg1: i32) -> (i32, i32) {
    %c0_i32 = arith.constant 0 : i32
    %c0_i32_0 = arith.constant 0 : i32
    %c0_i32_1 = arith.constant 0 : i32
    return %c0_i32, %c0_i32_0 : i32, i32
  }
  func.func @transform_2(%arg0: i32, %arg1: i32) -> (i32, i32) {
    %c0_i32 = arith.constant 0 : i32
    %c0_i32_0 = arith.constant 0 : i32
    %c0_i32_1 = arith.constant 0 : i32
    return %c0_i32, %c0_i32_0 : i32, i32
  }
  func.func @transform_3(%arg0: i32, %arg1: i32) -> (i32, i32, i32, i32) {
    %c0_i32 = arith.constant 0 : i32
    %c0_i32_0 = arith.constant 0 : i32
    %c0_i32_1 = arith.constant 0 : i32
    return %arg0, %arg1, %c0_i32, %c0_i32_0 : i32, i32, i32, i32
  }
}

</mosaic_0001>

<llo_original>
// kernel: tpu_custom_call.1
$region0: #{tpu_custom_call.1}
  #allocation0 [shape = 'u32[]', space=smem, size = 0x4, offset = 0x4, fixed_abs, tag = 'smem constant byte address 0x4 - core index']
  #allocation1 [shape = 'u32[144,128]{1,0:T(1,128)}', space=vmem, size = 0x12000, scoped, tag = 'internal scratch']
  #allocation2 [shape = 'bf16[18,24,4]{2,1,0:T(8,128)(2,1)}', space=vmem, size = 0x1b000, scoped, tag = 'scratch operand']
  %s0 = inlined_call_operand.vmem [shape: bf16[2,16,16,4], index: 0, kind: input, shape index: {}]
  %s1 = inlined_call_operand.vmem [shape: bf16[36,8], index: 1, kind: input, shape index: {}]
  %s2 = inlined_call_operand.vmem [shape: f32[1,8], index: 2, kind: input, shape index: {}]
  %s3 = inlined_call_operand.vmem [shape: bf16[2,16,16,8], index: 3, kind: output, shape index: {}]
  %s4 = sld [smem:[#allocation0]]
  $region57: #{tpu_custom_call.1} parent=0
    _
  %s6 = ssub.s32 1, %s4
  %s7 = scalar_select 0, %s6, %s4
  loop: start=0, step=1, limit=4
  $region2: #{tpu_custom_call.1} parent=0 // loop_pre_header
    _
  $region3: #{tpu_custom_call.1} parent=0 // loop_header
    %s9 = sphi 0, %s13
    %p10 = scmp.ge.s32.totalorder %s9, 4
    %s16 = sphi 0, %s28
    %s17 = sphi 0, %s24
    %s18 = sphi 0, %s16
    %s19 = sphi 0, %s17
    %s20 = sphi 0, %s18
    %s21 = sphi 0, %s19
    %s31 = sphi 0, %s33
    %s34 = sphi 0, %s31
    %s35 = sphi 0, %s34
    %s51 = sphi 0, %s35
    %s55 = sphi 0, %s55
    %s57 = sphi 0, %s55
    %s58 = sphi 0, %s57
    %s72 = sphi 0, %s58
    %s76 = sphi 0, %s76
    %s78 = sphi 0, %s76
    %s79 = sphi 0, %s78
    %s93 = sphi 0, %s79
    %s101 = sphi 0, %s103
    %s104 = sphi 0, %s101
    %s105 = sphi 0, %s104
    %s121 = sphi 0, %s105
  $region4: #{tpu_custom_call.1} parent=0 // loop_header_branch
    %12 = sbr.rel (%p10) target = $region8
  $region5: #{tpu_custom_call.1} parent=0 // loop_body
    %s14 = ssub.s32 %s9, 1
    %s15 = ssub.s32 %s9, 2
    %s22 = sadd.s32 1, %s17
    %p23 = scmp.ge.s32.totalorder %s22, 1
    %s24 = scalar_select %p23, 0, %s22
    %s25 = sadd.s32 1, %s16
    %s26 = scalar_select %p23, %s25, %s16
    %p27 = scmp.ge.s32.totalorder %s26, 2
    %s28 = scalar_select %p27, 0, %s26
    %s29 = ssub.s32 %s16, %s28
    %p30 = scmp.eq.s32.totalorder %s29, 0
    %s32 = sadd.s32 %s31, 1
    %s33 = scalar_select %p30, %s31, %s32
    %p36 = pneg %p30
    %p37 = scmp.eq.s32.totalorder %s9, 1
    %p38 = por %p36, %p37
    %p39 = scmp.ne.s32.totalorder %s31, %s34
    %p40 = scmp.eq.s32.totalorder %s9, 0
    %p41 = por %p39, %p40
    %p42 = scmp.ne.s32.totalorder %s31, %s34
    %p43 = scmp.eq.s32.totalorder %s14, 1
    %p44 = por %p42, %p43
    %p45 = scmp.ne.s32.totalorder %s34, %s35
    %p46 = scmp.eq.s32.totalorder %s14, 0
    %p47 = por %p45, %p46
    %p48 = scmp.ne.s32.totalorder %s34, %s35
    %p49 = scmp.eq.s32.totalorder %s15, 1
    %p50 = por %p48, %p49
    %p52 = scmp.ne.s32.totalorder %s35, %s51
    %p53 = scmp.eq.s32.totalorder %s15, 0
    %p54 = por %p52, %p53
    %s56 = sadd.s32 %s55, 1
    %p59 = scmp.eq.s32.totalorder %s9, 1
    %p60 = scmp.ne.s32.totalorder %s55, %s57
    %p61 = scmp.eq.s32.totalorder %s9, 0
    %p62 = por %p60, %p61
    %p63 = scmp.ne.s32.totalorder %s55, %s57
    %p64 = scmp.eq.s32.totalorder %s14, 1
    %p65 = por %p63, %p64
    %p66 = scmp.ne.s32.totalorder %s57, %s58
    %p67 = scmp.eq.s32.totalorder %s14, 0
    %p68 = por %p66, %p67
    %p69 = scmp.ne.s32.totalorder %s57, %s58
    %p70 = scmp.eq.s32.totalorder %s15, 1
    %p71 = por %p69, %p70
    %p73 = scmp.ne.s32.totalorder %s58, %s72
    %p74 = scmp.eq.s32.totalorder %s15, 0
    %p75 = por %p73, %p74
    %s77 = sadd.s32 %s76, 1
    %p80 = scmp.eq.s32.totalorder %s9, 1
    %p81 = scmp.ne.s32.totalorder %s76, %s78
    %p82 = scmp.eq.s32.totalorder %s9, 0
    %p83 = por %p81, %p82
    %p84 = scmp.ne.s32.totalorder %s76, %s78
    %p85 = scmp.eq.s32.totalorder %s14, 1
    %p86 = por %p84, %p85
    %p87 = scmp.ne.s32.totalorder %s78, %s79
    %p88 = scmp.eq.s32.totalorder %s14, 0
    %p89 = por %p87, %p88
    %p90 = scmp.ne.s32.totalorder %s78, %s79
    %p91 = scmp.eq.s32.totalorder %s15, 1
    %p92 = por %p90, %p91
    %p94 = scmp.ne.s32.totalorder %s79, %s93
    %p95 = scmp.eq.s32.totalorder %s15, 0
    %p96 = por %p94, %p95
    %s97 = ssub.s32 %s16, %s28
    %s98 = ssub.s32 %s17, %s24
    %s99 = sor.u32 %s97, %s98
    %p100 = scmp.eq.s32.totalorder %s99, 0
    %s102 = sadd.s32 %s101, 1
    %s103 = scalar_select %p100, %s101, %s102
    %p106 = pneg %p100
    %p107 = scmp.eq.s32.totalorder %s9, 1
    %p108 = por %p106, %p107
    %p109 = scmp.ne.s32.totalorder %s101, %s104
    %p110 = scmp.eq.s32.totalorder %s9, 0
    %p111 = por %p109, %p110
    %p112 = scmp.ne.s32.totalorder %s101, %s104
    %p113 = scmp.eq.s32.totalorder %s14, 1
    %p114 = por %p112, %p113
    %p115 = scmp.ne.s32.totalorder %s104, %s105
    %p116 = scmp.eq.s32.totalorder %s14, 0
    %p117 = por %p115, %p116
    %p118 = scmp.ne.s32.totalorder %s104, %s105
    %p119 = scmp.eq.s32.totalorder %s15, 1
    %p120 = por %p118, %p119
    %p122 = scmp.ne.s32.totalorder %s105, %s121
    %p123 = scmp.eq.s32.totalorder %s15, 0
    %p124 = por %p122, %p123
    %p125 = scmp.le.s32.totalorder 1, %s9
    %p126 = scmp.lt.s32.totalorder %s9, 3
    %p127 = pnand %p125, %p126
    %p128 = pneg %p127
    // Predicated region
    $region9: #{tpu_custom_call.1} parent=5 // pred_check
      _
    $region10: #{tpu_custom_call.1} parent=5 // pred_check_branch
      %130 = sbr.rel (%p127) target = $region12
    $region11: #{tpu_custom_call.1} parent=5 // pred_region
      %s131 = ssub.s32 %s9, 1
      // Predicated region
      $region13: #{tpu_custom_call.1} parent=11 // pred_check
        %p132 = pneg %p68
      $region14: #{tpu_custom_call.1} parent=11 // pred_check_branch
        %134 = sbr.rel (%p132) target = $region16
      $region15: #{tpu_custom_call.1} parent=11 // pred_region
        _
      $region16: #{tpu_custom_call.1} parent=11 // pred_fallthru
        _
      // Predicated region
      $region17: #{tpu_custom_call.1} parent=11 // pred_check
        %p135 = pneg %p89
      $region18: #{tpu_custom_call.1} parent=11 // pred_check_branch
        %137 = sbr.rel (%p135) target = $region20
      $region19: #{tpu_custom_call.1} parent=11 // pred_region
        _
      $region20: #{tpu_custom_call.1} parent=11 // pred_fallthru
        _
    $region12: #{tpu_custom_call.1} parent=5 // pred_fallthru
      _
    %p138 = scmp.lt.s32.totalorder %s9, 2
    // Predicated region
    $region21: #{tpu_custom_call.1} parent=5 // pred_check
      %p139 = pneg %p138
    $region22: #{tpu_custom_call.1} parent=5 // pred_check_branch
      %141 = sbr.rel (%p139) target = $region24
    $region23: #{tpu_custom_call.1} parent=5 // pred_region
      // Predicated region
      $region25: #{tpu_custom_call.1} parent=23 // pred_check
        %p142 = pneg %p41
      $region26: #{tpu_custom_call.1} parent=23 // pred_check_branch
        %144 = sbr.rel (%p142) target = $region28
      $region27: #{tpu_custom_call.1} parent=23 // pred_region
        %p145 = scmp.lt.s32.totalorder %s16, 1
        %s146 = scalar_select %p145, %s16, 1
        %s147 = smul.addr %s146, 32
        %s148 = smul.addr %s147, 4
        %s149 = scalar_lea.vmem %s0, %s148
      $region28: #{tpu_custom_call.1} parent=23 // pred_fallthru
        _
    $region24: #{tpu_custom_call.1} parent=5 // pred_fallthru
      _
    %p150 = scmp.le.s32.totalorder 1, %s9
    %p151 = scmp.lt.s32.totalorder %s9, 3
    %p152 = pnand %p150, %p151
    %p153 = pneg %p152
    // Predicated region
    $region29: #{tpu_custom_call.1} parent=5 // pred_check
      _
    $region30: #{tpu_custom_call.1} parent=5 // pred_check_branch
      %155 = sbr.rel (%p152) target = $region32
    $region31: #{tpu_custom_call.1} parent=5 // pred_region
      %s156 = ssub.s32 %s9, 1
      %p157 = scmp.lt.s32.totalorder %s18, 1
      %s158 = scalar_select %p157, %s18, 1
      %s159 = smul.addr %s158, 32
      %s160 = smul.addr %s159, 4
      %s161 = scalar_lea.vmem %s0, %s160
      %p162 = pneg %p47
      %p163 = pneg %p44
      %p164 = pneg %p68
      %p165 = pneg %p65
      %p166 = pneg %p89
      %p167 = pneg %p86
      %p168 = pneg %p117
      %p169 = pneg %p114
      %s170 = smul.u32 16, %s19
      %p171 = scmp.lt.s32.totalorder %s18, 1
      %s172 = scalar_select %p171, %s18, 1
      %p173 = scmp.lt.s32.totalorder %s170, 15
      %s174 = scalar_select %p173, %s170, 15
      %s175 = smul.addr %s174, 2
      %s176 = smul.addr %s172, 32
      %s177 = sadd.s32 %s175, %s176
      %s178 = smul.addr %s177, 4
      %s179 = scalar_lea.vmem %s3, %s178
      %p180 = scmp.lt.s32.totalorder %s18, 1
      %s181 = scalar_select %p180, %s18, 1
      %s182 = smul.addr %s181, 32
      %s183 = smul.addr %s182, 4
      %s184 = scalar_lea.vmem %s0, %s183
      %s185 = smul.u32 16, %s19
      %p186 = scmp.lt.s32.totalorder %s18, 1
      %s187 = scalar_select %p186, %s18, 1
      %p188 = scmp.lt.s32.totalorder %s185, 15
      %s189 = scalar_select %p188, %s185, 15
      %s190 = smul.addr %s189, 2
      %s191 = smul.addr %s187, 32
      %s192 = sadd.s32 %s190, %s191
      %s193 = smul.addr %s192, 4
      %s194 = scalar_lea.vmem %s3, %s193
      %s195 = smul.u32 16, %s19
      %s197 = smul.u32 %s19, 16
      %vm198 = vcmask 24576
      %vm199 = vsmask.f32 256
      %vm200 = vmand %vm198, %vm199
      %v201 = vld [vmem:[#allocation2] sm:$0x1]
      %v202 = vsel %vm200, 0, %v201
      %203 = vst [vmem:[#allocation2] sm:$0x1] %v202
      %v204 = vld [vmem:[#allocation2 + $0xc] sm:$0x1]
      %v205 = vsel %vm200, 0, %v204
      %206 = vst [vmem:[#allocation2 + $0xc] sm:$0x1] %v205
      %v207 = vld [vmem:[#allocation2 + $0x18] sm:$0x1]
      %v208 = vsel %vm200, 0, %v207
      %209 = vst [vmem:[#allocation2 + $0x18] sm:$0x1] %v208
      %v210 = vld [vmem:[#allocation2 + $0x24] sm:$0x1]
      %v211 = vsel %vm200, 0, %v210
      %212 = vst [vmem:[#allocation2 + $0x24] sm:$0x1] %v211
      %v213 = vld [vmem:[#allocation2 + $0x30] sm:$0x1]
      %v214 = vsel %vm200, 0, %v213
      %215 = vst [vmem:[#allocation2 + $0x30] sm:$0x1] %v214
      %v216 = vld [vmem:[#allocation2 + $0x3c] sm:$0x1]
      %v217 = vsel %vm200, 0, %v216
      %218 = vst [vmem:[#allocation2 + $0x3c] sm:$0x1] %v217
      %v219 = vld [vmem:[#allocation2 + $0x48] sm:$0x1]
      %v220 = vsel %vm200, 0, %v219
      %221 = vst [vmem:[#allocation2 + $0x48] sm:$0x1] %v220
      %v222 = vld [vmem:[#allocation2 + $0x54] sm:$0x1]
      %v223 = vsel %vm200, 0, %v222
      %224 = vst [vmem:[#allocation2 + $0x54] sm:$0x1] %v223
      %v225 = vld [vmem:[#allocation2 + $0x60] sm:$0x1]
      %v226 = vsel %vm200, 0, %v225
      %227 = vst [vmem:[#allocation2 + $0x60] sm:$0x1] %v226
      %v228 = vld [vmem:[#allocation2 + $0x6c] sm:$0x1]
      %v229 = vsel %vm200, 0, %v228
      %230 = vst [vmem:[#allocation2 + $0x6c] sm:$0x1] %v229
      %v231 = vld [vmem:[#allocation2 + $0x78] sm:$0x1]
      %v232 = vsel %vm200, 0, %v231
      %233 = vst [vmem:[#allocation2 + $0x78] sm:$0x1] %v232
      %v234 = vld [vmem:[#allocation2 + $0x84] sm:$0x1]
      %v235 = vsel %vm200, 0, %v234
      %236 = vst [vmem:[#allocation2 + $0x84] sm:$0x1] %v235
      %v237 = vld [vmem:[#allocation2 + $0x90] sm:$0x1]
      %v238 = vsel %vm200, 0, %v237
      %239 = vst [vmem:[#allocation2 + $0x90] sm:$0x1] %v238
      %v240 = vld [vmem:[#allocation2 + $0x9c] sm:$0x1]
      %v241 = vsel %vm200, 0, %v240
      %242 = vst [vmem:[#allocation2 + $0x9c] sm:$0x1] %v241
      %v243 = vld [vmem:[#allocation2 + $0xa8] sm:$0x1]
      %v244 = vsel %vm200, 0, %v243
      %245 = vst [vmem:[#allocation2 + $0xa8] sm:$0x1] %v244
      %v246 = vld [vmem:[#allocation2 + $0xb4] sm:$0x1]
      %v247 = vsel %vm200, 0, %v246
      %248 = vst [vmem:[#allocation2 + $0xb4] sm:$0x1] %v247
      %v249 = vld [vmem:[#allocation2 + $0xc0] sm:$0x1]
      %v250 = vsel %vm200, 0, %v249
      %251 = vst [vmem:[#allocation2 + $0xc0] sm:$0x1] %v250
      %v252 = vld [vmem:[#allocation2 + $0xcc] sm:$0x1]
      %v253 = vsel %vm200, 0, %v252
      %254 = vst [vmem:[#allocation2 + $0xcc] sm:$0x1] %v253
      %vm255 = vsmask.f32 7938
      %vm256 = vmand %vm198, %vm255
      %v257 = vld [vmem:[#allocation2 + $0x8] sm:$0x1]
      %v258 = vsel %vm256, 0, %v257
      %259 = vst [vmem:[#allocation2 + $0x8] sm:$0x1] %v258
      %v260 = vld [vmem:[#allocation2 + $0x14] sm:$0x1]
      %v261 = vsel %vm256, 0, %v260
      %262 = vst [vmem:[#allocation2 + $0x14] sm:$0x1] %v261
      %v263 = vld [vmem:[#allocation2 + $0x20] sm:$0x1]
      %v264 = vsel %vm256, 0, %v263
      %265 = vst [vmem:[#allocation2 + $0x20] sm:$0x1] %v264
      %v266 = vld [vmem:[#allocation2 + $0x2c] sm:$0x1]
      %v267 = vsel %vm256, 0, %v266
      %268 = vst [vmem:[#allocation2 + $0x2c] sm:$0x1] %v267
      %v269 = vld [vmem:[#allocation2 + $0x38] sm:$0x1]
      %v270 = vsel %vm256, 0, %v269
      %271 = vst [vmem:[#allocation2 + $0x38] sm:$0x1] %v270
      %v272 = vld [vmem:[#allocation2 + $0x44] sm:$0x1]
      %v273 = vsel %vm256, 0, %v272
      %274 = vst [vmem:[#allocation2 + $0x44] sm:$0x1] %v273
      %v275 = vld [vmem:[#allocation2 + $0x50] sm:$0x1]
      %v276 = vsel %vm256, 0, %v275
      %277 = vst [vmem:[#allocation2 + $0x50] sm:$0x1] %v276
      %v278 = vld [vmem:[#allocation2 + $0x5c] sm:$0x1]
      %v279 = vsel %vm256, 0, %v278
      %280 = vst [vmem:[#allocation2 + $0x5c] sm:$0x1] %v279
      %v281 = vld [vmem:[#allocation2 + $0x68] sm:$0x1]
      %v282 = vsel %vm256, 0, %v281
      %283 = vst [vmem:[#allocation2 + $0x68] sm:$0x1] %v282
      %v284 = vld [vmem:[#allocation2 + $0x74] sm:$0x1]
      %v285 = vsel %vm256, 0, %v284
      %286 = vst [vmem:[#allocation2 + $0x74] sm:$0x1] %v285
      %v287 = vld [vmem:[#allocation2 + $0x80] sm:$0x1]
      %v288 = vsel %vm256, 0, %v287
      %289 = vst [vmem:[#allocation2 + $0x80] sm:$0x1] %v288
      %v290 = vld [vmem:[#allocation2 + $0x8c] sm:$0x1]
      %v291 = vsel %vm256, 0, %v290
      %292 = vst [vmem:[#allocation2 + $0x8c] sm:$0x1] %v291
      %v293 = vld [vmem:[#allocation2 + $0x98] sm:$0x1]
      %v294 = vsel %vm256, 0, %v293
      %295 = vst [vmem:[#allocation2 + $0x98] sm:$0x1] %v294
      %v296 = vld [vmem:[#allocation2 + $0xa4] sm:$0x1]
      %v297 = vsel %vm256, 0, %v296
      %298 = vst [vmem:[#allocation2 + $0xa4] sm:$0x1] %v297
      %v299 = vld [vmem:[#allocation2 + $0xb0] sm:$0x1]
      %v300 = vsel %vm256, 0, %v299
      %301 = vst [vmem:[#allocation2 + $0xb0] sm:$0x1] %v300
      %v302 = vld [vmem:[#allocation2 + $0xbc] sm:$0x1]
      %v303 = vsel %vm256, 0, %v302
      %304 = vst [vmem:[#allocation2 + $0xbc] sm:$0x1] %v303
      %v305 = vld [vmem:[#allocation2 + $0xc8] sm:$0x1]
      %v306 = vsel %vm256, 0, %v305
      %307 = vst [vmem:[#allocation2 + $0xc8] sm:$0x1] %v306
      %v308 = vld [vmem:[#allocation2 + $0xd4] sm:$0x1]
      %v309 = vsel %vm256, 0, %v308
      %310 = vst [vmem:[#allocation2 + $0xd4] sm:$0x1] %v309
      %p311 = scmp.eq.s32.totalorder %s19, 0
      // Predicated region
      $region33: #{tpu_custom_call.1} parent=31 // pred_check
        %p312 = pneg %p311
      $region34: #{tpu_custom_call.1} parent=31 // pred_check_branch
        %314 = sbr.rel (%p312) target = $region36
      $region35: #{tpu_custom_call.1} parent=31 // pred_region
        %vm315 = vcmask 27648
        %vm316 = vmand %vm315, %vm255
        %v317 = vld [vmem:[#allocation2] sm:$0xf]
        %v318 = vsel %vm316, 0, %v317
        %319 = vst [vmem:[#allocation2] sm:$0xf] %v318
        %vm320 = vcmask 27648
        %321 = vst.msk [vmem:[#allocation2 + $0x4] sm:$0xf] %vm320, 0
        %v322 = vld [vmem:[#allocation2 + $0x8] sm:$0x1]
        %v323 = vsel %vm200, 0, %v322
        %324 = vst [vmem:[#allocation2 + $0x8] sm:$0x1] %v323
        %s325 = scalar_lea.vmem [#allocation2], 204
        %v326 = vld [vmem:[%s325] sm:$0xf]
        %v327 = vsel %vm316, 0, %v326
        %328 = vst [vmem:[%s325] sm:$0xf] %v327
        %329 = vst.msk [vmem:[%s325 + $0x4] sm:$0xf] %vm320, 0
        %v330 = vld [vmem:[%s325 + $0x8] sm:$0x1]
        %v331 = vsel %vm200, 0, %v330
        %332 = vst [vmem:[%s325 + $0x8] sm:$0x1] %v331
      $region36: #{tpu_custom_call.1} parent=31 // pred_fallthru
        _
      %s333 = smul.u32 %s197, 2
      %s334 = smul.addr %s333, 4
      %s335 = scalar_lea.vmem %s184, %s334
      %v336 = vld [vmem:[%s335] sm:$0xf]
      %v337 = vld [vmem:[%s335 + $0x4] sm:$0xf]
      %v338 = vld [vmem:[%s335 + $0x8] sm:$0xf]
      %v339 = vld [vmem:[%s335 + $0xc] sm:$0xf]
      %v340 = vld [vmem:[%s335 + $0x10] sm:$0xf]
      %v341 = vld [vmem:[%s335 + $0x14] sm:$0xf]
      %v342 = vld [vmem:[%s335 + $0x18] sm:$0xf]
      %v343 = vld [vmem:[%s335 + $0x1c] sm:$0xf]
      %v344 = vld [vmem:[%s335 + $0x20] sm:$0xf]
      %v345 = vld [vmem:[%s335 + $0x24] sm:$0xf]
      %v346 = vld [vmem:[%s335 + $0x28] sm:$0xf]
      %v347 = vld [vmem:[%s335 + $0x2c] sm:$0xf]
      %v348 = vld [vmem:[%s335 + $0x30] sm:$0xf]
      %v349 = vld [vmem:[%s335 + $0x34] sm:$0xf]
      %v350 = vld [vmem:[%s335 + $0x38] sm:$0xf]
      %v351 = vld [vmem:[%s335 + $0x3c] sm:$0xf]
      %v352 = vld [vmem:[%s335 + $0x40] sm:$0xf]
      %v353 = vld [vmem:[%s335 + $0x44] sm:$0xf]
      %v354 = vld [vmem:[%s335 + $0x48] sm:$0xf]
      %v355 = vld [vmem:[%s335 + $0x4c] sm:$0xf]
      %v356 = vld [vmem:[%s335 + $0x50] sm:$0xf]
      %v357 = vld [vmem:[%s335 + $0x54] sm:$0xf]
      %v358 = vld [vmem:[%s335 + $0x58] sm:$0xf]
      %v359 = vld [vmem:[%s335 + $0x5c] sm:$0xf]
      %v360 = vld [vmem:[%s335 + $0x60] sm:$0xf]
      %v361 = vld [vmem:[%s335 + $0x64] sm:$0xf]
      %v362 = vld [vmem:[%s335 + $0x68] sm:$0xf]
      %v363 = vld [vmem:[%s335 + $0x6c] sm:$0xf]
      %v364 = vld [vmem:[%s335 + $0x70] sm:$0xf]
      %v365 = vld [vmem:[%s335 + $0x74] sm:$0xf]
      %v366 = vld [vmem:[%s335 + $0x78] sm:$0xf]
      %v367 = vld [vmem:[%s335 + $0x7c] sm:$0xf]
      %vm368 = vsmask.f32 4368
      %vm369 = vmor %vm199, %vm368
      %v371 = vshrl.u32 %v336, 16
      %v373 = vrot.slane %v371, 7
      %v374 = vshll.u32 %v336, 16
      %v376 = vor.u32 %v373, %v374
      %v377 = vrot.slane %v373, 4
      %v379 = vshrl.u32 %v337, 16
      %v381 = vrot.slane %v379, 7
      %v382 = vshll.u32 %v337, 16
      %v384 = vor.u32 %v381, %v382
      %v385 = vsel %vm369, %v377, %v384
      %v386 = vrot.slane %v381, 4
      %v388 = vshrl.u32 %v338, 16
      %v390 = vrot.slane %v388, 7
      %v391 = vshll.u32 %v338, 16
      %v393 = vor.u32 %v390, %v391
      %v394 = vrot.slane %v390, 4
      %v396 = vshrl.u32 %v339, 16
      %v398 = vrot.slane %v396, 7
      %v399 = vshll.u32 %v339, 16
      %v401 = vor.u32 %v398, %v399
      %v402 = vsel %vm369, %v394, %v401
      %v403 = vrot.slane %v398, 4
      %v405 = vshrl.u32 %v340, 16
      %v407 = vrot.slane %v405, 7
      %v408 = vshll.u32 %v340, 16
      %v410 = vor.u32 %v407, %v408
      %v411 = vrot.slane %v407, 4
      %v413 = vshrl.u32 %v341, 16
      %v415 = vrot.slane %v413, 7
      %v416 = vshll.u32 %v341, 16
      %v418 = vor.u32 %v415, %v416
      %v419 = vsel %vm369, %v411, %v418
      %v420 = vrot.slane %v415, 4
      %v422 = vshrl.u32 %v342, 16
      %v424 = vrot.slane %v422, 7
      %v425 = vshll.u32 %v342, 16
      %v427 = vor.u32 %v424, %v425
      %v428 = vrot.slane %v424, 4
      %v430 = vshrl.u32 %v343, 16
      %v432 = vrot.slane %v430, 7
      %v433 = vshll.u32 %v343, 16
      %v435 = vor.u32 %v432, %v433
      %v436 = vsel %vm369, %v428, %v435
      %v437 = vrot.slane %v432, 4
      %v439 = vshrl.u32 %v344, 16
      %v441 = vrot.slane %v439, 7
      %v442 = vshll.u32 %v344, 16
      %v444 = vor.u32 %v441, %v442
      %v445 = vrot.slane %v441, 4
      %v447 = vshrl.u32 %v345, 16
      %v449 = vrot.slane %v447, 7
      %v450 = vshll.u32 %v345, 16
      %v452 = vor.u32 %v449, %v450
      %v453 = vsel %vm369, %v445, %v452
      %v454 = vrot.slane %v449, 4
      %v456 = vshrl.u32 %v346, 16
      %v458 = vrot.slane %v456, 7
      %v459 = vshll.u32 %v346, 16
      %v461 = vor.u32 %v458, %v459
      %v462 = vrot.slane %v458, 4
      %v464 = vshrl.u32 %v347, 16
      %v466 = vrot.slane %v464, 7
      %v467 = vshll.u32 %v347, 16
      %v469 = vor.u32 %v466, %v467
      %v470 = vsel %vm369, %v462, %v469
      %v471 = vrot.slane %v466, 4
      %v473 = vshrl.u32 %v348, 16
      %v475 = vrot.slane %v473, 7
      %v476 = vshll.u32 %v348, 16
      %v478 = vor.u32 %v475, %v476
      %v479 = vrot.slane %v475, 4
      %v481 = vshrl.u32 %v349, 16
      %v483 = vrot.slane %v481, 7
      %v484 = vshll.u32 %v349, 16
      %v486 = vor.u32 %v483, %v484
      %v487 = vsel %vm369, %v479, %v486
      %v488 = vrot.slane %v483, 4
      %v490 = vshrl.u32 %v350, 16
      %v492 = vrot.slane %v490, 7
      %v493 = vshll.u32 %v350, 16
      %v495 = vor.u32 %v492, %v493
      %v496 = vrot.slane %v492, 4
      %v498 = vshrl.u32 %v351, 16
      %v500 = vrot.slane %v498, 7
      %v501 = vshll.u32 %v351, 16
      %v503 = vor.u32 %v500, %v501
      %v504 = vsel %vm369, %v496, %v503
      %v505 = vrot.slane %v500, 4
      %v507 = vshrl.u32 %v352, 16
      %v509 = vrot.slane %v507, 7
      %v510 = vshll.u32 %v352, 16
      %v512 = vor.u32 %v509, %v510
      %v513 = vrot.slane %v509, 4
      %v515 = vshrl.u32 %v353, 16
      %v517 = vrot.slane %v515, 7
      %v518 = vshll.u32 %v353, 16
      %v520 = vor.u32 %v517, %v518
      %v521 = vsel %vm369, %v513, %v520
      %v522 = vrot.slane %v517, 4
      %v524 = vshrl.u32 %v354, 16
      %v526 = vrot.slane %v524, 7
      %v527 = vshll.u32 %v354, 16
      %v529 = vor.u32 %v526, %v527
      %v530 = vrot.slane %v526, 4
      %v532 = vshrl.u32 %v355, 16
      %v534 = vrot.slane %v532, 7
      %v535 = vshll.u32 %v355, 16
      %v537 = vor.u32 %v534, %v535
      %v538 = vsel %vm369, %v530, %v537
      %v539 = vrot.slane %v534, 4
      %v541 = vshrl.u32 %v356, 16
      %v543 = vrot.slane %v541, 7
      %v544 = vshll.u32 %v356, 16
      %v546 = vor.u32 %v543, %v544
      %v547 = vrot.slane %v543, 4
      %v549 = vshrl.u32 %v357, 16
      %v551 = vrot.slane %v549, 7
      %v552 = vshll.u32 %v357, 16
      %v554 = vor.u32 %v551, %v552
      %v555 = vsel %vm369, %v547, %v554
      %v556 = vrot.slane %v551, 4
      %v558 = vshrl.u32 %v358, 16
      %v560 = vrot.slane %v558, 7
      %v561 = vshll.u32 %v358, 16
      %v563 = vor.u32 %v560, %v561
      %v564 = vrot.slane %v560, 4
      %v566 = vshrl.u32 %v359, 16
      %v568 = vrot.slane %v566, 7
      %v569 = vshll.u32 %v359, 16
      %v571 = vor.u32 %v568, %v569
      %v572 = vsel %vm369, %v564, %v571
      %v573 = vrot.slane %v568, 4
      %v575 = vshrl.u32 %v360, 16
      %v577 = vrot.slane %v575, 7
      %v578 = vshll.u32 %v360, 16
      %v580 = vor.u32 %v577, %v578
      %v581 = vrot.slane %v577, 4
      %v583 = vshrl.u32 %v361, 16
      %v585 = vrot.slane %v583, 7
      %v586 = vshll.u32 %v361, 16
      %v588 = vor.u32 %v585, %v586
      %v589 = vsel %vm369, %v581, %v588
      %v590 = vrot.slane %v585, 4
      %v592 = vshrl.u32 %v362, 16
      %v594 = vrot.slane %v592, 7
      %v595 = vshll.u32 %v362, 16
      %v597 = vor.u32 %v594, %v595
      %v598 = vrot.slane %v594, 4
      %v600 = vshrl.u32 %v363, 16
      %v602 = vrot.slane %v600, 7
      %v603 = vshll.u32 %v363, 16
      %v605 = vor.u32 %v602, %v603
      %v606 = vsel %vm369, %v598, %v605
      %v607 = vrot.slane %v602, 4
      %v609 = vshrl.u32 %v364, 16
      %v611 = vrot.slane %v609, 7
      %v612 = vshll.u32 %v364, 16
      %v614 = vor.u32 %v611, %v612
      %v615 = vrot.slane %v611, 4
      %v617 = vshrl.u32 %v365, 16
      %v619 = vrot.slane %v617, 7
      %v620 = vshll.u32 %v365, 16
      %v622 = vor.u32 %v619, %v620
      %v623 = vsel %vm369, %v615, %v622
      %v624 = vrot.slane %v619, 4
      %v626 = vshrl.u32 %v366, 16
      %v628 = vrot.slane %v626, 7
      %v629 = vshll.u32 %v366, 16
      %v631 = vor.u32 %v628, %v629
      %v632 = vrot.slane %v628, 4
      %v634 = vshrl.u32 %v367, 16
      %v636 = vrot.slane %v634, 7
      %v637 = vshll.u32 %v367, 16
      %v639 = vor.u32 %v636, %v637
      %v640 = vsel %vm369, %v632, %v639
      %v641 = vrot.slane %v636, 4
      %s690 = scalar_lea.vmem [#allocation2], 12
      %vm691 = vcmask 27648
      %vm692 = vmand %vm691, %vm255
      %v693 = vld [vmem:[%s690] sm:$0xf]
      %v694 = vsel %vm692, %v376, %v693
      %695 = vst [vmem:[%s690] sm:$0xf] %v694
      %vm696 = vcmask 27648
      %697 = vst.msk [vmem:[%s690 + $0x4] sm:$0xf] %vm696, %v385
      %v698 = vld [vmem:[%s690 + $0x8] sm:$0x1]
      %v699 = vsel %vm200, %v386, %v698
      %700 = vst [vmem:[%s690 + $0x8] sm:$0x1] %v699
      %v701 = vld [vmem:[%s690 + $0xc] sm:$0xf]
      %v702 = vsel %vm692, %v393, %v701
      %703 = vst [vmem:[%s690 + $0xc] sm:$0xf] %v702
      %704 = vst.msk [vmem:[%s690 + $0x10] sm:$0xf] %vm696, %v402
      %v705 = vld [vmem:[%s690 + $0x14] sm:$0x1]
      %v706 = vsel %vm200, %v403, %v705
      %707 = vst [vmem:[%s690 + $0x14] sm:$0x1] %v706
      %v708 = vld [vmem:[%s690 + $0x18] sm:$0xf]
      %v709 = vsel %vm692, %v410, %v708
      %710 = vst [vmem:[%s690 + $0x18] sm:$0xf] %v709
      %711 = vst.msk [vmem:[%s690 + $0x1c] sm:$0xf] %vm696, %v419
      %v712 = vld [vmem:[%s690 + $0x20] sm:$0x1]
      %v713 = vsel %vm200, %v420, %v712
      %714 = vst [vmem:[%s690 + $0x20] sm:$0x1] %v713
      %v715 = vld [vmem:[%s690 + $0x24] sm:$0xf]
      %v716 = vsel %vm692, %v427, %v715
      %717 = vst [vmem:[%s690 + $0x24] sm:$0xf] %v716
      %718 = vst.msk [vmem:[%s690 + $0x28] sm:$0xf] %vm696, %v436
      %v719 = vld [vmem:[%s690 + $0x2c] sm:$0x1]
      %v720 = vsel %vm200, %v437, %v719
      %721 = vst [vmem:[%s690 + $0x2c] sm:$0x1] %v720
      %v722 = vld [vmem:[%s690 + $0x30] sm:$0xf]
      %v723 = vsel %vm692, %v444, %v722
      %724 = vst [vmem:[%s690 + $0x30] sm:$0xf] %v723
      %725 = vst.msk [vmem:[%s690 + $0x34] sm:$0xf] %vm696, %v453
      %v726 = vld [vmem:[%s690 + $0x38] sm:$0x1]
      %v727 = vsel %vm200, %v454, %v726
      %728 = vst [vmem:[%s690 + $0x38] sm:$0x1] %v727
      %v729 = vld [vmem:[%s690 + $0x3c] sm:$0xf]
      %v730 = vsel %vm692, %v461, %v729
      %731 = vst [vmem:[%s690 + $0x3c] sm:$0xf] %v730
      %732 = vst.msk [vmem:[%s690 + $0x40] sm:$0xf] %vm696, %v470
      %v733 = vld [vmem:[%s690 + $0x44] sm:$0x1]
      %v734 = vsel %vm200, %v471, %v733
      %735 = vst [vmem:[%s690 + $0x44] sm:$0x1] %v734
      %v736 = vld [vmem:[%s690 + $0x48] sm:$0xf]
      %v737 = vsel %vm692, %v478, %v736
      %738 = vst [vmem:[%s690 + $0x48] sm:$0xf] %v737
      %739 = vst.msk [vmem:[%s690 + $0x4c] sm:$0xf] %vm696, %v487
      %v740 = vld [vmem:[%s690 + $0x50] sm:$0x1]
      %v741 = vsel %vm200, %v488, %v740
      %742 = vst [vmem:[%s690 + $0x50] sm:$0x1] %v741
      %v743 = vld [vmem:[%s690 + $0x54] sm:$0xf]
      %v744 = vsel %vm692, %v495, %v743
      %745 = vst [vmem:[%s690 + $0x54] sm:$0xf] %v744
      %746 = vst.msk [vmem:[%s690 + $0x58] sm:$0xf] %vm696, %v504
      %v747 = vld [vmem:[%s690 + $0x5c] sm:$0x1]
      %v748 = vsel %vm200, %v505, %v747
      %749 = vst [vmem:[%s690 + $0x5c] sm:$0x1] %v748
      %v750 = vld [vmem:[%s690 + $0x60] sm:$0xf]
      %v751 = vsel %vm692, %v512, %v750
      %752 = vst [vmem:[%s690 + $0x60] sm:$0xf] %v751
      %753 = vst.msk [vmem:[%s690 + $0x64] sm:$0xf] %vm696, %v521
      %v754 = vld [vmem:[%s690 + $0x68] sm:$0x1]
      %v755 = vsel %vm200, %v522, %v754
      %756 = vst [vmem:[%s690 + $0x68] sm:$0x1] %v755
      %v757 = vld [vmem:[%s690 + $0x6c] sm:$0xf]
      %v758 = vsel %vm692, %v529, %v757
      %759 = vst [vmem:[%s690 + $0x6c] sm:$0xf] %v758
      %760 = vst.msk [vmem:[%s690 + $0x70] sm:$0xf] %vm696, %v538
      %v761 = vld [vmem:[%s690 + $0x74] sm:$0x1]
      %v762 = vsel %vm200, %v539, %v761
      %763 = vst [vmem:[%s690 + $0x74] sm:$0x1] %v762
      %v764 = vld [vmem:[%s690 + $0x78] sm:$0xf]
      %v765 = vsel %vm692, %v546, %v764
      %766 = vst [vmem:[%s690 + $0x78] sm:$0xf] %v765
      %767 = vst.msk [vmem:[%s690 + $0x7c] sm:$0xf] %vm696, %v555
      %v768 = vld [vmem:[%s690 + $0x80] sm:$0x1]
      %v769 = vsel %vm200, %v556, %v768
      %770 = vst [vmem:[%s690 + $0x80] sm:$0x1] %v769
      %v771 = vld [vmem:[%s690 + $0x84] sm:$0xf]
      %v772 = vsel %vm692, %v563, %v771
      %773 = vst [vmem:[%s690 + $0x84] sm:$0xf] %v772
      %774 = vst.msk [vmem:[%s690 + $0x88] sm:$0xf] %vm696, %v572
      %v775 = vld [vmem:[%s690 + $0x8c] sm:$0x1]
      %v776 = vsel %vm200, %v573, %v775
      %777 = vst [vmem:[%s690 + $0x8c] sm:$0x1] %v776
      %v778 = vld [vmem:[%s690 + $0x90] sm:$0xf]
      %v779 = vsel %vm692, %v580, %v778
      %780 = vst [vmem:[%s690 + $0x90] sm:$0xf] %v779
      %781 = vst.msk [vmem:[%s690 + $0x94] sm:$0xf] %vm696, %v589
      %v782 = vld [vmem:[%s690 + $0x98] sm:$0x1]
      %v783 = vsel %vm200, %v590, %v782
      %784 = vst [vmem:[%s690 + $0x98] sm:$0x1] %v783
      %v785 = vld [vmem:[%s690 + $0x9c] sm:$0xf]
      %v786 = vsel %vm692, %v597, %v785
      %787 = vst [vmem:[%s690 + $0x9c] sm:$0xf] %v786
      %788 = vst.msk [vmem:[%s690 + $0xa0] sm:$0xf] %vm696, %v606
      %v789 = vld [vmem:[%s690 + $0xa4] sm:$0x1]
      %v790 = vsel %vm200, %v607, %v789
      %791 = vst [vmem:[%s690 + $0xa4] sm:$0x1] %v790
      %v792 = vld [vmem:[%s690 + $0xa8] sm:$0xf]
      %v793 = vsel %vm692, %v614, %v792
      %794 = vst [vmem:[%s690 + $0xa8] sm:$0xf] %v793
      %795 = vst.msk [vmem:[%s690 + $0xac] sm:$0xf] %vm696, %v623
      %v796 = vld [vmem:[%s690 + $0xb0] sm:$0x1]
      %v797 = vsel %vm200, %v624, %v796
      %798 = vst [vmem:[%s690 + $0xb0] sm:$0x1] %v797
      %v799 = vld [vmem:[%s690 + $0xb4] sm:$0xf]
      %v800 = vsel %vm692, %v631, %v799
      %801 = vst [vmem:[%s690 + $0xb4] sm:$0xf] %v800
      %802 = vst.msk [vmem:[%s690 + $0xb8] sm:$0xf] %vm696, %v640
      %v803 = vld [vmem:[%s690 + $0xbc] sm:$0x1]
      %v804 = vsel %vm200, %v641, %v803
      %805 = vst [vmem:[%s690 + $0xbc] sm:$0x1] %v804
      %p806 = scmp.gt.s32.totalorder %s19, 0
      // Predicated region
      $region37: #{tpu_custom_call.1} parent=31 // pred_check
        %p807 = pneg %p806
      $region38: #{tpu_custom_call.1} parent=31 // pred_check_branch
        %809 = sbr.rel (%p807) target = $region40
      $region39: #{tpu_custom_call.1} parent=31 // pred_region
        %s810 = ssub.s32 %s197, 1
        %s811 = smul.u32 %s810, 2
        %s812 = smul.addr %s811, 4
        %s813 = scalar_lea.vmem %s184, %s812
        %v814 = vld [vmem:[%s813] sm:$0xf]
        %v815 = vld [vmem:[%s813 + $0x4] sm:$0xf]
        %v817 = vshrl.u32 %v814, 16
        %v819 = vrot.slane %v817, 7
        %v820 = vshll.u32 %v814, 16
        %v822 = vor.u32 %v819, %v820
        %v823 = vrot.slane %v819, 4
        %v825 = vshrl.u32 %v815, 16
        %v827 = vrot.slane %v825, 7
        %v828 = vshll.u32 %v815, 16
        %v830 = vor.u32 %v827, %v828
        %v831 = vsel %vm369, %v823, %v830
        %v832 = vrot.slane %v827, 4
        %v836 = vld [vmem:[#allocation2] sm:$0xf]
        %v837 = vsel %vm692, %v822, %v836
        %838 = vst [vmem:[#allocation2] sm:$0xf] %v837
        %839 = vst.msk [vmem:[#allocation2 + $0x4] sm:$0xf] %vm696, %v831
        %v840 = vld [vmem:[#allocation2 + $0x8] sm:$0x1]
        %v841 = vsel %vm200, %v832, %v840
        %842 = vst [vmem:[#allocation2 + $0x8] sm:$0x1] %v841
      $region40: #{tpu_custom_call.1} parent=31 // pred_fallthru
        _
      %p843 = scmp.lt.s32.totalorder %s19, 0
      // Predicated region
      $region41: #{tpu_custom_call.1} parent=31 // pred_check
        %p844 = pneg %p843
      $region42: #{tpu_custom_call.1} parent=31 // pred_check_branch
        %846 = sbr.rel (%p844) target = $region44
      $region43: #{tpu_custom_call.1} parent=31 // pred_region
        %s847 = sadd.s32 %s197, 16
        %s848 = smul.u32 %s847, 2
        %s849 = smul.addr %s848, 4
        %s850 = scalar_lea.vmem %s184, %s849
        %v851 = vld [vmem:[%s850] sm:$0xf]
        %v852 = vld [vmem:[%s850 + $0x4] sm:$0xf]
        %v854 = vshrl.u32 %v851, 16
        %v856 = vrot.slane %v854, 7
        %v857 = vshll.u32 %v851, 16
        %v859 = vor.u32 %v856, %v857
        %v860 = vrot.slane %v856, 4
        %v862 = vshrl.u32 %v852, 16
        %v864 = vrot.slane %v862, 7
        %v865 = vshll.u32 %v852, 16
        %v867 = vor.u32 %v864, %v865
        %v868 = vsel %vm369, %v860, %v867
        %v869 = vrot.slane %v864, 4
        %s873 = scalar_lea.vmem [#allocation2], 204
        %v874 = vld [vmem:[%s873] sm:$0xf]
        %v875 = vsel %vm692, %v859, %v874
        %876 = vst [vmem:[%s873] sm:$0xf] %v875
        %877 = vst.msk [vmem:[%s873 + $0x4] sm:$0xf] %vm696, %v868
        %v878 = vld [vmem:[%s873 + $0x8] sm:$0x1]
        %v879 = vsel %vm200, %v869, %v878
        %880 = vst [vmem:[%s873 + $0x8] sm:$0x1] %v879
      $region44: #{tpu_custom_call.1} parent=31 // pred_fallthru
        _
      %v881 = vld [vmem:[#allocation2] sm:$0xf]
      %v882 = vld [vmem:[#allocation2 + $0x4] sm:$0xf]
      %v883 = vld [vmem:[#allocation2 + $0xc] sm:$0xf]
      %v884 = vld [vmem:[#allocation2 + $0x10] sm:$0xf]
      %v885 = vld [vmem:[#allocation2 + $0x18] sm:$0xf]
      %v886 = vld [vmem:[#allocation2 + $0x1c] sm:$0xf]
      %v887 = vld [vmem:[#allocation2 + $0x24] sm:$0xf]
      %v888 = vld [vmem:[#allocation2 + $0x28] sm:$0xf]
      %v889 = vld [vmem:[#allocation2 + $0x30] sm:$0xf]
      %v890 = vld [vmem:[#allocation2 + $0x34] sm:$0xf]
      %v891 = vld [vmem:[#allocation2 + $0x3c] sm:$0xf]
      %v892 = vld [vmem:[#allocation2 + $0x40] sm:$0xf]
      %v893 = vld [vmem:[#allocation2 + $0x48] sm:$0xf]
      %v894 = vld [vmem:[#allocation2 + $0x4c] sm:$0xf]
      %v895 = vld [vmem:[#allocation2 + $0x54] sm:$0xf]
      %v896 = vld [vmem:[#allocation2 + $0x58] sm:$0xf]
      %v897 = vld [vmem:[#allocation2 + $0x60] sm:$0xf]
      %v898 = vld [vmem:[#allocation2 + $0x64] sm:$0xf]
      %v899 = vld [vmem:[#allocation2 + $0x6c] sm:$0xf]
      %v900 = vld [vmem:[#allocation2 + $0x70] sm:$0xf]
      %v901 = vld [vmem:[#allocation2 + $0x78] sm:$0xf]
      %v902 = vld [vmem:[#allocation2 + $0x7c] sm:$0xf]
      %v903 = vld [vmem:[#allocation2 + $0x84] sm:$0xf]
      %v904 = vld [vmem:[#allocation2 + $0x88] sm:$0xf]
      %v905 = vld [vmem:[#allocation2 + $0x90] sm:$0xf]
      %v906 = vld [vmem:[#allocation2 + $0x94] sm:$0xf]
      %v907 = vld [vmem:[#allocation2 + $0x9c] sm:$0xf]
      %v908 = vld [vmem:[#allocation2 + $0xa0] sm:$0xf]
      %v909 = vld [vmem:[#allocation2 + $0xa8] sm:$0xf]
      %v910 = vld [vmem:[#allocation2 + $0xac] sm:$0xf]
      %v911 = vld [vmem:[#allocation2 + $0xb4] sm:$0xf]
      %v912 = vld [vmem:[#allocation2 + $0xb8] sm:$0xf]
      %v913 = vld [vmem:[#allocation2 + $0x8] sm:$0x1]
      %v914 = vld [vmem:[#allocation2 + $0x14] sm:$0x1]
      %v915 = vld [vmem:[#allocation2 + $0x20] sm:$0x1]
      %v916 = vld [vmem:[#allocation2 + $0x2c] sm:$0x1]
      %v917 = vld [vmem:[#allocation2 + $0x38] sm:$0x1]
      %v918 = vld [vmem:[#allocation2 + $0x44] sm:$0x1]
      %v919 = vld [vmem:[#allocation2 + $0x50] sm:$0x1]
      %v920 = vld [vmem:[#allocation2 + $0x5c] sm:$0x1]
      %v921 = vld [vmem:[#allocation2 + $0x68] sm:$0x1]
      %v922 = vld [vmem:[#allocation2 + $0x74] sm:$0x1]
      %v923 = vld [vmem:[#allocation2 + $0x80] sm:$0x1]
      %v924 = vld [vmem:[#allocation2 + $0x8c] sm:$0x1]
      %v925 = vld [vmem:[#allocation2 + $0x98] sm:$0x1]
      %v926 = vld [vmem:[#allocation2 + $0xa4] sm:$0x1]
      %v927 = vld [vmem:[#allocation2 + $0xb0] sm:$0x1]
      %v928 = vld [vmem:[#allocation2 + $0xbc] sm:$0x1]
      %vm929 = vsmask.f32 3328
      %vm930 = vsmask.f32 7440
      %vm931 = vmor %vm929, %vm930
      %v933 = vshrl.u32 %v881, 16
      %v935 = vrot.slane %v933, 4
      %v936 = vshll.u32 %v881, 16
      %v938 = vrot.slane %v936, 5
      %v939 = vor.u32 %v935, %v938
      %v940 = vrot.slane %v939, 4
      %v942 = vshll.u32 %v882, 16
      %v944 = vrot.slane %v942, 5
      %v945 = vsel %vm931, %v940, %v944
      %v946 = vshrl.u32 %v882, 16
      %v948 = vrot.slane %v946, 4
      %v949 = vor.u32 %v948, %v944
      %v950 = vrot.slane %v949, 4
      %v952 = vshll.u32 %v913, 16
      %v954 = vrot.slane %v952, 5
      %v955 = vsel %vm931, %v950, %v954
      %v957 = vshrl.u32 %v883, 16
      %v959 = vrot.slane %v957, 4
      %v960 = vshll.u32 %v883, 16
      %v962 = vrot.slane %v960, 5
      %v963 = vor.u32 %v959, %v962
      %v964 = vrot.slane %v963, 4
      %v966 = vshll.u32 %v884, 16
      %v968 = vrot.slane %v966, 5
      %v969 = vsel %vm931, %v964, %v968
      %v970 = vshrl.u32 %v884, 16
      %v972 = vrot.slane %v970, 4
      %v973 = vor.u32 %v972, %v968
      %v974 = vrot.slane %v973, 4
      %v976 = vshll.u32 %v914, 16
      %v978 = vrot.slane %v976, 5
      %v979 = vsel %vm931, %v974, %v978
      %v981 = vshrl.u32 %v885, 16
      %v983 = vrot.slane %v981, 4
      %v984 = vshll.u32 %v885, 16
      %v986 = vrot.slane %v984, 5
      %v987 = vor.u32 %v983, %v986
      %v988 = vrot.slane %v987, 4
      %v990 = vshll.u32 %v886, 16
      %v992 = vrot.slane %v990, 5
      %v993 = vsel %vm931, %v988, %v992
      %v994 = vshrl.u32 %v886, 16
      %v996 = vrot.slane %v994, 4
      %v997 = vor.u32 %v996, %v992
      %v998 = vrot.slane %v997, 4
      %v1000 = vshll.u32 %v915, 16
      %v1002 = vrot.slane %v1000, 5
      %v1003 = vsel %vm931, %v998, %v1002
      %v1005 = vshrl.u32 %v887, 16
      %v1007 = vrot.slane %v1005, 4
      %v1008 = vshll.u32 %v887, 16
      %v1010 = vrot.slane %v1008, 5
      %v1011 = vor.u32 %v1007, %v1010
      %v1012 = vrot.slane %v1011, 4
      %v1014 = vshll.u32 %v888, 16
      %v1016 = vrot.slane %v1014, 5
      %v1017 = vsel %vm931, %v1012, %v1016
      %v1018 = vshrl.u32 %v888, 16
      %v1020 = vrot.slane %v1018, 4
      %v1021 = vor.u32 %v1020, %v1016
      %v1022 = vrot.slane %v1021, 4
      %v1024 = vshll.u32 %v916, 16
      %v1026 = vrot.slane %v1024, 5
      %v1027 = vsel %vm931, %v1022, %v1026
      %v1029 = vshrl.u32 %v889, 16
      %v1031 = vrot.slane %v1029, 4
      %v1032 = vshll.u32 %v889, 16
      %v1034 = vrot.slane %v1032, 5
      %v1035 = vor.u32 %v1031, %v1034
      %v1036 = vrot.slane %v1035, 4
      %v1038 = vshll.u32 %v890, 16
      %v1040 = vrot.slane %v1038, 5
      %v1041 = vsel %vm931, %v1036, %v1040
      %v1042 = vshrl.u32 %v890, 16
      %v1044 = vrot.slane %v1042, 4
      %v1045 = vor.u32 %v1044, %v1040
      %v1046 = vrot.slane %v1045, 4
      %v1048 = vshll.u32 %v917, 16
      %v1050 = vrot.slane %v1048, 5
      %v1051 = vsel %vm931, %v1046, %v1050
      %v1053 = vshrl.u32 %v891, 16
      %v1055 = vrot.slane %v1053, 4
      %v1056 = vshll.u32 %v891, 16
      %v1058 = vrot.slane %v1056, 5
      %v1059 = vor.u32 %v1055, %v1058
      %v1060 = vrot.slane %v1059, 4
      %v1062 = vshll.u32 %v892, 16
      %v1064 = vrot.slane %v1062, 5
      %v1065 = vsel %vm931, %v1060, %v1064
      %v1066 = vshrl.u32 %v892, 16
      %v1068 = vrot.slane %v1066, 4
      %v1069 = vor.u32 %v1068, %v1064
      %v1070 = vrot.slane %v1069, 4
      %v1072 = vshll.u32 %v918, 16
      %v1074 = vrot.slane %v1072, 5
      %v1075 = vsel %vm931, %v1070, %v1074
      %v1077 = vshrl.u32 %v893, 16
      %v1079 = vrot.slane %v1077, 4
      %v1080 = vshll.u32 %v893, 16
      %v1082 = vrot.slane %v1080, 5
      %v1083 = vor.u32 %v1079, %v1082
      %v1084 = vrot.slane %v1083, 4
      %v1086 = vshll.u32 %v894, 16
      %v1088 = vrot.slane %v1086, 5
      %v1089 = vsel %vm931, %v1084, %v1088
      %v1090 = vshrl.u32 %v894, 16
      %v1092 = vrot.slane %v1090, 4
      %v1093 = vor.u32 %v1092, %v1088
      %v1094 = vrot.slane %v1093, 4
      %v1096 = vshll.u32 %v919, 16
      %v1098 = vrot.slane %v1096, 5
      %v1099 = vsel %vm931, %v1094, %v1098
      %v1101 = vshrl.u32 %v895, 16
      %v1103 = vrot.slane %v1101, 4
      %v1104 = vshll.u32 %v895, 16
      %v1106 = vrot.slane %v1104, 5
      %v1107 = vor.u32 %v1103, %v1106
      %v1108 = vrot.slane %v1107, 4
      %v1110 = vshll.u32 %v896, 16
      %v1112 = vrot.slane %v1110, 5
      %v1113 = vsel %vm931, %v1108, %v1112
      %v1114 = vshrl.u32 %v896, 16
      %v1116 = vrot.slane %v1114, 4
      %v1117 = vor.u32 %v1116, %v1112
      %v1118 = vrot.slane %v1117, 4
      %v1120 = vshll.u32 %v920, 16
      %v1122 = vrot.slane %v1120, 5
      %v1123 = vsel %vm931, %v1118, %v1122
      %v1125 = vshrl.u32 %v897, 16
      %v1127 = vrot.slane %v1125, 4
      %v1128 = vshll.u32 %v897, 16
      %v1130 = vrot.slane %v1128, 5
      %v1131 = vor.u32 %v1127, %v1130
      %v1132 = vrot.slane %v1131, 4
      %v1134 = vshll.u32 %v898, 16
      %v1136 = vrot.slane %v1134, 5
      %v1137 = vsel %vm931, %v1132, %v1136
      %v1138 = vshrl.u32 %v898, 16
      %v1140 = vrot.slane %v1138, 4
      %v1141 = vor.u32 %v1140, %v1136
      %v1142 = vrot.slane %v1141, 4
      %v1144 = vshll.u32 %v921, 16
      %v1146 = vrot.slane %v1144, 5
      %v1147 = vsel %vm931, %v1142, %v1146
      %v1149 = vshrl.u32 %v899, 16
      %v1151 = vrot.slane %v1149, 4
      %v1152 = vshll.u32 %v899, 16
      %v1154 = vrot.slane %v1152, 5
      %v1155 = vor.u32 %v1151, %v1154
      %v1156 = vrot.slane %v1155, 4
      %v1158 = vshll.u32 %v900, 16
      %v1160 = vrot.slane %v1158, 5
      %v1161 = vsel %vm931, %v1156, %v1160
      %v1162 = vshrl.u32 %v900, 16
      %v1164 = vrot.slane %v1162, 4
      %v1165 = vor.u32 %v1164, %v1160
      %v1166 = vrot.slane %v1165, 4
      %v1168 = vshll.u32 %v922, 16
      %v1170 = vrot.slane %v1168, 5
      %v1171 = vsel %vm931, %v1166, %v1170
      %v1173 = vshrl.u32 %v901, 16
      %v1175 = vrot.slane %v1173, 4
      %v1176 = vshll.u32 %v901, 16
      %v1178 = vrot.slane %v1176, 5
      %v1179 = vor.u32 %v1175, %v1178
      %v1180 = vrot.slane %v1179, 4
      %v1182 = vshll.u32 %v902, 16
      %v1184 = vrot.slane %v1182, 5
      %v1185 = vsel %vm931, %v1180, %v1184
      %v1186 = vshrl.u32 %v902, 16
      %v1188 = vrot.slane %v1186, 4
      %v1189 = vor.u32 %v1188, %v1184
      %v1190 = vrot.slane %v1189, 4
      %v1192 = vshll.u32 %v923, 16
      %v1194 = vrot.slane %v1192, 5
      %v1195 = vsel %vm931, %v1190, %v1194
      %v1197 = vshrl.u32 %v903, 16
      %v1199 = vrot.slane %v1197, 4
      %v1200 = vshll.u32 %v903, 16
      %v1202 = vrot.slane %v1200, 5
      %v1203 = vor.u32 %v1199, %v1202
      %v1204 = vrot.slane %v1203, 4
      %v1206 = vshll.u32 %v904, 16
      %v1208 = vrot.slane %v1206, 5
      %v1209 = vsel %vm931, %v1204, %v1208
      %v1210 = vshrl.u32 %v904, 16
      %v1212 = vrot.slane %v1210, 4
      %v1213 = vor.u32 %v1212, %v1208
      %v1214 = vrot.slane %v1213, 4
      %v1216 = vshll.u32 %v924, 16
      %v1218 = vrot.slane %v1216, 5
      %v1219 = vsel %vm931, %v1214, %v1218
      %v1221 = vshrl.u32 %v905, 16
      %v1223 = vrot.slane %v1221, 4
      %v1224 = vshll.u32 %v905, 16
      %v1226 = vrot.slane %v1224, 5
      %v1227 = vor.u32 %v1223, %v1226
      %v1228 = vrot.slane %v1227, 4
      %v1230 = vshll.u32 %v906, 16
      %v1232 = vrot.slane %v1230, 5
      %v1233 = vsel %vm931, %v1228, %v1232
      %v1234 = vshrl.u32 %v906, 16
      %v1236 = vrot.slane %v1234, 4
      %v1237 = vor.u32 %v1236, %v1232
      %v1238 = vrot.slane %v1237, 4
      %v1240 = vshll.u32 %v925, 16
      %v1242 = vrot.slane %v1240, 5
      %v1243 = vsel %vm931, %v1238, %v1242
      %v1245 = vshrl.u32 %v907, 16
      %v1247 = vrot.slane %v1245, 4
      %v1248 = vshll.u32 %v907, 16
      %v1250 = vrot.slane %v1248, 5
      %v1251 = vor.u32 %v1247, %v1250
      %v1252 = vrot.slane %v1251, 4
      %v1254 = vshll.u32 %v908, 16
      %v1256 = vrot.slane %v1254, 5
      %v1257 = vsel %vm931, %v1252, %v1256
      %v1258 = vshrl.u32 %v908, 16
      %v1260 = vrot.slane %v1258, 4
      %v1261 = vor.u32 %v1260, %v1256
      %v1262 = vrot.slane %v1261, 4
      %v1264 = vshll.u32 %v926, 16
      %v1266 = vrot.slane %v1264, 5
      %v1267 = vsel %vm931, %v1262, %v1266
      %v1269 = vshrl.u32 %v909, 16
      %v1271 = vrot.slane %v1269, 4
      %v1272 = vshll.u32 %v909, 16
      %v1274 = vrot.slane %v1272, 5
      %v1275 = vor.u32 %v1271, %v1274
      %v1276 = vrot.slane %v1275, 4
      %v1278 = vshll.u32 %v910, 16
      %v1280 = vrot.slane %v1278, 5
      %v1281 = vsel %vm931, %v1276, %v1280
      %v1282 = vshrl.u32 %v910, 16
      %v1284 = vrot.slane %v1282, 4
      %v1285 = vor.u32 %v1284, %v1280
      %v1286 = vrot.slane %v1285, 4
      %v1288 = vshll.u32 %v927, 16
      %v1290 = vrot.slane %v1288, 5
      %v1291 = vsel %vm931, %v1286, %v1290
      %v1293 = vshrl.u32 %v911, 16
      %v1295 = vrot.slane %v1293, 4
      %v1296 = vshll.u32 %v911, 16
      %v1298 = vrot.slane %v1296, 5
      %v1299 = vor.u32 %v1295, %v1298
      %v1300 = vrot.slane %v1299, 4
      %v1302 = vshll.u32 %v912, 16
      %v1304 = vrot.slane %v1302, 5
      %v1305 = vsel %vm931, %v1300, %v1304
      %v1306 = vshrl.u32 %v912, 16
      %v1308 = vrot.slane %v1306, 4
      %v1309 = vor.u32 %v1308, %v1304
      %v1310 = vrot.slane %v1309, 4
      %v1312 = vshll.u32 %v928, 16
      %v1314 = vrot.slane %v1312, 5
      %v1315 = vsel %vm931, %v1310, %v1314
      %v1316 = vld [vmem:[#allocation2] sm:$0xe]
      %v1317 = vld [vmem:[#allocation2 + $0xc] sm:$0xe]
      %v1318 = vld [vmem:[#allocation2 + $0x18] sm:$0xe]
      %v1319 = vld [vmem:[#allocation2 + $0x24] sm:$0xe]
      %v1320 = vld [vmem:[#allocation2 + $0x30] sm:$0xe]
      %v1321 = vld [vmem:[#allocation2 + $0x3c] sm:$0xe]
      %v1322 = vld [vmem:[#allocation2 + $0x48] sm:$0xe]
      %v1323 = vld [vmem:[#allocation2 + $0x54] sm:$0xe]
      %v1324 = vld [vmem:[#allocation2 + $0x60] sm:$0xe]
      %v1325 = vld [vmem:[#allocation2 + $0x6c] sm:$0xe]
      %v1326 = vld [vmem:[#allocation2 + $0x78] sm:$0xe]
      %v1327 = vld [vmem:[#allocation2 + $0x84] sm:$0xe]
      %v1328 = vld [vmem:[#allocation2 + $0x90] sm:$0xe]
      %v1329 = vld [vmem:[#allocation2 + $0x9c] sm:$0xe]
      %v1330 = vld [vmem:[#allocation2 + $0xa8] sm:$0xe]
      %v1331 = vld [vmem:[#allocation2 + $0xb4] sm:$0xe]
      %vm1380 = vcmask 1042432
      %vm1381 = vcmask 1046532
      %vm1382 = vmor %vm1380, %vm1381
      %v1383 = vrot.slane %v1316, 5
      %v1384 = vrot.slane %v1383, 4
      %v1385 = vrot.slane %v882, 5
      %v1386 = vsel %vm1382, %v1384, %v1385
      %v1387 = vrot.slane %v1385, 4
      %v1388 = vrot.slane %v913, 5
      %v1389 = vsel %vm1382, %v1387, %v1388
      %v1390 = vrot.slane %v1317, 5
      %v1391 = vrot.slane %v1390, 4
      %v1392 = vrot.slane %v884, 5
      %v1393 = vsel %vm1382, %v1391, %v1392
      %v1394 = vrot.slane %v1392, 4
      %v1395 = vrot.slane %v914, 5
      %v1396 = vsel %vm1382, %v1394, %v1395
      %v1397 = vrot.slane %v1318, 5
      %v1398 = vrot.slane %v1397, 4
      %v1399 = vrot.slane %v886, 5
      %v1400 = vsel %vm1382, %v1398, %v1399
      %v1401 = vrot.slane %v1399, 4
      %v1402 = vrot.slane %v915, 5
      %v1403 = vsel %vm1382, %v1401, %v1402
      %v1404 = vrot.slane %v1319, 5
      %v1405 = vrot.slane %v1404, 4
      %v1406 = vrot.slane %v888, 5
      %v1407 = vsel %vm1382, %v1405, %v1406
      %v1408 = vrot.slane %v1406, 4
      %v1409 = vrot.slane %v916, 5
      %v1410 = vsel %vm1382, %v1408, %v1409
      %v1411 = vrot.slane %v1320, 5
      %v1412 = vrot.slane %v1411, 4
      %v1413 = vrot.slane %v890, 5
      %v1414 = vsel %vm1382, %v1412, %v1413
      %v1415 = vrot.slane %v1413, 4
      %v1416 = vrot.slane %v917, 5
      %v1417 = vsel %vm1382, %v1415, %v1416
      %v1418 = vrot.slane %v1321, 5
      %v1419 = vrot.slane %v1418, 4
      %v1420 = vrot.slane %v892, 5
      %v1421 = vsel %vm1382, %v1419, %v1420
      %v1422 = vrot.slane %v1420, 4
      %v1423 = vrot.slane %v918, 5
      %v1424 = vsel %vm1382, %v1422, %v1423
      %v1425 = vrot.slane %v1322, 5
      %v1426 = vrot.slane %v1425, 4
      %v1427 = vrot.slane %v894, 5
      %v1428 = vsel %vm1382, %v1426, %v1427
      %v1429 = vrot.slane %v1427, 4
      %v1430 = vrot.slane %v919, 5
      %v1431 = vsel %vm1382, %v1429, %v1430
      %v1432 = vrot.slane %v1323, 5
      %v1433 = vrot.slane %v1432, 4
      %v1434 = vrot.slane %v896, 5
      %v1435 = vsel %vm1382, %v1433, %v1434
      %v1436 = vrot.slane %v1434, 4
      %v1437 = vrot.slane %v920, 5
      %v1438 = vsel %vm1382, %v1436, %v1437
      %v1439 = vrot.slane %v1324, 5
      %v1440 = vrot.slane %v1439, 4
      %v1441 = vrot.slane %v898, 5
      %v1442 = vsel %vm1382, %v1440, %v1441
      %v1443 = vrot.slane %v1441, 4
      %v1444 = vrot.slane %v921, 5
      %v1445 = vsel %vm1382, %v1443, %v1444
      %v1446 = vrot.slane %v1325, 5
      %v1447 = vrot.slane %v1446, 4
      %v1448 = vrot.slane %v900, 5
      %v1449 = vsel %vm1382, %v1447, %v1448
      %v1450 = vrot.slane %v1448, 4
      %v1451 = vrot.slane %v922, 5
      %v1452 = vsel %vm1382, %v1450, %v1451
      %v1453 = vrot.slane %v1326, 5
      %v1454 = vrot.slane %v1453, 4
      %v1455 = vrot.slane %v902, 5
      %v1456 = vsel %vm1382, %v1454, %v1455
      %v1457 = vrot.slane %v1455, 4
      %v1458 = vrot.slane %v923, 5
      %v1459 = vsel %vm1382, %v1457, %v1458
      %v1460 = vrot.slane %v1327, 5
      %v1461 = vrot.slane %v1460, 4
      %v1462 = vrot.slane %v904, 5
      %v1463 = vsel %vm1382, %v1461, %v1462
      %v1464 = vrot.slane %v1462, 4
      %v1465 = vrot.slane %v924, 5
      %v1466 = vsel %vm1382, %v1464, %v1465
      %v1467 = vrot.slane %v1328, 5
      %v1468 = vrot.slane %v1467, 4
      %v1469 = vrot.slane %v906, 5
      %v1470 = vsel %vm1382, %v1468, %v1469
      %v1471 = vrot.slane %v1469, 4
      %v1472 = vrot.slane %v925, 5
      %v1473 = vsel %vm1382, %v1471, %v1472
      %v1474 = vrot.slane %v1329, 5
      %v1475 = vrot.slane %v1474, 4
      %v1476 = vrot.slane %v908, 5
      %v1477 = vsel %vm1382, %v1475, %v1476
      %v1478 = vrot.slane %v1476, 4
      %v1479 = vrot.slane %v926, 5
      %v1480 = vsel %vm1382, %v1478, %v1479
      %v1481 = vrot.slane %v1330, 5
      %v1482 = vrot.slane %v1481, 4
      %v1483 = vrot.slane %v910, 5
      %v1484 = vsel %vm1382, %v1482, %v1483
      %v1485 = vrot.slane %v1483, 4
      %v1486 = vrot.slane %v927, 5
      %v1487 = vsel %vm1382, %v1485, %v1486
      %v1488 = vrot.slane %v1331, 5
      %v1489 = vrot.slane %v1488, 4
      %v1490 = vrot.slane %v912, 5
      %v1491 = vsel %vm1382, %v1489, %v1490
      %v1492 = vrot.slane %v1490, 4
      %v1493 = vrot.slane %v928, 5
      %v1494 = vsel %vm1382, %v1492, %v1493
      %v1495 = vld [vmem:[%s690] sm:$0xf]
      %v1496 = vld [vmem:[%s690 + $0x4] sm:$0xf]
      %v1497 = vld [vmem:[%s690 + $0xc] sm:$0xf]
      %v1498 = vld [vmem:[%s690 + $0x10] sm:$0xf]
      %v1499 = vld [vmem:[%s690 + $0x18] sm:$0xf]
      %v1500 = vld [vmem:[%s690 + $0x1c] sm:$0xf]
      %v1501 = vld [vmem:[%s690 + $0x24] sm:$0xf]
      %v1502 = vld [vmem:[%s690 + $0x28] sm:$0xf]
      %v1503 = vld [vmem:[%s690 + $0x30] sm:$0xf]
      %v1504 = vld [vmem:[%s690 + $0x34] sm:$0xf]
      %v1505 = vld [vmem:[%s690 + $0x3c] sm:$0xf]
      %v1506 = vld [vmem:[%s690 + $0x40] sm:$0xf]
      %v1507 = vld [vmem:[%s690 + $0x48] sm:$0xf]
      %v1508 = vld [vmem:[%s690 + $0x4c] sm:$0xf]
      %v1509 = vld [vmem:[%s690 + $0x54] sm:$0xf]
      %v1510 = vld [vmem:[%s690 + $0x58] sm:$0xf]
      %v1511 = vld [vmem:[%s690 + $0x60] sm:$0xf]
      %v1512 = vld [vmem:[%s690 + $0x64] sm:$0xf]
      %v1513 = vld [vmem:[%s690 + $0x6c] sm:$0xf]
      %v1514 = vld [vmem:[%s690 + $0x70] sm:$0xf]
      %v1515 = vld [vmem:[%s690 + $0x78] sm:$0xf]
      %v1516 = vld [vmem:[%s690 + $0x7c] sm:$0xf]
      %v1517 = vld [vmem:[%s690 + $0x84] sm:$0xf]
      %v1518 = vld [vmem:[%s690 + $0x88] sm:$0xf]
      %v1519 = vld [vmem:[%s690 + $0x90] sm:$0xf]
      %v1520 = vld [vmem:[%s690 + $0x94] sm:$0xf]
      %v1521 = vld [vmem:[%s690 + $0x9c] sm:$0xf]
      %v1522 = vld [vmem:[%s690 + $0xa0] sm:$0xf]
      %v1523 = vld [vmem:[%s690 + $0xa8] sm:$0xf]
      %v1524 = vld [vmem:[%s690 + $0xac] sm:$0xf]
      %v1525 = vld [vmem:[%s690 + $0xb4] sm:$0xf]
      %v1526 = vld [vmem:[%s690 + $0xb8] sm:$0xf]
      %v1527 = vld [vmem:[%s690 + $0x8] sm:$0x1]
      %v1528 = vld [vmem:[%s690 + $0x14] sm:$0x1]
      %v1529 = vld [vmem:[%s690 + $0x20] sm:$0x1]
      %v1530 = vld [vmem:[%s690 + $0x2c] sm:$0x1]
      %v1531 = vld [vmem:[%s690 + $0x38] sm:$0x1]
      %v1532 = vld [vmem:[%s690 + $0x44] sm:$0x1]
      %v1533 = vld [vmem:[%s690 + $0x50] sm:$0x1]
      %v1534 = vld [vmem:[%s690 + $0x5c] sm:$0x1]
      %v1535 = vld [vmem:[%s690 + $0x68] sm:$0x1]
      %v1536 = vld [vmem:[%s690 + $0x74] sm:$0x1]
      %v1537 = vld [vmem:[%s690 + $0x80] sm:$0x1]
      %v1538 = vld [vmem:[%s690 + $0x8c] sm:$0x1]
      %v1539 = vld [vmem:[%s690 + $0x98] sm:$0x1]
      %v1540 = vld [vmem:[%s690 + $0xa4] sm:$0x1]
      %v1541 = vld [vmem:[%s690 + $0xb0] sm:$0x1]
      %v1542 = vld [vmem:[%s690 + $0xbc] sm:$0x1]
      %v1544 = vshrl.u32 %v1495, 16
      %v1546 = vrot.slane %v1544, 4
      %v1547 = vshll.u32 %v1495, 16
      %v1549 = vrot.slane %v1547, 5
      %v1550 = vor.u32 %v1546, %v1549
      %v1551 = vrot.slane %v1550, 4
      %v1553 = vshll.u32 %v1496, 16
      %v1555 = vrot.slane %v1553, 5
      %v1556 = vsel %vm931, %v1551, %v1555
      %v1557 = vshrl.u32 %v1496, 16
      %v1559 = vrot.slane %v1557, 4
      %v1560 = vor.u32 %v1559, %v1555
      %v1561 = vrot.slane %v1560, 4
      %v1563 = vshll.u32 %v1527, 16
      %v1565 = vrot.slane %v1563, 5
      %v1566 = vsel %vm931, %v1561, %v1565
      %v1568 = vshrl.u32 %v1497, 16
      %v1570 = vrot.slane %v1568, 4
      %v1571 = vshll.u32 %v1497, 16
      %v1573 = vrot.slane %v1571, 5
      %v1574 = vor.u32 %v1570, %v1573
      %v1575 = vrot.slane %v1574, 4
      %v1577 = vshll.u32 %v1498, 16
      %v1579 = vrot.slane %v1577, 5
      %v1580 = vsel %vm931, %v1575, %v1579
      %v1581 = vshrl.u32 %v1498, 16
      %v1583 = vrot.slane %v1581, 4
      %v1584 = vor.u32 %v1583, %v1579
      %v1585 = vrot.slane %v1584, 4
      %v1587 = vshll.u32 %v1528, 16
      %v1589 = vrot.slane %v1587, 5
      %v1590 = vsel %vm931, %v1585, %v1589
      %v1592 = vshrl.u32 %v1499, 16
      %v1594 = vrot.slane %v1592, 4
      %v1595 = vshll.u32 %v1499, 16
      %v1597 = vrot.slane %v1595, 5
      %v1598 = vor.u32 %v1594, %v1597
      %v1599 = vrot.slane %v1598, 4
      %v1601 = vshll.u32 %v1500, 16
      %v1603 = vrot.slane %v1601, 5
      %v1604 = vsel %vm931, %v1599, %v1603
      %v1605 = vshrl.u32 %v1500, 16
      %v1607 = vrot.slane %v1605, 4
      %v1608 = vor.u32 %v1607, %v1603
      %v1609 = vrot.slane %v1608, 4
      %v1611 = vshll.u32 %v1529, 16
      %v1613 = vrot.slane %v1611, 5
      %v1614 = vsel %vm931, %v1609, %v1613
      %v1616 = vshrl.u32 %v1501, 16
      %v1618 = vrot.slane %v1616, 4
      %v1619 = vshll.u32 %v1501, 16
      %v1621 = vrot.slane %v1619, 5
      %v1622 = vor.u32 %v1618, %v1621
      %v1623 = vrot.slane %v1622, 4
      %v1625 = vshll.u32 %v1502, 16
      %v1627 = vrot.slane %v1625, 5
      %v1628 = vsel %vm931, %v1623, %v1627
      %v1629 = vshrl.u32 %v1502, 16
      %v1631 = vrot.slane %v1629, 4
      %v1632 = vor.u32 %v1631, %v1627
      %v1633 = vrot.slane %v1632, 4
      %v1635 = vshll.u32 %v1530, 16
      %v1637 = vrot.slane %v1635, 5
      %v1638 = vsel %vm931, %v1633, %v1637
      %v1640 = vshrl.u32 %v1503, 16
      %v1642 = vrot.slane %v1640, 4
      %v1643 = vshll.u32 %v1503, 16
      %v1645 = vrot.slane %v1643, 5
      %v1646 = vor.u32 %v1642, %v1645
      %v1647 = vrot.slane %v1646, 4
      %v1649 = vshll.u32 %v1504, 16
      %v1651 = vrot.slane %v1649, 5
      %v1652 = vsel %vm931, %v1647, %v1651
      %v1653 = vshrl.u32 %v1504, 16
      %v1655 = vrot.slane %v1653, 4
      %v1656 = vor.u32 %v1655, %v1651
      %v1657 = vrot.slane %v1656, 4
      %v1659 = vshll.u32 %v1531, 16
      %v1661 = vrot.slane %v1659, 5
      %v1662 = vsel %vm931, %v1657, %v1661
      %v1664 = vshrl.u32 %v1505, 16
      %v1666 = vrot.slane %v1664, 4
      %v1667 = vshll.u32 %v1505, 16
      %v1669 = vrot.slane %v1667, 5
      %v1670 = vor.u32 %v1666, %v1669
      %v1671 = vrot.slane %v1670, 4
      %v1673 = vshll.u32 %v1506, 16
      %v1675 = vrot.slane %v1673, 5
      %v1676 = vsel %vm931, %v1671, %v1675
      %v1677 = vshrl.u32 %v1506, 16
      %v1679 = vrot.slane %v1677, 4
      %v1680 = vor.u32 %v1679, %v1675
      %v1681 = vrot.slane %v1680, 4
      %v1683 = vshll.u32 %v1532, 16
      %v1685 = vrot.slane %v1683, 5
      %v1686 = vsel %vm931, %v1681, %v1685
      %v1688 = vshrl.u32 %v1507, 16
      %v1690 = vrot.slane %v1688, 4
      %v1691 = vshll.u32 %v1507, 16
      %v1693 = vrot.slane %v1691, 5
      %v1694 = vor.u32 %v1690, %v1693
      %v1695 = vrot.slane %v1694, 4
      %v1697 = vshll.u32 %v1508, 16
      %v1699 = vrot.slane %v1697, 5
      %v1700 = vsel %vm931, %v1695, %v1699
      %v1701 = vshrl.u32 %v1508, 16
      %v1703 = vrot.slane %v1701, 4
      %v1704 = vor.u32 %v1703, %v1699
      %v1705 = vrot.slane %v1704, 4
      %v1707 = vshll.u32 %v1533, 16
      %v1709 = vrot.slane %v1707, 5
      %v1710 = vsel %vm931, %v1705, %v1709
      %v1712 = vshrl.u32 %v1509, 16
      %v1714 = vrot.slane %v1712, 4
      %v1715 = vshll.u32 %v1509, 16
      %v1717 = vrot.slane %v1715, 5
      %v1718 = vor.u32 %v1714, %v1717
      %v1719 = vrot.slane %v1718, 4
      %v1721 = vshll.u32 %v1510, 16
      %v1723 = vrot.slane %v1721, 5
      %v1724 = vsel %vm931, %v1719, %v1723
      %v1725 = vshrl.u32 %v1510, 16
      %v1727 = vrot.slane %v1725, 4
      %v1728 = vor.u32 %v1727, %v1723
      %v1729 = vrot.slane %v1728, 4
      %v1731 = vshll.u32 %v1534, 16
      %v1733 = vrot.slane %v1731, 5
      %v1734 = vsel %vm931, %v1729, %v1733
      %v1736 = vshrl.u32 %v1511, 16
      %v1738 = vrot.slane %v1736, 4
      %v1739 = vshll.u32 %v1511, 16
      %v1741 = vrot.slane %v1739, 5
      %v1742 = vor.u32 %v1738, %v1741
      %v1743 = vrot.slane %v1742, 4
      %v1745 = vshll.u32 %v1512, 16
      %v1747 = vrot.slane %v1745, 5
      %v1748 = vsel %vm931, %v1743, %v1747
      %v1749 = vshrl.u32 %v1512, 16
      %v1751 = vrot.slane %v1749, 4
      %v1752 = vor.u32 %v1751, %v1747
      %v1753 = vrot.slane %v1752, 4
      %v1755 = vshll.u32 %v1535, 16
      %v1757 = vrot.slane %v1755, 5
      %v1758 = vsel %vm931, %v1753, %v1757
      %v1760 = vshrl.u32 %v1513, 16
      %v1762 = vrot.slane %v1760, 4
      %v1763 = vshll.u32 %v1513, 16
      %v1765 = vrot.slane %v1763, 5
      %v1766 = vor.u32 %v1762, %v1765
      %v1767 = vrot.slane %v1766, 4
      %v1769 = vshll.u32 %v1514, 16
      %v1771 = vrot.slane %v1769, 5
      %v1772 = vsel %vm931, %v1767, %v1771
      %v1773 = vshrl.u32 %v1514, 16
      %v1775 = vrot.slane %v1773, 4
      %v1776 = vor.u32 %v1775, %v1771
      %v1777 = vrot.slane %v1776, 4
      %v1779 = vshll.u32 %v1536, 16
      %v1781 = vrot.slane %v1779, 5
      %v1782 = vsel %vm931, %v1777, %v1781
      %v1784 = vshrl.u32 %v1515, 16
      %v1786 = vrot.slane %v1784, 4
      %v1787 = vshll.u32 %v1515, 16
      %v1789 = vrot.slane %v1787, 5
      %v1790 = vor.u32 %v1786, %v1789
      %v1791 = vrot.slane %v1790, 4
      %v1793 = vshll.u32 %v1516, 16
      %v1795 = vrot.slane %v1793, 5
      %v1796 = vsel %vm931, %v1791, %v1795
      %v1797 = vshrl.u32 %v1516, 16
      %v1799 = vrot.slane %v1797, 4
      %v1800 = vor.u32 %v1799, %v1795
      %v1801 = vrot.slane %v1800, 4
      %v1803 = vshll.u32 %v1537, 16
      %v1805 = vrot.slane %v1803, 5
      %v1806 = vsel %vm931, %v1801, %v1805
      %v1808 = vshrl.u32 %v1517, 16
      %v1810 = vrot.slane %v1808, 4
      %v1811 = vshll.u32 %v1517, 16
      %v1813 = vrot.slane %v1811, 5
      %v1814 = vor.u32 %v1810, %v1813
      %v1815 = vrot.slane %v1814, 4
      %v1817 = vshll.u32 %v1518, 16
      %v1819 = vrot.slane %v1817, 5
      %v1820 = vsel %vm931, %v1815, %v1819
      %v1821 = vshrl.u32 %v1518, 16
      %v1823 = vrot.slane %v1821, 4
      %v1824 = vor.u32 %v1823, %v1819
      %v1825 = vrot.slane %v1824, 4
      %v1827 = vshll.u32 %v1538, 16
      %v1829 = vrot.slane %v1827, 5
      %v1830 = vsel %vm931, %v1825, %v1829
      %v1832 = vshrl.u32 %v1519, 16
      %v1834 = vrot.slane %v1832, 4
      %v1835 = vshll.u32 %v1519, 16
      %v1837 = vrot.slane %v1835, 5
      %v1838 = vor.u32 %v1834, %v1837
      %v1839 = vrot.slane %v1838, 4
      %v1841 = vshll.u32 %v1520, 16
      %v1843 = vrot.slane %v1841, 5
      %v1844 = vsel %vm931, %v1839, %v1843
      %v1845 = vshrl.u32 %v1520, 16
      %v1847 = vrot.slane %v1845, 4
      %v1848 = vor.u32 %v1847, %v1843
      %v1849 = vrot.slane %v1848, 4
      %v1851 = vshll.u32 %v1539, 16
      %v1853 = vrot.slane %v1851, 5
      %v1854 = vsel %vm931, %v1849, %v1853
      %v1856 = vshrl.u32 %v1521, 16
      %v1858 = vrot.slane %v1856, 4
      %v1859 = vshll.u32 %v1521, 16
      %v1861 = vrot.slane %v1859, 5
      %v1862 = vor.u32 %v1858, %v1861
      %v1863 = vrot.slane %v1862, 4
      %v1865 = vshll.u32 %v1522, 16
      %v1867 = vrot.slane %v1865, 5
      %v1868 = vsel %vm931, %v1863, %v1867
      %v1869 = vshrl.u32 %v1522, 16
      %v1871 = vrot.slane %v1869, 4
      %v1872 = vor.u32 %v1871, %v1867
      %v1873 = vrot.slane %v1872, 4
      %v1875 = vshll.u32 %v1540, 16
      %v1877 = vrot.slane %v1875, 5
      %v1878 = vsel %vm931, %v1873, %v1877
      %v1880 = vshrl.u32 %v1523, 16
      %v1882 = vrot.slane %v1880, 4
      %v1883 = vshll.u32 %v1523, 16
      %v1885 = vrot.slane %v1883, 5
      %v1886 = vor.u32 %v1882, %v1885
      %v1887 = vrot.slane %v1886, 4
      %v1889 = vshll.u32 %v1524, 16
      %v1891 = vrot.slane %v1889, 5
      %v1892 = vsel %vm931, %v1887, %v1891
      %v1893 = vshrl.u32 %v1524, 16
      %v1895 = vrot.slane %v1893, 4
      %v1896 = vor.u32 %v1895, %v1891
      %v1897 = vrot.slane %v1896, 4
      %v1899 = vshll.u32 %v1541, 16
      %v1901 = vrot.slane %v1899, 5
      %v1902 = vsel %vm931, %v1897, %v1901
      %v1904 = vshrl.u32 %v1525, 16
      %v1906 = vrot.slane %v1904, 4
      %v1907 = vshll.u32 %v1525, 16
      %v1909 = vrot.slane %v1907, 5
      %v1910 = vor.u32 %v1906, %v1909
      %v1911 = vrot.slane %v1910, 4
      %v1913 = vshll.u32 %v1526, 16
      %v1915 = vrot.slane %v1913, 5
      %v1916 = vsel %vm931, %v1911, %v1915
      %v1917 = vshrl.u32 %v1526, 16
      %v1919 = vrot.slane %v1917, 4
      %v1920 = vor.u32 %v1919, %v1915
      %v1921 = vrot.slane %v1920, 4
      %v1923 = vshll.u32 %v1542, 16
      %v1925 = vrot.slane %v1923, 5
      %v1926 = vsel %vm931, %v1921, %v1925
      %v1927 = vld [vmem:[%s690] sm:$0xe]
      %v1928 = vld [vmem:[%s690 + $0xc] sm:$0xe]
      %v1929 = vld [vmem:[%s690 + $0x18] sm:$0xe]
      %v1930 = vld [vmem:[%s690 + $0x24] sm:$0xe]
      %v1931 = vld [vmem:[%s690 + $0x30] sm:$0xe]
      %v1932 = vld [vmem:[%s690 + $0x3c] sm:$0xe]
      %v1933 = vld [vmem:[%s690 + $0x48] sm:$0xe]
      %v1934 = vld [vmem:[%s690 + $0x54] sm:$0xe]
      %v1935 = vld [vmem:[%s690 + $0x60] sm:$0xe]
      %v1936 = vld [vmem:[%s690 + $0x6c] sm:$0xe]
      %v1937 = vld [vmem:[%s690 + $0x78] sm:$0xe]
      %v1938 = vld [vmem:[%s690 + $0x84] sm:$0xe]
      %v1939 = vld [vmem:[%s690 + $0x90] sm:$0xe]
      %v1940 = vld [vmem:[%s690 + $0x9c] sm:$0xe]
      %v1941 = vld [vmem:[%s690 + $0xa8] sm:$0xe]
      %v1942 = vld [vmem:[%s690 + $0xb4] sm:$0xe]
      %v1991 = vrot.slane %v1927, 5
      %v1992 = vrot.slane %v1991, 4
      %v1993 = vrot.slane %v1496, 5
      %v1994 = vsel %vm1382, %v1992, %v1993
      %v1995 = vrot.slane %v1993, 4
      %v1996 = vrot.slane %v1527, 5
      %v1997 = vsel %vm1382, %v1995, %v1996
      %v1998 = vrot.slane %v1928, 5
      %v1999 = vrot.slane %v1998, 4
      %v2000 = vrot.slane %v1498, 5
      %v2001 = vsel %vm1382, %v1999, %v2000
      %v2002 = vrot.slane %v2000, 4
      %v2003 = vrot.slane %v1528, 5
      %v2004 = vsel %vm1382, %v2002, %v2003
      %v2005 = vrot.slane %v1929, 5
      %v2006 = vrot.slane %v2005, 4
      %v2007 = vrot.slane %v1500, 5
      %v2008 = vsel %vm1382, %v2006, %v2007
      %v2009 = vrot.slane %v2007, 4
      %v2010 = vrot.slane %v1529, 5
      %v2011 = vsel %vm1382, %v2009, %v2010
      %v2012 = vrot.slane %v1930, 5
      %v2013 = vrot.slane %v2012, 4
      %v2014 = vrot.slane %v1502, 5
      %v2015 = vsel %vm1382, %v2013, %v2014
      %v2016 = vrot.slane %v2014, 4
      %v2017 = vrot.slane %v1530, 5
      %v2018 = vsel %vm1382, %v2016, %v2017
      %v2019 = vrot.slane %v1931, 5
      %v2020 = vrot.slane %v2019, 4
      %v2021 = vrot.slane %v1504, 5
      %v2022 = vsel %vm1382, %v2020, %v2021
      %v2023 = vrot.slane %v2021, 4
      %v2024 = vrot.slane %v1531, 5
      %v2025 = vsel %vm1382, %v2023, %v2024
      %v2026 = vrot.slane %v1932, 5
      %v2027 = vrot.slane %v2026, 4
      %v2028 = vrot.slane %v1506, 5
      %v2029 = vsel %vm1382, %v2027, %v2028
      %v2030 = vrot.slane %v2028, 4
      %v2031 = vrot.slane %v1532, 5
      %v2032 = vsel %vm1382, %v2030, %v2031
      %v2033 = vrot.slane %v1933, 5
      %v2034 = vrot.slane %v2033, 4
      %v2035 = vrot.slane %v1508, 5
      %v2036 = vsel %vm1382, %v2034, %v2035
      %v2037 = vrot.slane %v2035, 4
      %v2038 = vrot.slane %v1533, 5
      %v2039 = vsel %vm1382, %v2037, %v2038
      %v2040 = vrot.slane %v1934, 5
      %v2041 = vrot.slane %v2040, 4
      %v2042 = vrot.slane %v1510, 5
      %v2043 = vsel %vm1382, %v2041, %v2042
      %v2044 = vrot.slane %v2042, 4
      %v2045 = vrot.slane %v1534, 5
      %v2046 = vsel %vm1382, %v2044, %v2045
      %v2047 = vrot.slane %v1935, 5
      %v2048 = vrot.slane %v2047, 4
      %v2049 = vrot.slane %v1512, 5
      %v2050 = vsel %vm1382, %v2048, %v2049
      %v2051 = vrot.slane %v2049, 4
      %v2052 = vrot.slane %v1535, 5
      %v2053 = vsel %vm1382, %v2051, %v2052
      %v2054 = vrot.slane %v1936, 5
      %v2055 = vrot.slane %v2054, 4
      %v2056 = vrot.slane %v1514, 5
      %v2057 = vsel %vm1382, %v2055, %v2056
      %v2058 = vrot.slane %v2056, 4
      %v2059 = vrot.slane %v1536, 5
      %v2060 = vsel %vm1382, %v2058, %v2059
      %v2061 = vrot.slane %v1937, 5
      %v2062 = vrot.slane %v2061, 4
      %v2063 = vrot.slane %v1516, 5
      %v2064 = vsel %vm1382, %v2062, %v2063
      %v2065 = vrot.slane %v2063, 4
      %v2066 = vrot.slane %v1537, 5
      %v2067 = vsel %vm1382, %v2065, %v2066
      %v2068 = vrot.slane %v1938, 5
      %v2069 = vrot.slane %v2068, 4
      %v2070 = vrot.slane %v1518, 5
      %v2071 = vsel %vm1382, %v2069, %v2070
      %v2072 = vrot.slane %v2070, 4
      %v2073 = vrot.slane %v1538, 5
      %v2074 = vsel %vm1382, %v2072, %v2073
      %v2075 = vrot.slane %v1939, 5
      %v2076 = vrot.slane %v2075, 4
      %v2077 = vrot.slane %v1520, 5
      %v2078 = vsel %vm1382, %v2076, %v2077
      %v2079 = vrot.slane %v2077, 4
      %v2080 = vrot.slane %v1539, 5
      %v2081 = vsel %vm1382, %v2079, %v2080
      %v2082 = vrot.slane %v1940, 5
      %v2083 = vrot.slane %v2082, 4
      %v2084 = vrot.slane %v1522, 5
      %v2085 = vsel %vm1382, %v2083, %v2084
      %v2086 = vrot.slane %v2084, 4
      %v2087 = vrot.slane %v1540, 5
      %v2088 = vsel %vm1382, %v2086, %v2087
      %v2089 = vrot.slane %v1941, 5
      %v2090 = vrot.slane %v2089, 4
      %v2091 = vrot.slane %v1524, 5
      %v2092 = vsel %vm1382, %v2090, %v2091
      %v2093 = vrot.slane %v2091, 4
      %v2094 = vrot.slane %v1541, 5
      %v2095 = vsel %vm1382, %v2093, %v2094
      %v2096 = vrot.slane %v1942, 5
      %v2097 = vrot.slane %v2096, 4
      %v2098 = vrot.slane %v1526, 5
      %v2099 = vsel %vm1382, %v2097, %v2098
      %v2100 = vrot.slane %v2098, 4
      %v2101 = vrot.slane %v1542, 5
      %v2102 = vsel %vm1382, %v2100, %v2101
      %s2103 = scalar_lea.vmem [#allocation2], 24
      %v2104 = vld [vmem:[%s2103] sm:$0xf]
      %v2105 = vld [vmem:[%s2103 + $0x4] sm:$0xf]
      %v2106 = vld [vmem:[%s2103 + $0xc] sm:$0xf]
      %v2107 = vld [vmem:[%s2103 + $0x10] sm:$0xf]
      %v2108 = vld [vmem:[%s2103 + $0x18] sm:$0xf]
      %v2109 = vld [vmem:[%s2103 + $0x1c] sm:$0xf]
      %v2110 = vld [vmem:[%s2103 + $0x24] sm:$0xf]
      %v2111 = vld [vmem:[%s2103 + $0x28] sm:$0xf]
      %v2112 = vld [vmem:[%s2103 + $0x30] sm:$0xf]
      %v2113 = vld [vmem:[%s2103 + $0x34] sm:$0xf]
      %v2114 = vld [vmem:[%s2103 + $0x3c] sm:$0xf]
      %v2115 = vld [vmem:[%s2103 + $0x40] sm:$0xf]
      %v2116 = vld [vmem:[%s2103 + $0x48] sm:$0xf]
      %v2117 = vld [vmem:[%s2103 + $0x4c] sm:$0xf]
      %v2118 = vld [vmem:[%s2103 + $0x54] sm:$0xf]
      %v2119 = vld [vmem:[%s2103 + $0x58] sm:$0xf]
      %v2120 = vld [vmem:[%s2103 + $0x60] sm:$0xf]
      %v2121 = vld [vmem:[%s2103 + $0x64] sm:$0xf]
      %v2122 = vld [vmem:[%s2103 + $0x6c] sm:$0xf]
      %v2123 = vld [vmem:[%s2103 + $0x70] sm:$0xf]
      %v2124 = vld [vmem:[%s2103 + $0x78] sm:$0xf]
      %v2125 = vld [vmem:[%s2103 + $0x7c] sm:$0xf]
      %v2126 = vld [vmem:[%s2103 + $0x84] sm:$0xf]
      %v2127 = vld [vmem:[%s2103 + $0x88] sm:$0xf]
      %v2128 = vld [vmem:[%s2103 + $0x90] sm:$0xf]
      %v2129 = vld [vmem:[%s2103 + $0x94] sm:$0xf]
      %v2130 = vld [vmem:[%s2103 + $0x9c] sm:$0xf]
      %v2131 = vld [vmem:[%s2103 + $0xa0] sm:$0xf]
      %v2132 = vld [vmem:[%s2103 + $0xa8] sm:$0xf]
      %v2133 = vld [vmem:[%s2103 + $0xac] sm:$0xf]
      %v2134 = vld [vmem:[%s2103 + $0xb4] sm:$0xf]
      %v2135 = vld [vmem:[%s2103 + $0xb8] sm:$0xf]
      %v2136 = vld [vmem:[%s2103 + $0x8] sm:$0x1]
      %v2137 = vld [vmem:[%s2103 + $0x14] sm:$0x1]
      %v2138 = vld [vmem:[%s2103 + $0x20] sm:$0x1]
      %v2139 = vld [vmem:[%s2103 + $0x2c] sm:$0x1]
      %v2140 = vld [vmem:[%s2103 + $0x38] sm:$0x1]
      %v2141 = vld [vmem:[%s2103 + $0x44] sm:$0x1]
      %v2142 = vld [vmem:[%s2103 + $0x50] sm:$0x1]
      %v2143 = vld [vmem:[%s2103 + $0x5c] sm:$0x1]
      %v2144 = vld [vmem:[%s2103 + $0x68] sm:$0x1]
      %v2145 = vld [vmem:[%s2103 + $0x74] sm:$0x1]
      %v2146 = vld [vmem:[%s2103 + $0x80] sm:$0x1]
      %v2147 = vld [vmem:[%s2103 + $0x8c] sm:$0x1]
      %v2148 = vld [vmem:[%s2103 + $0x98] sm:$0x1]
      %v2149 = vld [vmem:[%s2103 + $0xa4] sm:$0x1]
      %v2150 = vld [vmem:[%s2103 + $0xb0] sm:$0x1]
      %v2151 = vld [vmem:[%s2103 + $0xbc] sm:$0x1]
      %v2153 = vshrl.u32 %v2104, 16
      %v2155 = vrot.slane %v2153, 4
      %v2156 = vshll.u32 %v2104, 16
      %v2158 = vrot.slane %v2156, 5
      %v2159 = vor.u32 %v2155, %v2158
      %v2160 = vrot.slane %v2159, 4
      %v2162 = vshll.u32 %v2105, 16
      %v2164 = vrot.slane %v2162, 5
      %v2165 = vsel %vm931, %v2160, %v2164
      %v2166 = vshrl.u32 %v2105, 16
      %v2168 = vrot.slane %v2166, 4
      %v2169 = vor.u32 %v2168, %v2164
      %v2170 = vrot.slane %v2169, 4
      %v2172 = vshll.u32 %v2136, 16
      %v2174 = vrot.slane %v2172, 5
      %v2175 = vsel %vm931, %v2170, %v2174
      %v2177 = vshrl.u32 %v2106, 16
      %v2179 = vrot.slane %v2177, 4
      %v2180 = vshll.u32 %v2106, 16
      %v2182 = vrot.slane %v2180, 5
      %v2183 = vor.u32 %v2179, %v2182
      %v2184 = vrot.slane %v2183, 4
      %v2186 = vshll.u32 %v2107, 16
      %v2188 = vrot.slane %v2186, 5
      %v2189 = vsel %vm931, %v2184, %v2188
      %v2190 = vshrl.u32 %v2107, 16
      %v2192 = vrot.slane %v2190, 4
      %v2193 = vor.u32 %v2192, %v2188
      %v2194 = vrot.slane %v2193, 4
      %v2196 = vshll.u32 %v2137, 16
      %v2198 = vrot.slane %v2196, 5
      %v2199 = vsel %vm931, %v2194, %v2198
      %v2201 = vshrl.u32 %v2108, 16
      %v2203 = vrot.slane %v2201, 4
      %v2204 = vshll.u32 %v2108, 16
      %v2206 = vrot.slane %v2204, 5
      %v2207 = vor.u32 %v2203, %v2206
      %v2208 = vrot.slane %v2207, 4
      %v2210 = vshll.u32 %v2109, 16
      %v2212 = vrot.slane %v2210, 5
      %v2213 = vsel %vm931, %v2208, %v2212
      %v2214 = vshrl.u32 %v2109, 16
      %v2216 = vrot.slane %v2214, 4
      %v2217 = vor.u32 %v2216, %v2212
      %v2218 = vrot.slane %v2217, 4
      %v2220 = vshll.u32 %v2138, 16
      %v2222 = vrot.slane %v2220, 5
      %v2223 = vsel %vm931, %v2218, %v2222
      %v2225 = vshrl.u32 %v2110, 16
      %v2227 = vrot.slane %v2225, 4
      %v2228 = vshll.u32 %v2110, 16
      %v2230 = vrot.slane %v2228, 5
      %v2231 = vor.u32 %v2227, %v2230
      %v2232 = vrot.slane %v2231, 4
      %v2234 = vshll.u32 %v2111, 16
      %v2236 = vrot.slane %v2234, 5
      %v2237 = vsel %vm931, %v2232, %v2236
      %v2238 = vshrl.u32 %v2111, 16
      %v2240 = vrot.slane %v2238, 4
      %v2241 = vor.u32 %v2240, %v2236
      %v2242 = vrot.slane %v2241, 4
      %v2244 = vshll.u32 %v2139, 16
      %v2246 = vrot.slane %v2244, 5
      %v2247 = vsel %vm931, %v2242, %v2246
      %v2249 = vshrl.u32 %v2112, 16
      %v2251 = vrot.slane %v2249, 4
      %v2252 = vshll.u32 %v2112, 16
      %v2254 = vrot.slane %v2252, 5
      %v2255 = vor.u32 %v2251, %v2254
      %v2256 = vrot.slane %v2255, 4
      %v2258 = vshll.u32 %v2113, 16
      %v2260 = vrot.slane %v2258, 5
      %v2261 = vsel %vm931, %v2256, %v2260
      %v2262 = vshrl.u32 %v2113, 16
      %v2264 = vrot.slane %v2262, 4
      %v2265 = vor.u32 %v2264, %v2260
      %v2266 = vrot.slane %v2265, 4
      %v2268 = vshll.u32 %v2140, 16
      %v2270 = vrot.slane %v2268, 5
      %v2271 = vsel %vm931, %v2266, %v2270
      %v2273 = vshrl.u32 %v2114, 16
      %v2275 = vrot.slane %v2273, 4
      %v2276 = vshll.u32 %v2114, 16
      %v2278 = vrot.slane %v2276, 5
      %v2279 = vor.u32 %v2275, %v2278
      %v2280 = vrot.slane %v2279, 4
      %v2282 = vshll.u32 %v2115, 16
      %v2284 = vrot.slane %v2282, 5
      %v2285 = vsel %vm931, %v2280, %v2284
      %v2286 = vshrl.u32 %v2115, 16
      %v2288 = vrot.slane %v2286, 4
      %v2289 = vor.u32 %v2288, %v2284
      %v2290 = vrot.slane %v2289, 4
      %v2292 = vshll.u32 %v2141, 16
      %v2294 = vrot.slane %v2292, 5
      %v2295 = vsel %vm931, %v2290, %v2294
      %v2297 = vshrl.u32 %v2116, 16
      %v2299 = vrot.slane %v2297, 4
      %v2300 = vshll.u32 %v2116, 16
      %v2302 = vrot.slane %v2300, 5
      %v2303 = vor.u32 %v2299, %v2302
      %v2304 = vrot.slane %v2303, 4
      %v2306 = vshll.u32 %v2117, 16
      %v2308 = vrot.slane %v2306, 5
      %v2309 = vsel %vm931, %v2304, %v2308
      %v2310 = vshrl.u32 %v2117, 16
      %v2312 = vrot.slane %v2310, 4
      %v2313 = vor.u32 %v2312, %v2308
      %v2314 = vrot.slane %v2313, 4
      %v2316 = vshll.u32 %v2142, 16
      %v2318 = vrot.slane %v2316, 5
      %v2319 = vsel %vm931, %v2314, %v2318
      %v2321 = vshrl.u32 %v2118, 16
      %v2323 = vrot.slane %v2321, 4
      %v2324 = vshll.u32 %v2118, 16
      %v2326 = vrot.slane %v2324, 5
      %v2327 = vor.u32 %v2323, %v2326
      %v2328 = vrot.slane %v2327, 4
      %v2330 = vshll.u32 %v2119, 16
      %v2332 = vrot.slane %v2330, 5
      %v2333 = vsel %vm931, %v2328, %v2332
      %v2334 = vshrl.u32 %v2119, 16
      %v2336 = vrot.slane %v2334, 4
      %v2337 = vor.u32 %v2336, %v2332
      %v2338 = vrot.slane %v2337, 4
      %v2340 = vshll.u32 %v2143, 16
      %v2342 = vrot.slane %v2340, 5
      %v2343 = vsel %vm931, %v2338, %v2342
      %v2345 = vshrl.u32 %v2120, 16
      %v2347 = vrot.slane %v2345, 4
      %v2348 = vshll.u32 %v2120, 16
      %v2350 = vrot.slane %v2348, 5
      %v2351 = vor.u32 %v2347, %v2350
      %v2352 = vrot.slane %v2351, 4
      %v2354 = vshll.u32 %v2121, 16
      %v2356 = vrot.slane %v2354, 5
      %v2357 = vsel %vm931, %v2352, %v2356
      %v2358 = vshrl.u32 %v2121, 16
      %v2360 = vrot.slane %v2358, 4
      %v2361 = vor.u32 %v2360, %v2356
      %v2362 = vrot.slane %v2361, 4
      %v2364 = vshll.u32 %v2144, 16
      %v2366 = vrot.slane %v2364, 5
      %v2367 = vsel %vm931, %v2362, %v2366
      %v2369 = vshrl.u32 %v2122, 16
      %v2371 = vrot.slane %v2369, 4
      %v2372 = vshll.u32 %v2122, 16
      %v2374 = vrot.slane %v2372, 5
      %v2375 = vor.u32 %v2371, %v2374
      %v2376 = vrot.slane %v2375, 4
      %v2378 = vshll.u32 %v2123, 16
      %v2380 = vrot.slane %v2378, 5
      %v2381 = vsel %vm931, %v2376, %v2380
      %v2382 = vshrl.u32 %v2123, 16
      %v2384 = vrot.slane %v2382, 4
      %v2385 = vor.u32 %v2384, %v2380
      %v2386 = vrot.slane %v2385, 4
      %v2388 = vshll.u32 %v2145, 16
      %v2390 = vrot.slane %v2388, 5
      %v2391 = vsel %vm931, %v2386, %v2390
      %v2393 = vshrl.u32 %v2124, 16
      %v2395 = vrot.slane %v2393, 4
      %v2396 = vshll.u32 %v2124, 16
      %v2398 = vrot.slane %v2396, 5
      %v2399 = vor.u32 %v2395, %v2398
      %v2400 = vrot.slane %v2399, 4
      %v2402 = vshll.u32 %v2125, 16
      %v2404 = vrot.slane %v2402, 5
      %v2405 = vsel %vm931, %v2400, %v2404
      %v2406 = vshrl.u32 %v2125, 16
      %v2408 = vrot.slane %v2406, 4
      %v2409 = vor.u32 %v2408, %v2404
      %v2410 = vrot.slane %v2409, 4
      %v2412 = vshll.u32 %v2146, 16
      %v2414 = vrot.slane %v2412, 5
      %v2415 = vsel %vm931, %v2410, %v2414
      %v2417 = vshrl.u32 %v2126, 16
      %v2419 = vrot.slane %v2417, 4
      %v2420 = vshll.u32 %v2126, 16
      %v2422 = vrot.slane %v2420, 5
      %v2423 = vor.u32 %v2419, %v2422
      %v2424 = vrot.slane %v2423, 4
      %v2426 = vshll.u32 %v2127, 16
      %v2428 = vrot.slane %v2426, 5
      %v2429 = vsel %vm931, %v2424, %v2428
      %v2430 = vshrl.u32 %v2127, 16
      %v2432 = vrot.slane %v2430, 4
      %v2433 = vor.u32 %v2432, %v2428
      %v2434 = vrot.slane %v2433, 4
      %v2436 = vshll.u32 %v2147, 16
      %v2438 = vrot.slane %v2436, 5
      %v2439 = vsel %vm931, %v2434, %v2438
      %v2441 = vshrl.u32 %v2128, 16
      %v2443 = vrot.slane %v2441, 4
      %v2444 = vshll.u32 %v2128, 16
      %v2446 = vrot.slane %v2444, 5
      %v2447 = vor.u32 %v2443, %v2446
      %v2448 = vrot.slane %v2447, 4
      %v2450 = vshll.u32 %v2129, 16
      %v2452 = vrot.slane %v2450, 5
      %v2453 = vsel %vm931, %v2448, %v2452
      %v2454 = vshrl.u32 %v2129, 16
      %v2456 = vrot.slane %v2454, 4
      %v2457 = vor.u32 %v2456, %v2452
      %v2458 = vrot.slane %v2457, 4
      %v2460 = vshll.u32 %v2148, 16
      %v2462 = vrot.slane %v2460, 5
      %v2463 = vsel %vm931, %v2458, %v2462
      %v2465 = vshrl.u32 %v2130, 16
      %v2467 = vrot.slane %v2465, 4
      %v2468 = vshll.u32 %v2130, 16
      %v2470 = vrot.slane %v2468, 5
      %v2471 = vor.u32 %v2467, %v2470
      %v2472 = vrot.slane %v2471, 4
      %v2474 = vshll.u32 %v2131, 16
      %v2476 = vrot.slane %v2474, 5
      %v2477 = vsel %vm931, %v2472, %v2476
      %v2478 = vshrl.u32 %v2131, 16
      %v2480 = vrot.slane %v2478, 4
      %v2481 = vor.u32 %v2480, %v2476
      %v2482 = vrot.slane %v2481, 4
      %v2484 = vshll.u32 %v2149, 16
      %v2486 = vrot.slane %v2484, 5
      %v2487 = vsel %vm931, %v2482, %v2486
      %v2489 = vshrl.u32 %v2132, 16
      %v2491 = vrot.slane %v2489, 4
      %v2492 = vshll.u32 %v2132, 16
      %v2494 = vrot.slane %v2492, 5
      %v2495 = vor.u32 %v2491, %v2494
      %v2496 = vrot.slane %v2495, 4
      %v2498 = vshll.u32 %v2133, 16
      %v2500 = vrot.slane %v2498, 5
      %v2501 = vsel %vm931, %v2496, %v2500
      %v2502 = vshrl.u32 %v2133, 16
      %v2504 = vrot.slane %v2502, 4
      %v2505 = vor.u32 %v2504, %v2500
      %v2506 = vrot.slane %v2505, 4
      %v2508 = vshll.u32 %v2150, 16
      %v2510 = vrot.slane %v2508, 5
      %v2511 = vsel %vm931, %v2506, %v2510
      %v2513 = vshrl.u32 %v2134, 16
      %v2515 = vrot.slane %v2513, 4
      %v2516 = vshll.u32 %v2134, 16
      %v2518 = vrot.slane %v2516, 5
      %v2519 = vor.u32 %v2515, %v2518
      %v2520 = vrot.slane %v2519, 4
      %v2522 = vshll.u32 %v2135, 16
      %v2524 = vrot.slane %v2522, 5
      %v2525 = vsel %vm931, %v2520, %v2524
      %v2526 = vshrl.u32 %v2135, 16
      %v2528 = vrot.slane %v2526, 4
      %v2529 = vor.u32 %v2528, %v2524
      %v2530 = vrot.slane %v2529, 4
      %v2532 = vshll.u32 %v2151, 16
      %v2534 = vrot.slane %v2532, 5
      %v2535 = vsel %vm931, %v2530, %v2534
      %v2536 = vld [vmem:[%s2103] sm:$0xe]
      %v2537 = vld [vmem:[%s2103 + $0xc] sm:$0xe]
      %v2538 = vld [vmem:[%s2103 + $0x18] sm:$0xe]
      %v2539 = vld [vmem:[%s2103 + $0x24] sm:$0xe]
      %v2540 = vld [vmem:[%s2103 + $0x30] sm:$0xe]
      %v2541 = vld [vmem:[%s2103 + $0x3c] sm:$0xe]
      %v2542 = vld [vmem:[%s2103 + $0x48] sm:$0xe]
      %v2543 = vld [vmem:[%s2103 + $0x54] sm:$0xe]
      %v2544 = vld [vmem:[%s2103 + $0x60] sm:$0xe]
      %v2545 = vld [vmem:[%s2103 + $0x6c] sm:$0xe]
      %v2546 = vld [vmem:[%s2103 + $0x78] sm:$0xe]
      %v2547 = vld [vmem:[%s2103 + $0x84] sm:$0xe]
      %v2548 = vld [vmem:[%s2103 + $0x90] sm:$0xe]
      %v2549 = vld [vmem:[%s2103 + $0x9c] sm:$0xe]
      %v2550 = vld [vmem:[%s2103 + $0xa8] sm:$0xe]
      %v2551 = vld [vmem:[%s2103 + $0xb4] sm:$0xe]
      %v2600 = vrot.slane %v2536, 5
      %v2601 = vrot.slane %v2600, 4
      %v2602 = vrot.slane %v2105, 5
      %v2603 = vsel %vm1382, %v2601, %v2602
      %v2604 = vrot.slane %v2602, 4
      %v2605 = vrot.slane %v2136, 5
      %v2606 = vsel %vm1382, %v2604, %v2605
      %v2607 = vrot.slane %v2537, 5
      %v2608 = vrot.slane %v2607, 4
      %v2609 = vrot.slane %v2107, 5
      %v2610 = vsel %vm1382, %v2608, %v2609
      %v2611 = vrot.slane %v2609, 4
      %v2612 = vrot.slane %v2137, 5
      %v2613 = vsel %vm1382, %v2611, %v2612
      %v2614 = vrot.slane %v2538, 5
      %v2615 = vrot.slane %v2614, 4
      %v2616 = vrot.slane %v2109, 5
      %v2617 = vsel %vm1382, %v2615, %v2616
      %v2618 = vrot.slane %v2616, 4
      %v2619 = vrot.slane %v2138, 5
      %v2620 = vsel %vm1382, %v2618, %v2619
      %v2621 = vrot.slane %v2539, 5
      %v2622 = vrot.slane %v2621, 4
      %v2623 = vrot.slane %v2111, 5
      %v2624 = vsel %vm1382, %v2622, %v2623
      %v2625 = vrot.slane %v2623, 4
      %v2626 = vrot.slane %v2139, 5
      %v2627 = vsel %vm1382, %v2625, %v2626
      %v2628 = vrot.slane %v2540, 5
      %v2629 = vrot.slane %v2628, 4
      %v2630 = vrot.slane %v2113, 5
      %v2631 = vsel %vm1382, %v2629, %v2630
      %v2632 = vrot.slane %v2630, 4
      %v2633 = vrot.slane %v2140, 5
      %v2634 = vsel %vm1382, %v2632, %v2633
      %v2635 = vrot.slane %v2541, 5
      %v2636 = vrot.slane %v2635, 4
      %v2637 = vrot.slane %v2115, 5
      %v2638 = vsel %vm1382, %v2636, %v2637
      %v2639 = vrot.slane %v2637, 4
      %v2640 = vrot.slane %v2141, 5
      %v2641 = vsel %vm1382, %v2639, %v2640
      %v2642 = vrot.slane %v2542, 5
      %v2643 = vrot.slane %v2642, 4
      %v2644 = vrot.slane %v2117, 5
      %v2645 = vsel %vm1382, %v2643, %v2644
      %v2646 = vrot.slane %v2644, 4
      %v2647 = vrot.slane %v2142, 5
      %v2648 = vsel %vm1382, %v2646, %v2647
      %v2649 = vrot.slane %v2543, 5
      %v2650 = vrot.slane %v2649, 4
      %v2651 = vrot.slane %v2119, 5
      %v2652 = vsel %vm1382, %v2650, %v2651
      %v2653 = vrot.slane %v2651, 4
      %v2654 = vrot.slane %v2143, 5
      %v2655 = vsel %vm1382, %v2653, %v2654
      %v2656 = vrot.slane %v2544, 5
      %v2657 = vrot.slane %v2656, 4
      %v2658 = vrot.slane %v2121, 5
      %v2659 = vsel %vm1382, %v2657, %v2658
      %v2660 = vrot.slane %v2658, 4
      %v2661 = vrot.slane %v2144, 5
      %v2662 = vsel %vm1382, %v2660, %v2661
      %v2663 = vrot.slane %v2545, 5
      %v2664 = vrot.slane %v2663, 4
      %v2665 = vrot.slane %v2123, 5
      %v2666 = vsel %vm1382, %v2664, %v2665
      %v2667 = vrot.slane %v2665, 4
      %v2668 = vrot.slane %v2145, 5
      %v2669 = vsel %vm1382, %v2667, %v2668
      %v2670 = vrot.slane %v2546, 5
      %v2671 = vrot.slane %v2670, 4
      %v2672 = vrot.slane %v2125, 5
      %v2673 = vsel %vm1382, %v2671, %v2672
      %v2674 = vrot.slane %v2672, 4
      %v2675 = vrot.slane %v2146, 5
      %v2676 = vsel %vm1382, %v2674, %v2675
      %v2677 = vrot.slane %v2547, 5
      %v2678 = vrot.slane %v2677, 4
      %v2679 = vrot.slane %v2127, 5
      %v2680 = vsel %vm1382, %v2678, %v2679
      %v2681 = vrot.slane %v2679, 4
      %v2682 = vrot.slane %v2147, 5
      %v2683 = vsel %vm1382, %v2681, %v2682
      %v2684 = vrot.slane %v2548, 5
      %v2685 = vrot.slane %v2684, 4
      %v2686 = vrot.slane %v2129, 5
      %v2687 = vsel %vm1382, %v2685, %v2686
      %v2688 = vrot.slane %v2686, 4
      %v2689 = vrot.slane %v2148, 5
      %v2690 = vsel %vm1382, %v2688, %v2689
      %v2691 = vrot.slane %v2549, 5
      %v2692 = vrot.slane %v2691, 4
      %v2693 = vrot.slane %v2131, 5
      %v2694 = vsel %vm1382, %v2692, %v2693
      %v2695 = vrot.slane %v2693, 4
      %v2696 = vrot.slane %v2149, 5
      %v2697 = vsel %vm1382, %v2695, %v2696
      %v2698 = vrot.slane %v2550, 5
      %v2699 = vrot.slane %v2698, 4
      %v2700 = vrot.slane %v2133, 5
      %v2701 = vsel %vm1382, %v2699, %v2700
      %v2702 = vrot.slane %v2700, 4
      %v2703 = vrot.slane %v2150, 5
      %v2704 = vsel %vm1382, %v2702, %v2703
      %v2705 = vrot.slane %v2551, 5
      %v2706 = vrot.slane %v2705, 4
      %v2707 = vrot.slane %v2135, 5
      %v2708 = vsel %vm1382, %v2706, %v2707
      %v2709 = vrot.slane %v2707, 4
      %v2710 = vrot.slane %v2151, 5
      %v2711 = vsel %vm1382, %v2709, %v2710
      %v2728 = vunpack.c.l.b16 %v881
      %v2729 = vunpack.c.l.b16 %v882
      %v2730 = vunpack.c.l.b16 %v883
      %v2731 = vunpack.c.l.b16 %v884
      %v2732 = vunpack.c.l.b16 %v885
      %v2733 = vunpack.c.l.b16 %v886
      %v2734 = vunpack.c.l.b16 %v887
      %v2735 = vunpack.c.l.b16 %v888
      %v2736 = vunpack.c.l.b16 %v889
      %v2737 = vunpack.c.l.b16 %v890
      %v2738 = vunpack.c.l.b16 %v891
      %v2739 = vunpack.c.l.b16 %v892
      %v2740 = vunpack.c.l.b16 %v893
      %v2741 = vunpack.c.l.b16 %v894
      %v2742 = vunpack.c.l.b16 %v895
      %v2743 = vunpack.c.l.b16 %v896
      %v2744 = vunpack.c.l.b16 %v897
      %v2745 = vunpack.c.l.b16 %v898
      %v2746 = vunpack.c.l.b16 %v899
      %v2747 = vunpack.c.l.b16 %v900
      %v2748 = vunpack.c.l.b16 %v901
      %v2749 = vunpack.c.l.b16 %v902
      %v2750 = vunpack.c.l.b16 %v903
      %v2751 = vunpack.c.l.b16 %v904
      %v2752 = vunpack.c.l.b16 %v905
      %v2753 = vunpack.c.l.b16 %v906
      %v2754 = vunpack.c.l.b16 %v907
      %v2755 = vunpack.c.l.b16 %v908
      %v2756 = vunpack.c.l.b16 %v909
      %v2757 = vunpack.c.l.b16 %v910
      %v2758 = vunpack.c.l.b16 %v911
      %v2759 = vunpack.c.l.b16 %v912
      %v2760 = vpack.c.b16 %v2729, %v2728
      %v2761 = vpack.c.b16 %v2731, %v2730
      %v2762 = vpack.c.b16 %v2733, %v2732
      %v2763 = vpack.c.b16 %v2735, %v2734
      %v2764 = vpack.c.b16 %v2737, %v2736
      %v2765 = vpack.c.b16 %v2739, %v2738
      %v2766 = vpack.c.b16 %v2741, %v2740
      %v2767 = vpack.c.b16 %v2743, %v2742
      %v2768 = vpack.c.b16 %v2745, %v2744
      %v2769 = vpack.c.b16 %v2747, %v2746
      %v2770 = vpack.c.b16 %v2749, %v2748
      %v2771 = vpack.c.b16 %v2751, %v2750
      %v2772 = vpack.c.b16 %v2753, %v2752
      %v2773 = vpack.c.b16 %v2755, %v2754
      %v2774 = vpack.c.b16 %v2757, %v2756
      %v2775 = vpack.c.b16 %v2759, %v2758
      %v2776 = vunpack.c.l.b16 %v945
      %v2777 = vunpack.c.l.b16 %v955
      %v2778 = vunpack.c.l.b16 %v969
      %v2779 = vunpack.c.l.b16 %v979
      %v2780 = vunpack.c.l.b16 %v993
      %v2781 = vunpack.c.l.b16 %v1003
      %v2782 = vunpack.c.l.b16 %v1017
      %v2783 = vunpack.c.l.b16 %v1027
      %v2784 = vunpack.c.l.b16 %v1041
      %v2785 = vunpack.c.l.b16 %v1051
      %v2786 = vunpack.c.l.b16 %v1065
      %v2787 = vunpack.c.l.b16 %v1075
      %v2788 = vunpack.c.l.b16 %v1089
      %v2789 = vunpack.c.l.b16 %v1099
      %v2790 = vunpack.c.l.b16 %v1113
      %v2791 = vunpack.c.l.b16 %v1123
      %v2792 = vunpack.c.l.b16 %v1137
      %v2793 = vunpack.c.l.b16 %v1147
      %v2794 = vunpack.c.l.b16 %v1161
      %v2795 = vunpack.c.l.b16 %v1171
      %v2796 = vunpack.c.l.b16 %v1185
      %v2797 = vunpack.c.l.b16 %v1195
      %v2798 = vunpack.c.l.b16 %v1209
      %v2799 = vunpack.c.l.b16 %v1219
      %v2800 = vunpack.c.l.b16 %v1233
      %v2801 = vunpack.c.l.b16 %v1243
      %v2802 = vunpack.c.l.b16 %v1257
      %v2803 = vunpack.c.l.b16 %v1267
      %v2804 = vunpack.c.l.b16 %v1281
      %v2805 = vunpack.c.l.b16 %v1291
      %v2806 = vunpack.c.l.b16 %v1305
      %v2807 = vunpack.c.l.b16 %v1315
      %v2808 = vpack.c.b16 %v2777, %v2776
      %v2809 = vpack.c.b16 %v2779, %v2778
      %v2810 = vpack.c.b16 %v2781, %v2780
      %v2811 = vpack.c.b16 %v2783, %v2782
      %v2812 = vpack.c.b16 %v2785, %v2784
      %v2813 = vpack.c.b16 %v2787, %v2786
      %v2814 = vpack.c.b16 %v2789, %v2788
      %v2815 = vpack.c.b16 %v2791, %v2790
      %v2816 = vpack.c.b16 %v2793, %v2792
      %v2817 = vpack.c.b16 %v2795, %v2794
      %v2818 = vpack.c.b16 %v2797, %v2796
      %v2819 = vpack.c.b16 %v2799, %v2798
      %v2820 = vpack.c.b16 %v2801, %v2800
      %v2821 = vpack.c.b16 %v2803, %v2802
      %v2822 = vpack.c.b16 %v2805, %v2804
      %v2823 = vpack.c.b16 %v2807, %v2806
      %2824 = vrot.lane.b32.xlu0 %v2808, 4
      %v2825 = vpop.permute.xlu0 %2824
      %2826 = vrot.lane.b32.xlu0 %v2809, 4
      %v2827 = vpop.permute.xlu0 %2826
      %2828 = vrot.lane.b32.xlu0 %v2810, 4
      %v2829 = vpop.permute.xlu0 %2828
      %2830 = vrot.lane.b32.xlu0 %v2811, 4
      %v2831 = vpop.permute.xlu0 %2830
      %2832 = vrot.lane.b32.xlu0 %v2812, 4
      %v2833 = vpop.permute.xlu0 %2832
      %2834 = vrot.lane.b32.xlu0 %v2813, 4
      %v2835 = vpop.permute.xlu0 %2834
      %2836 = vrot.lane.b32.xlu0 %v2814, 4
      %v2837 = vpop.permute.xlu0 %2836
      %2838 = vrot.lane.b32.xlu0 %v2815, 4
      %v2839 = vpop.permute.xlu0 %2838
      %2840 = vrot.lane.b32.xlu0 %v2816, 4
      %v2841 = vpop.permute.xlu0 %2840
      %2842 = vrot.lane.b32.xlu0 %v2817, 4
      %v2843 = vpop.permute.xlu0 %2842
      %2844 = vrot.lane.b32.xlu0 %v2818, 4
      %v2845 = vpop.permute.xlu0 %2844
      %2846 = vrot.lane.b32.xlu0 %v2819, 4
      %v2847 = vpop.permute.xlu0 %2846
      %2848 = vrot.lane.b32.xlu0 %v2820, 4
      %v2849 = vpop.permute.xlu0 %2848
      %2850 = vrot.lane.b32.xlu0 %v2821, 4
      %v2851 = vpop.permute.xlu0 %2850
      %2852 = vrot.lane.b32.xlu0 %v2822, 4
      %v2853 = vpop.permute.xlu0 %2852
      %2854 = vrot.lane.b32.xlu0 %v2823, 4
      %v2855 = vpop.permute.xlu0 %2854
      %v2856 = vunpack.c.l.b16 %v1386
      %v2857 = vunpack.c.l.b16 %v1389
      %v2858 = vunpack.c.l.b16 %v1393
      %v2859 = vunpack.c.l.b16 %v1396
      %v2860 = vunpack.c.l.b16 %v1400
      %v2861 = vunpack.c.l.b16 %v1403
      %v2862 = vunpack.c.l.b16 %v1407
      %v2863 = vunpack.c.l.b16 %v1410
      %v2864 = vunpack.c.l.b16 %v1414
      %v2865 = vunpack.c.l.b16 %v1417
      %v2866 = vunpack.c.l.b16 %v1421
      %v2867 = vunpack.c.l.b16 %v1424
      %v2868 = vunpack.c.l.b16 %v1428
      %v2869 = vunpack.c.l.b16 %v1431
      %v2870 = vunpack.c.l.b16 %v1435
      %v2871 = vunpack.c.l.b16 %v1438
      %v2872 = vunpack.c.l.b16 %v1442
      %v2873 = vunpack.c.l.b16 %v1445
      %v2874 = vunpack.c.l.b16 %v1449
      %v2875 = vunpack.c.l.b16 %v1452
      %v2876 = vunpack.c.l.b16 %v1456
      %v2877 = vunpack.c.l.b16 %v1459
      %v2878 = vunpack.c.l.b16 %v1463
      %v2879 = vunpack.c.l.b16 %v1466
      %v2880 = vunpack.c.l.b16 %v1470
      %v2881 = vunpack.c.l.b16 %v1473
      %v2882 = vunpack.c.l.b16 %v1477
      %v2883 = vunpack.c.l.b16 %v1480
      %v2884 = vunpack.c.l.b16 %v1484
      %v2885 = vunpack.c.l.b16 %v1487
      %v2886 = vunpack.c.l.b16 %v1491
      %v2887 = vunpack.c.l.b16 %v1494
      %v2888 = vpack.c.b16 %v2857, %v2856
      %v2889 = vpack.c.b16 %v2859, %v2858
      %v2890 = vpack.c.b16 %v2861, %v2860
      %v2891 = vpack.c.b16 %v2863, %v2862
      %v2892 = vpack.c.b16 %v2865, %v2864
      %v2893 = vpack.c.b16 %v2867, %v2866
      %v2894 = vpack.c.b16 %v2869, %v2868
      %v2895 = vpack.c.b16 %v2871, %v2870
      %v2896 = vpack.c.b16 %v2873, %v2872
      %v2897 = vpack.c.b16 %v2875, %v2874
      %v2898 = vpack.c.b16 %v2877, %v2876
      %v2899 = vpack.c.b16 %v2879, %v2878
      %v2900 = vpack.c.b16 %v2881, %v2880
      %v2901 = vpack.c.b16 %v2883, %v2882
      %v2902 = vpack.c.b16 %v2885, %v2884
      %v2903 = vpack.c.b16 %v2887, %v2886
      %2904 = vrot.lane.b32.xlu0 %v2888, 8
      %v2905 = vpop.permute.xlu0 %2904
      %2906 = vrot.lane.b32.xlu0 %v2889, 8
      %v2907 = vpop.permute.xlu0 %2906
      %2908 = vrot.lane.b32.xlu0 %v2890, 8
      %v2909 = vpop.permute.xlu0 %2908
      %2910 = vrot.lane.b32.xlu0 %v2891, 8
      %v2911 = vpop.permute.xlu0 %2910
      %2912 = vrot.lane.b32.xlu0 %v2892, 8
      %v2913 = vpop.permute.xlu0 %2912
      %2914 = vrot.lane.b32.xlu0 %v2893, 8
      %v2915 = vpop.permute.xlu0 %2914
      %2916 = vrot.lane.b32.xlu0 %v2894, 8
      %v2917 = vpop.permute.xlu0 %2916
      %2918 = vrot.lane.b32.xlu0 %v2895, 8
      %v2919 = vpop.permute.xlu0 %2918
      %2920 = vrot.lane.b32.xlu0 %v2896, 8
      %v2921 = vpop.permute.xlu0 %2920
      %2922 = vrot.lane.b32.xlu0 %v2897, 8
      %v2923 = vpop.permute.xlu0 %2922
      %2924 = vrot.lane.b32.xlu0 %v2898, 8
      %v2925 = vpop.permute.xlu0 %2924
      %2926 = vrot.lane.b32.xlu0 %v2899, 8
      %v2927 = vpop.permute.xlu0 %2926
      %2928 = vrot.lane.b32.xlu0 %v2900, 8
      %v2929 = vpop.permute.xlu0 %2928
      %2930 = vrot.lane.b32.xlu0 %v2901, 8
      %v2931 = vpop.permute.xlu0 %2930
      %2932 = vrot.lane.b32.xlu0 %v2902, 8
      %v2933 = vpop.permute.xlu0 %2932
      %2934 = vrot.lane.b32.xlu0 %v2903, 8
      %v2935 = vpop.permute.xlu0 %2934
      %v2952 = vunpack.c.l.b16 %v1495
      %v2953 = vunpack.c.l.b16 %v1496
      %v2954 = vunpack.c.l.b16 %v1497
      %v2955 = vunpack.c.l.b16 %v1498
      %v2956 = vunpack.c.l.b16 %v1499
      %v2957 = vunpack.c.l.b16 %v1500
      %v2958 = vunpack.c.l.b16 %v1501
      %v2959 = vunpack.c.l.b16 %v1502
      %v2960 = vunpack.c.l.b16 %v1503
      %v2961 = vunpack.c.l.b16 %v1504
      %v2962 = vunpack.c.l.b16 %v1505
      %v2963 = vunpack.c.l.b16 %v1506
      %v2964 = vunpack.c.l.b16 %v1507
      %v2965 = vunpack.c.l.b16 %v1508
      %v2966 = vunpack.c.l.b16 %v1509
      %v2967 = vunpack.c.l.b16 %v1510
      %v2968 = vunpack.c.l.b16 %v1511
      %v2969 = vunpack.c.l.b16 %v1512
      %v2970 = vunpack.c.l.b16 %v1513
      %v2971 = vunpack.c.l.b16 %v1514
      %v2972 = vunpack.c.l.b16 %v1515
      %v2973 = vunpack.c.l.b16 %v1516
      %v2974 = vunpack.c.l.b16 %v1517
      %v2975 = vunpack.c.l.b16 %v1518
      %v2976 = vunpack.c.l.b16 %v1519
      %v2977 = vunpack.c.l.b16 %v1520
      %v2978 = vunpack.c.l.b16 %v1521
      %v2979 = vunpack.c.l.b16 %v1522
      %v2980 = vunpack.c.l.b16 %v1523
      %v2981 = vunpack.c.l.b16 %v1524
      %v2982 = vunpack.c.l.b16 %v1525
      %v2983 = vunpack.c.l.b16 %v1526
      %v2984 = vpack.c.b16 %v2953, %v2952
      %v2985 = vpack.c.b16 %v2955, %v2954
      %v2986 = vpack.c.b16 %v2957, %v2956
      %v2987 = vpack.c.b16 %v2959, %v2958
      %v2988 = vpack.c.b16 %v2961, %v2960
      %v2989 = vpack.c.b16 %v2963, %v2962
      %v2990 = vpack.c.b16 %v2965, %v2964
      %v2991 = vpack.c.b16 %v2967, %v2966
      %v2992 = vpack.c.b16 %v2969, %v2968
      %v2993 = vpack.c.b16 %v2971, %v2970
      %v2994 = vpack.c.b16 %v2973, %v2972
      %v2995 = vpack.c.b16 %v2975, %v2974
      %v2996 = vpack.c.b16 %v2977, %v2976
      %v2997 = vpack.c.b16 %v2979, %v2978
      %v2998 = vpack.c.b16 %v2981, %v2980
      %v2999 = vpack.c.b16 %v2983, %v2982
      %3000 = vrot.lane.b32.xlu0 %v2984, 12
      %v3001 = vpop.permute.xlu0 %3000
      %3002 = vrot.lane.b32.xlu0 %v2985, 12
      %v3003 = vpop.permute.xlu0 %3002
      %3004 = vrot.lane.b32.xlu0 %v2986, 12
      %v3005 = vpop.permute.xlu0 %3004
      %3006 = vrot.lane.b32.xlu0 %v2987, 12
      %v3007 = vpop.permute.xlu0 %3006
      %3008 = vrot.lane.b32.xlu0 %v2988, 12
      %v3009 = vpop.permute.xlu0 %3008
      %3010 = vrot.lane.b32.xlu0 %v2989, 12
      %v3011 = vpop.permute.xlu0 %3010
      %3012 = vrot.lane.b32.xlu0 %v2990, 12
      %v3013 = vpop.permute.xlu0 %3012
      %3014 = vrot.lane.b32.xlu0 %v2991, 12
      %v3015 = vpop.permute.xlu0 %3014
      %3016 = vrot.lane.b32.xlu0 %v2992, 12
      %v3017 = vpop.permute.xlu0 %3016
      %3018 = vrot.lane.b32.xlu0 %v2993, 12
      %v3019 = vpop.permute.xlu0 %3018
      %3020 = vrot.lane.b32.xlu0 %v2994, 12
      %v3021 = vpop.permute.xlu0 %3020
      %3022 = vrot.lane.b32.xlu0 %v2995, 12
      %v3023 = vpop.permute.xlu0 %3022
      %3024 = vrot.lane.b32.xlu0 %v2996, 12
      %v3025 = vpop.permute.xlu0 %3024
      %3026 = vrot.lane.b32.xlu0 %v2997, 12
      %v3027 = vpop.permute.xlu0 %3026
      %3028 = vrot.lane.b32.xlu0 %v2998, 12
      %v3029 = vpop.permute.xlu0 %3028
      %3030 = vrot.lane.b32.xlu0 %v2999, 12
      %v3031 = vpop.permute.xlu0 %3030
      %v3032 = vunpack.c.l.b16 %v1556
      %v3033 = vunpack.c.l.b16 %v1566
      %v3034 = vunpack.c.l.b16 %v1580
      %v3035 = vunpack.c.l.b16 %v1590
      %v3036 = vunpack.c.l.b16 %v1604
      %v3037 = vunpack.c.l.b16 %v1614
      %v3038 = vunpack.c.l.b16 %v1628
      %v3039 = vunpack.c.l.b16 %v1638
      %v3040 = vunpack.c.l.b16 %v1652
      %v3041 = vunpack.c.l.b16 %v1662
      %v3042 = vunpack.c.l.b16 %v1676
      %v3043 = vunpack.c.l.b16 %v1686
      %v3044 = vunpack.c.l.b16 %v1700
      %v3045 = vunpack.c.l.b16 %v1710
      %v3046 = vunpack.c.l.b16 %v1724
      %v3047 = vunpack.c.l.b16 %v1734
      %v3048 = vunpack.c.l.b16 %v1748
      %v3049 = vunpack.c.l.b16 %v1758
      %v3050 = vunpack.c.l.b16 %v1772
      %v3051 = vunpack.c.l.b16 %v1782
      %v3052 = vunpack.c.l.b16 %v1796
      %v3053 = vunpack.c.l.b16 %v1806
      %v3054 = vunpack.c.l.b16 %v1820
      %v3055 = vunpack.c.l.b16 %v1830
      %v3056 = vunpack.c.l.b16 %v1844
      %v3057 = vunpack.c.l.b16 %v1854
      %v3058 = vunpack.c.l.b16 %v1868
      %v3059 = vunpack.c.l.b16 %v1878
      %v3060 = vunpack.c.l.b16 %v1892
      %v3061 = vunpack.c.l.b16 %v1902
      %v3062 = vunpack.c.l.b16 %v1916
      %v3063 = vunpack.c.l.b16 %v1926
      %v3064 = vpack.c.b16 %v3033, %v3032
      %v3065 = vpack.c.b16 %v3035, %v3034
      %v3066 = vpack.c.b16 %v3037, %v3036
      %v3067 = vpack.c.b16 %v3039, %v3038
      %v3068 = vpack.c.b16 %v3041, %v3040
      %v3069 = vpack.c.b16 %v3043, %v3042
      %v3070 = vpack.c.b16 %v3045, %v3044
      %v3071 = vpack.c.b16 %v3047, %v3046
      %v3072 = vpack.c.b16 %v3049, %v3048
      %v3073 = vpack.c.b16 %v3051, %v3050
      %v3074 = vpack.c.b16 %v3053, %v3052
      %v3075 = vpack.c.b16 %v3055, %v3054
      %v3076 = vpack.c.b16 %v3057, %v3056
      %v3077 = vpack.c.b16 %v3059, %v3058
      %v3078 = vpack.c.b16 %v3061, %v3060
      %v3079 = vpack.c.b16 %v3063, %v3062
      %3080 = vrot.lane.b32.xlu0 %v3064, 16
      %v3081 = vpop.permute.xlu0 %3080
      %3082 = vrot.lane.b32.xlu0 %v3065, 16
      %v3083 = vpop.permute.xlu0 %3082
      %3084 = vrot.lane.b32.xlu0 %v3066, 16
      %v3085 = vpop.permute.xlu0 %3084
      %3086 = vrot.lane.b32.xlu0 %v3067, 16
      %v3087 = vpop.permute.xlu0 %3086
      %3088 = vrot.lane.b32.xlu0 %v3068, 16
      %v3089 = vpop.permute.xlu0 %3088
      %3090 = vrot.lane.b32.xlu0 %v3069, 16
      %v3091 = vpop.permute.xlu0 %3090
      %3092 = vrot.lane.b32.xlu0 %v3070, 16
      %v3093 = vpop.permute.xlu0 %3092
      %3094 = vrot.lane.b32.xlu0 %v3071, 16
      %v3095 = vpop.permute.xlu0 %3094
      %3096 = vrot.lane.b32.xlu0 %v3072, 16
      %v3097 = vpop.permute.xlu0 %3096
      %3098 = vrot.lane.b32.xlu0 %v3073, 16
      %v3099 = vpop.permute.xlu0 %3098
      %3100 = vrot.lane.b32.xlu0 %v3074, 16
      %v3101 = vpop.permute.xlu0 %3100
      %3102 = vrot.lane.b32.xlu0 %v3075, 16
      %v3103 = vpop.permute.xlu0 %3102
      %3104 = vrot.lane.b32.xlu0 %v3076, 16
      %v3105 = vpop.permute.xlu0 %3104
      %3106 = vrot.lane.b32.xlu0 %v3077, 16
      %v3107 = vpop.permute.xlu0 %3106
      %3108 = vrot.lane.b32.xlu0 %v3078, 16
      %v3109 = vpop.permute.xlu0 %3108
      %3110 = vrot.lane.b32.xlu0 %v3079, 16
      %v3111 = vpop.permute.xlu0 %3110
      %v3112 = vunpack.c.l.b16 %v1994
      %v3113 = vunpack.c.l.b16 %v1997
      %v3114 = vunpack.c.l.b16 %v2001
      %v3115 = vunpack.c.l.b16 %v2004
      %v3116 = vunpack.c.l.b16 %v2008
      %v3117 = vunpack.c.l.b16 %v2011
      %v3118 = vunpack.c.l.b16 %v2015
      %v3119 = vunpack.c.l.b16 %v2018
      %v3120 = vunpack.c.l.b16 %v2022
      %v3121 = vunpack.c.l.b16 %v2025
      %v3122 = vunpack.c.l.b16 %v2029
      %v3123 = vunpack.c.l.b16 %v2032
      %v3124 = vunpack.c.l.b16 %v2036
      %v3125 = vunpack.c.l.b16 %v2039
      %v3126 = vunpack.c.l.b16 %v2043
      %v3127 = vunpack.c.l.b16 %v2046
      %v3128 = vunpack.c.l.b16 %v2050
      %v3129 = vunpack.c.l.b16 %v2053
      %v3130 = vunpack.c.l.b16 %v2057
      %v3131 = vunpack.c.l.b16 %v2060
      %v3132 = vunpack.c.l.b16 %v2064
      %v3133 = vunpack.c.l.b16 %v2067
      %v3134 = vunpack.c.l.b16 %v2071
      %v3135 = vunpack.c.l.b16 %v2074
      %v3136 = vunpack.c.l.b16 %v2078
      %v3137 = vunpack.c.l.b16 %v2081
      %v3138 = vunpack.c.l.b16 %v2085
      %v3139 = vunpack.c.l.b16 %v2088
      %v3140 = vunpack.c.l.b16 %v2092
      %v3141 = vunpack.c.l.b16 %v2095
      %v3142 = vunpack.c.l.b16 %v2099
      %v3143 = vunpack.c.l.b16 %v2102
      %v3144 = vpack.c.b16 %v3113, %v3112
      %v3145 = vpack.c.b16 %v3115, %v3114
      %v3146 = vpack.c.b16 %v3117, %v3116
      %v3147 = vpack.c.b16 %v3119, %v3118
      %v3148 = vpack.c.b16 %v3121, %v3120
      %v3149 = vpack.c.b16 %v3123, %v3122
      %v3150 = vpack.c.b16 %v3125, %v3124
      %v3151 = vpack.c.b16 %v3127, %v3126
      %v3152 = vpack.c.b16 %v3129, %v3128
      %v3153 = vpack.c.b16 %v3131, %v3130
      %v3154 = vpack.c.b16 %v3133, %v3132
      %v3155 = vpack.c.b16 %v3135, %v3134
      %v3156 = vpack.c.b16 %v3137, %v3136
      %v3157 = vpack.c.b16 %v3139, %v3138
      %v3158 = vpack.c.b16 %v3141, %v3140
      %v3159 = vpack.c.b16 %v3143, %v3142
      %3160 = vrot.lane.b32.xlu0 %v3144, 20
      %v3161 = vpop.permute.xlu0 %3160
      %3162 = vrot.lane.b32.xlu0 %v3145, 20
      %v3163 = vpop.permute.xlu0 %3162
      %3164 = vrot.lane.b32.xlu0 %v3146, 20
      %v3165 = vpop.permute.xlu0 %3164
      %3166 = vrot.lane.b32.xlu0 %v3147, 20
      %v3167 = vpop.permute.xlu0 %3166
      %3168 = vrot.lane.b32.xlu0 %v3148, 20
      %v3169 = vpop.permute.xlu0 %3168
      %3170 = vrot.lane.b32.xlu0 %v3149, 20
      %v3171 = vpop.permute.xlu0 %3170
      %3172 = vrot.lane.b32.xlu0 %v3150, 20
      %v3173 = vpop.permute.xlu0 %3172
      %3174 = vrot.lane.b32.xlu0 %v3151, 20
      %v3175 = vpop.permute.xlu0 %3174
      %3176 = vrot.lane.b32.xlu0 %v3152, 20
      %v3177 = vpop.permute.xlu0 %3176
      %3178 = vrot.lane.b32.xlu0 %v3153, 20
      %v3179 = vpop.permute.xlu0 %3178
      %3180 = vrot.lane.b32.xlu0 %v3154, 20
      %v3181 = vpop.permute.xlu0 %3180
      %3182 = vrot.lane.b32.xlu0 %v3155, 20
      %v3183 = vpop.permute.xlu0 %3182
      %3184 = vrot.lane.b32.xlu0 %v3156, 20
      %v3185 = vpop.permute.xlu0 %3184
      %3186 = vrot.lane.b32.xlu0 %v3157, 20
      %v3187 = vpop.permute.xlu0 %3186
      %3188 = vrot.lane.b32.xlu0 %v3158, 20
      %v3189 = vpop.permute.xlu0 %3188
      %3190 = vrot.lane.b32.xlu0 %v3159, 20
      %v3191 = vpop.permute.xlu0 %3190
      %v3208 = vunpack.c.l.b16 %v2104
      %v3209 = vunpack.c.l.b16 %v2105
      %v3210 = vunpack.c.l.b16 %v2106
      %v3211 = vunpack.c.l.b16 %v2107
      %v3212 = vunpack.c.l.b16 %v2108
      %v3213 = vunpack.c.l.b16 %v2109
      %v3214 = vunpack.c.l.b16 %v2110
      %v3215 = vunpack.c.l.b16 %v2111
      %v3216 = vunpack.c.l.b16 %v2112
      %v3217 = vunpack.c.l.b16 %v2113
      %v3218 = vunpack.c.l.b16 %v2114
      %v3219 = vunpack.c.l.b16 %v2115
      %v3220 = vunpack.c.l.b16 %v2116
      %v3221 = vunpack.c.l.b16 %v2117
      %v3222 = vunpack.c.l.b16 %v2118
      %v3223 = vunpack.c.l.b16 %v2119
      %v3224 = vunpack.c.l.b16 %v2120
      %v3225 = vunpack.c.l.b16 %v2121
      %v3226 = vunpack.c.l.b16 %v2122
      %v3227 = vunpack.c.l.b16 %v2123
      %v3228 = vunpack.c.l.b16 %v2124
      %v3229 = vunpack.c.l.b16 %v2125
      %v3230 = vunpack.c.l.b16 %v2126
      %v3231 = vunpack.c.l.b16 %v2127
      %v3232 = vunpack.c.l.b16 %v2128
      %v3233 = vunpack.c.l.b16 %v2129
      %v3234 = vunpack.c.l.b16 %v2130
      %v3235 = vunpack.c.l.b16 %v2131
      %v3236 = vunpack.c.l.b16 %v2132
      %v3237 = vunpack.c.l.b16 %v2133
      %v3238 = vunpack.c.l.b16 %v2134
      %v3239 = vunpack.c.l.b16 %v2135
      %v3240 = vpack.c.b16 %v3209, %v3208
      %v3241 = vpack.c.b16 %v3211, %v3210
      %v3242 = vpack.c.b16 %v3213, %v3212
      %v3243 = vpack.c.b16 %v3215, %v3214
      %v3244 = vpack.c.b16 %v3217, %v3216
      %v3245 = vpack.c.b16 %v3219, %v3218
      %v3246 = vpack.c.b16 %v3221, %v3220
      %v3247 = vpack.c.b16 %v3223, %v3222
      %v3248 = vpack.c.b16 %v3225, %v3224
      %v3249 = vpack.c.b16 %v3227, %v3226
      %v3250 = vpack.c.b16 %v3229, %v3228
      %v3251 = vpack.c.b16 %v3231, %v3230
      %v3252 = vpack.c.b16 %v3233, %v3232
      %v3253 = vpack.c.b16 %v3235, %v3234
      %v3254 = vpack.c.b16 %v3237, %v3236
      %v3255 = vpack.c.b16 %v3239, %v3238
      %3256 = vrot.lane.b32.xlu0 %v3240, 24
      %v3257 = vpop.permute.xlu0 %3256
      %3258 = vrot.lane.b32.xlu0 %v3241, 24
      %v3259 = vpop.permute.xlu0 %3258
      %3260 = vrot.lane.b32.xlu0 %v3242, 24
      %v3261 = vpop.permute.xlu0 %3260
      %3262 = vrot.lane.b32.xlu0 %v3243, 24
      %v3263 = vpop.permute.xlu0 %3262
      %3264 = vrot.lane.b32.xlu0 %v3244, 24
      %v3265 = vpop.permute.xlu0 %3264
      %3266 = vrot.lane.b32.xlu0 %v3245, 24
      %v3267 = vpop.permute.xlu0 %3266
      %3268 = vrot.lane.b32.xlu0 %v3246, 24
      %v3269 = vpop.permute.xlu0 %3268
      %3270 = vrot.lane.b32.xlu0 %v3247, 24
      %v3271 = vpop.permute.xlu0 %3270
      %3272 = vrot.lane.b32.xlu0 %v3248, 24
      %v3273 = vpop.permute.xlu0 %3272
      %3274 = vrot.lane.b32.xlu0 %v3249, 24
      %v3275 = vpop.permute.xlu0 %3274
      %3276 = vrot.lane.b32.xlu0 %v3250, 24
      %v3277 = vpop.permute.xlu0 %3276
      %3278 = vrot.lane.b32.xlu0 %v3251, 24
      %v3279 = vpop.permute.xlu0 %3278
      %3280 = vrot.lane.b32.xlu0 %v3252, 24
      %v3281 = vpop.permute.xlu0 %3280
      %3282 = vrot.lane.b32.xlu0 %v3253, 24
      %v3283 = vpop.permute.xlu0 %3282
      %3284 = vrot.lane.b32.xlu0 %v3254, 24
      %v3285 = vpop.permute.xlu0 %3284
      %3286 = vrot.lane.b32.xlu0 %v3255, 24
      %v3287 = vpop.permute.xlu0 %3286
      %v3288 = vunpack.c.l.b16 %v2165
      %v3289 = vunpack.c.l.b16 %v2175
      %v3290 = vunpack.c.l.b16 %v2189
      %v3291 = vunpack.c.l.b16 %v2199
      %v3292 = vunpack.c.l.b16 %v2213
      %v3293 = vunpack.c.l.b16 %v2223
      %v3294 = vunpack.c.l.b16 %v2237
      %v3295 = vunpack.c.l.b16 %v2247
      %v3296 = vunpack.c.l.b16 %v2261
      %v3297 = vunpack.c.l.b16 %v2271
      %v3298 = vunpack.c.l.b16 %v2285
      %v3299 = vunpack.c.l.b16 %v2295
      %v3300 = vunpack.c.l.b16 %v2309
      %v3301 = vunpack.c.l.b16 %v2319
      %v3302 = vunpack.c.l.b16 %v2333
      %v3303 = vunpack.c.l.b16 %v2343
      %v3304 = vunpack.c.l.b16 %v2357
      %v3305 = vunpack.c.l.b16 %v2367
      %v3306 = vunpack.c.l.b16 %v2381
      %v3307 = vunpack.c.l.b16 %v2391
      %v3308 = vunpack.c.l.b16 %v2405
      %v3309 = vunpack.c.l.b16 %v2415
      %v3310 = vunpack.c.l.b16 %v2429
      %v3311 = vunpack.c.l.b16 %v2439
      %v3312 = vunpack.c.l.b16 %v2453
      %v3313 = vunpack.c.l.b16 %v2463
      %v3314 = vunpack.c.l.b16 %v2477
      %v3315 = vunpack.c.l.b16 %v2487
      %v3316 = vunpack.c.l.b16 %v2501
      %v3317 = vunpack.c.l.b16 %v2511
      %v3318 = vunpack.c.l.b16 %v2525
      %v3319 = vunpack.c.l.b16 %v2535
      %v3320 = vpack.c.b16 %v3289, %v3288
      %v3321 = vpack.c.b16 %v3291, %v3290
      %v3322 = vpack.c.b16 %v3293, %v3292
      %v3323 = vpack.c.b16 %v3295, %v3294
      %v3324 = vpack.c.b16 %v3297, %v3296
      %v3325 = vpack.c.b16 %v3299, %v3298
      %v3326 = vpack.c.b16 %v3301, %v3300
      %v3327 = vpack.c.b16 %v3303, %v3302
      %v3328 = vpack.c.b16 %v3305, %v3304
      %v3329 = vpack.c.b16 %v3307, %v3306
      %v3330 = vpack.c.b16 %v3309, %v3308
      %v3331 = vpack.c.b16 %v3311, %v3310
      %v3332 = vpack.c.b16 %v3313, %v3312
      %v3333 = vpack.c.b16 %v3315, %v3314
      %v3334 = vpack.c.b16 %v3317, %v3316
      %v3335 = vpack.c.b16 %v3319, %v3318
      %3336 = vrot.lane.b32.xlu0 %v3320, 28
      %v3337 = vpop.permute.xlu0 %3336
      %3338 = vrot.lane.b32.xlu0 %v3321, 28
      %v3339 = vpop.permute.xlu0 %3338
      %3340 = vrot.lane.b32.xlu0 %v3322, 28
      %v3341 = vpop.permute.xlu0 %3340
      %3342 = vrot.lane.b32.xlu0 %v3323, 28
      %v3343 = vpop.permute.xlu0 %3342
      %3344 = vrot.lane.b32.xlu0 %v3324, 28
      %v3345 = vpop.permute.xlu0 %3344
      %3346 = vrot.lane.b32.xlu0 %v3325, 28
      %v3347 = vpop.permute.xlu0 %3346
      %3348 = vrot.lane.b32.xlu0 %v3326, 28
      %v3349 = vpop.permute.xlu0 %3348
      %3350 = vrot.lane.b32.xlu0 %v3327, 28
      %v3351 = vpop.permute.xlu0 %3350
      %3352 = vrot.lane.b32.xlu0 %v3328, 28
      %v3353 = vpop.permute.xlu0 %3352
      %3354 = vrot.lane.b32.xlu0 %v3329, 28
      %v3355 = vpop.permute.xlu0 %3354
      %3356 = vrot.lane.b32.xlu0 %v3330, 28
      %v3357 = vpop.permute.xlu0 %3356
      %3358 = vrot.lane.b32.xlu0 %v3331, 28
      %v3359 = vpop.permute.xlu0 %3358
      %3360 = vrot.lane.b32.xlu0 %v3332, 28
      %v3361 = vpop.permute.xlu0 %3360
      %3362 = vrot.lane.b32.xlu0 %v3333, 28
      %v3363 = vpop.permute.xlu0 %3362
      %3364 = vrot.lane.b32.xlu0 %v3334, 28
      %v3365 = vpop.permute.xlu0 %3364
      %3366 = vrot.lane.b32.xlu0 %v3335, 28
      %v3367 = vpop.permute.xlu0 %3366
      %v3368 = vunpack.c.l.b16 %v2603
      %v3369 = vunpack.c.l.b16 %v2606
      %v3370 = vunpack.c.l.b16 %v2610
      %v3371 = vunpack.c.l.b16 %v2613
      %v3372 = vunpack.c.l.b16 %v2617
      %v3373 = vunpack.c.l.b16 %v2620
      %v3374 = vunpack.c.l.b16 %v2624
      %v3375 = vunpack.c.l.b16 %v2627
      %v3376 = vunpack.c.l.b16 %v2631
      %v3377 = vunpack.c.l.b16 %v2634
      %v3378 = vunpack.c.l.b16 %v2638
      %v3379 = vunpack.c.l.b16 %v2641
      %v3380 = vunpack.c.l.b16 %v2645
      %v3381 = vunpack.c.l.b16 %v2648
      %v3382 = vunpack.c.l.b16 %v2652
      %v3383 = vunpack.c.l.b16 %v2655
      %v3384 = vunpack.c.l.b16 %v2659
      %v3385 = vunpack.c.l.b16 %v2662
      %v3386 = vunpack.c.l.b16 %v2666
      %v3387 = vunpack.c.l.b16 %v2669
      %v3388 = vunpack.c.l.b16 %v2673
      %v3389 = vunpack.c.l.b16 %v2676
      %v3390 = vunpack.c.l.b16 %v2680
      %v3391 = vunpack.c.l.b16 %v2683
      %v3392 = vunpack.c.l.b16 %v2687
      %v3393 = vunpack.c.l.b16 %v2690
      %v3394 = vunpack.c.l.b16 %v2694
      %v3395 = vunpack.c.l.b16 %v2697
      %v3396 = vunpack.c.l.b16 %v2701
      %v3397 = vunpack.c.l.b16 %v2704
      %v3398 = vunpack.c.l.b16 %v2708
      %v3399 = vunpack.c.l.b16 %v2711
      %v3400 = vpack.c.b16 %v3369, %v3368
      %v3401 = vpack.c.b16 %v3371, %v3370
      %v3402 = vpack.c.b16 %v3373, %v3372
      %v3403 = vpack.c.b16 %v3375, %v3374
      %v3404 = vpack.c.b16 %v3377, %v3376
      %v3405 = vpack.c.b16 %v3379, %v3378
      %v3406 = vpack.c.b16 %v3381, %v3380
      %v3407 = vpack.c.b16 %v3383, %v3382
      %v3408 = vpack.c.b16 %v3385, %v3384
      %v3409 = vpack.c.b16 %v3387, %v3386
      %v3410 = vpack.c.b16 %v3389, %v3388
      %v3411 = vpack.c.b16 %v3391, %v3390
      %v3412 = vpack.c.b16 %v3393, %v3392
      %v3413 = vpack.c.b16 %v3395, %v3394
      %v3414 = vpack.c.b16 %v3397, %v3396
      %v3415 = vpack.c.b16 %v3399, %v3398
      %3416 = vrot.lane.b32.xlu0 %v3400, 32
      %v3417 = vpop.permute.xlu0 %3416
      %3418 = vrot.lane.b32.xlu0 %v3401, 32
      %v3419 = vpop.permute.xlu0 %3418
      %3420 = vrot.lane.b32.xlu0 %v3402, 32
      %v3421 = vpop.permute.xlu0 %3420
      %3422 = vrot.lane.b32.xlu0 %v3403, 32
      %v3423 = vpop.permute.xlu0 %3422
      %3424 = vrot.lane.b32.xlu0 %v3404, 32
      %v3425 = vpop.permute.xlu0 %3424
      %3426 = vrot.lane.b32.xlu0 %v3405, 32
      %v3427 = vpop.permute.xlu0 %3426
      %3428 = vrot.lane.b32.xlu0 %v3406, 32
      %v3429 = vpop.permute.xlu0 %3428
      %3430 = vrot.lane.b32.xlu0 %v3407, 32
      %v3431 = vpop.permute.xlu0 %3430
      %3432 = vrot.lane.b32.xlu0 %v3408, 32
      %v3433 = vpop.permute.xlu0 %3432
      %3434 = vrot.lane.b32.xlu0 %v3409, 32
      %v3435 = vpop.permute.xlu0 %3434
      %3436 = vrot.lane.b32.xlu0 %v3410, 32
      %v3437 = vpop.permute.xlu0 %3436
      %3438 = vrot.lane.b32.xlu0 %v3411, 32
      %v3439 = vpop.permute.xlu0 %3438
      %3440 = vrot.lane.b32.xlu0 %v3412, 32
      %v3441 = vpop.permute.xlu0 %3440
      %3442 = vrot.lane.b32.xlu0 %v3413, 32
      %v3443 = vpop.permute.xlu0 %3442
      %3444 = vrot.lane.b32.xlu0 %v3414, 32
      %v3445 = vpop.permute.xlu0 %3444
      %3446 = vrot.lane.b32.xlu0 %v3415, 32
      %v3447 = vpop.permute.xlu0 %3446
      %vm3448 = vcmask 31744
      %v3451 = vsel %vm3448, %v2760, %v2825
      %v3454 = vsel %vm3448, %v2761, %v2827
      %v3457 = vsel %vm3448, %v2762, %v2829
      %v3460 = vsel %vm3448, %v2763, %v2831
      %v3463 = vsel %vm3448, %v2764, %v2833
      %v3466 = vsel %vm3448, %v2765, %v2835
      %v3469 = vsel %vm3448, %v2766, %v2837
      %v3472 = vsel %vm3448, %v2767, %v2839
      %v3475 = vsel %vm3448, %v2768, %v2841
      %v3478 = vsel %vm3448, %v2769, %v2843
      %v3481 = vsel %vm3448, %v2770, %v2845
      %v3484 = vsel %vm3448, %v2771, %v2847
      %v3487 = vsel %vm3448, %v2772, %v2849
      %v3490 = vsel %vm3448, %v2773, %v2851
      %v3493 = vsel %vm3448, %v2774, %v2853
      %v3496 = vsel %vm3448, %v2775, %v2855
      %vm3497 = vcmask 64512
      %v3499 = vsel %vm3497, %v3451, %v2905
      %v3501 = vsel %vm3497, %v3454, %v2907
      %v3503 = vsel %vm3497, %v3457, %v2909
      %v3505 = vsel %vm3497, %v3460, %v2911
      %v3507 = vsel %vm3497, %v3463, %v2913
      %v3509 = vsel %vm3497, %v3466, %v2915
      %v3511 = vsel %vm3497, %v3469, %v2917
      %v3513 = vsel %vm3497, %v3472, %v2919
      %v3515 = vsel %vm3497, %v3475, %v2921
      %v3517 = vsel %vm3497, %v3478, %v2923
      %v3519 = vsel %vm3497, %v3481, %v2925
      %v3521 = vsel %vm3497, %v3484, %v2927
      %v3523 = vsel %vm3497, %v3487, %v2929
      %v3525 = vsel %vm3497, %v3490, %v2931
      %v3527 = vsel %vm3497, %v3493, %v2933
      %v3529 = vsel %vm3497, %v3496, %v2935
      %vm3530 = vcmask 97280
      %v3532 = vsel %vm3530, %v3499, %v3001
      %v3534 = vsel %vm3530, %v3501, %v3003
      %v3536 = vsel %vm3530, %v3503, %v3005
      %v3538 = vsel %vm3530, %v3505, %v3007
      %v3540 = vsel %vm3530, %v3507, %v3009
      %v3542 = vsel %vm3530, %v3509, %v3011
      %v3544 = vsel %vm3530, %v3511, %v3013
      %v3546 = vsel %vm3530, %v3513, %v3015
      %v3548 = vsel %vm3530, %v3515, %v3017
      %v3550 = vsel %vm3530, %v3517, %v3019
      %v3552 = vsel %vm3530, %v3519, %v3021
      %v3554 = vsel %vm3530, %v3521, %v3023
      %v3556 = vsel %vm3530, %v3523, %v3025
      %v3558 = vsel %vm3530, %v3525, %v3027
      %v3560 = vsel %vm3530, %v3527, %v3029
      %v3562 = vsel %vm3530, %v3529, %v3031
      %vm3563 = vcmask 130048
      %v3565 = vsel %vm3563, %v3532, %v3081
      %v3567 = vsel %vm3563, %v3534, %v3083
      %v3569 = vsel %vm3563, %v3536, %v3085
      %v3571 = vsel %vm3563, %v3538, %v3087
      %v3573 = vsel %vm3563, %v3540, %v3089
      %v3575 = vsel %vm3563, %v3542, %v3091
      %v3577 = vsel %vm3563, %v3544, %v3093
      %v3579 = vsel %vm3563, %v3546, %v3095
      %v3581 = vsel %vm3563, %v3548, %v3097
      %v3583 = vsel %vm3563, %v3550, %v3099
      %v3585 = vsel %vm3563, %v3552, %v3101
      %v3587 = vsel %vm3563, %v3554, %v3103
      %v3589 = vsel %vm3563, %v3556, %v3105
      %v3591 = vsel %vm3563, %v3558, %v3107
      %v3593 = vsel %vm3563, %v3560, %v3109
      %v3595 = vsel %vm3563, %v3562, %v3111
      %vm3596 = vcmask 162816
      %v3598 = vsel %vm3596, %v3565, %v3161
      %v3600 = vsel %vm3596, %v3567, %v3163
      %v3602 = vsel %vm3596, %v3569, %v3165
      %v3604 = vsel %vm3596, %v3571, %v3167
      %v3606 = vsel %vm3596, %v3573, %v3169
      %v3608 = vsel %vm3596, %v3575, %v3171
      %v3610 = vsel %vm3596, %v3577, %v3173
      %v3612 = vsel %vm3596, %v3579, %v3175
      %v3614 = vsel %vm3596, %v3581, %v3177
      %v3616 = vsel %vm3596, %v3583, %v3179
      %v3618 = vsel %vm3596, %v3585, %v3181
      %v3620 = vsel %vm3596, %v3587, %v3183
      %v3622 = vsel %vm3596, %v3589, %v3185
      %v3624 = vsel %vm3596, %v3591, %v3187
      %v3626 = vsel %vm3596, %v3593, %v3189
      %v3628 = vsel %vm3596, %v3595, %v3191
      %vm3629 = vcmask 195584
      %v3631 = vsel %vm3629, %v3598, %v3257
      %v3633 = vsel %vm3629, %v3600, %v3259
      %v3635 = vsel %vm3629, %v3602, %v3261
      %v3637 = vsel %vm3629, %v3604, %v3263
      %v3639 = vsel %vm3629, %v3606, %v3265
      %v3641 = vsel %vm3629, %v3608, %v3267
      %v3643 = vsel %vm3629, %v3610, %v3269
      %v3645 = vsel %vm3629, %v3612, %v3271
      %v3647 = vsel %vm3629, %v3614, %v3273
      %v3649 = vsel %vm3629, %v3616, %v3275
      %v3651 = vsel %vm3629, %v3618, %v3277
      %v3653 = vsel %vm3629, %v3620, %v3279
      %v3655 = vsel %vm3629, %v3622, %v3281
      %v3657 = vsel %vm3629, %v3624, %v3283
      %v3659 = vsel %vm3629, %v3626, %v3285
      %v3661 = vsel %vm3629, %v3628, %v3287
      %vm3662 = vcmask 228352
      %v3664 = vsel %vm3662, %v3631, %v3337
      %v3666 = vsel %vm3662, %v3633, %v3339
      %v3668 = vsel %vm3662, %v3635, %v3341
      %v3670 = vsel %vm3662, %v3637, %v3343
      %v3672 = vsel %vm3662, %v3639, %v3345
      %v3674 = vsel %vm3662, %v3641, %v3347
      %v3676 = vsel %vm3662, %v3643, %v3349
      %v3678 = vsel %vm3662, %v3645, %v3351
      %v3680 = vsel %vm3662, %v3647, %v3353
      %v3682 = vsel %vm3662, %v3649, %v3355
      %v3684 = vsel %vm3662, %v3651, %v3357
      %v3686 = vsel %vm3662, %v3653, %v3359
      %v3688 = vsel %vm3662, %v3655, %v3361
      %v3690 = vsel %vm3662, %v3657, %v3363
      %v3692 = vsel %vm3662, %v3659, %v3365
      %v3694 = vsel %vm3662, %v3661, %v3367
      %vm3695 = vcmask 261120
      %v3697 = vsel %vm3695, %v3664, %v3417
      %v3699 = vsel %vm3695, %v3666, %v3419
      %v3701 = vsel %vm3695, %v3668, %v3421
      %v3703 = vsel %vm3695, %v3670, %v3423
      %v3705 = vsel %vm3695, %v3672, %v3425
      %v3707 = vsel %vm3695, %v3674, %v3427
      %v3709 = vsel %vm3695, %v3676, %v3429
      %v3711 = vsel %vm3695, %v3678, %v3431
      %v3713 = vsel %vm3695, %v3680, %v3433
      %v3715 = vsel %vm3695, %v3682, %v3435
      %v3717 = vsel %vm3695, %v3684, %v3437
      %v3719 = vsel %vm3695, %v3686, %v3439
      %v3721 = vsel %vm3695, %v3688, %v3441
      %v3723 = vsel %vm3695, %v3690, %v3443
      %v3725 = vsel %vm3695, %v3692, %v3445
      %v3727 = vsel %vm3695, %v3694, %v3447
      %v3728 = vld [vmem:[%s1] sm:$0xf]
      %v3729 = vld [vmem:[%s1 + $0x4] sm:$0xf]
      %v3730 = vld [vmem:[%s1 + $0x8] sm:$0xf]
      %v3731 = vld [vmem:[%s1 + $0xc] sm:$0xf]
      %v3732 = vld [vmem:[%s1 + $0x10] sm:$0x3]
      %v3733 = vld [vmem:[%s2] sm:$0x1]
      %v3735 = vlaneseq
      %v3736 = vshrl.u32 %v3735, 7
      %v3737 = vsub.s32 0, %v3736
      %v3738 = vrot.slane %v3733, %v3737
      %v3745 = vunpack.c.l.b16 %v3728
      %v3746 = vunpack.c.l.b16 %v3729
      %v3747 = vunpack.c.l.b16 %v3730
      %v3748 = vunpack.c.l.b16 %v3731
      %v3749 = vunpack.c.l.b16 %v3732
      %v3750 = vpack.c.b16 %v3746, %v3745
      %v3751 = vpack.c.b16 %v3748, %v3747
      %v3752 = vpack.c.b16 %v3749, %v3749
      %vm3755 = vcmask 293888
      %v3756 = vsel %vm3755, %v3697, 0
      %v3758 = vsel %vm3755, %v3699, 0
      %v3760 = vsel %vm3755, %v3701, 0
      %v3762 = vsel %vm3755, %v3703, 0
      %v3764 = vsel %vm3755, %v3705, 0
      %v3766 = vsel %vm3755, %v3707, 0
      %v3768 = vsel %vm3755, %v3709, 0
      %v3770 = vsel %vm3755, %v3711, 0
      %v3772 = vsel %vm3755, %v3713, 0
      %v3774 = vsel %vm3755, %v3715, 0
      %v3776 = vsel %vm3755, %v3717, 0
      %v3778 = vsel %vm3755, %v3719, 0
      %v3780 = vsel %vm3755, %v3721, 0
      %v3782 = vsel %vm3755, %v3723, 0
      %v3784 = vsel %vm3755, %v3725, 0
      %v3786 = vsel %vm3755, %v3727, 0
      %vm3788 = vcmask 1041408
      %v3790 = vsel %vm3788, %v3752, 0
      %3792 = vmatprep.subr.bf16.mxu0 0
      %3793 = vmatpush1.bf16.msra.mxu0 %v3750
      %3794 = vmatprep.subr.bf16.mxu0 0
      %3795 = vmatpush1.bf16.msra.mxu0 %v3751
      %3796 = vmatprep.subr.bf16.mxu0 0
      %3797 = vmatpush1.bf16.msra.mxu0 %v3790
      %3798 = vmatprep.subr.bf16.mxu0 0
      %3799 = vmatpush1.bf16.msra.mxu0 0
      %3800 = vmatprep.subr.bf16.mxu0 0
      %3801 = vmatpush1.bf16.msra.mxu0 0
      %3802 = vmatprep.subr.bf16.mxu0 0
      %3803 = vmatpush1.bf16.msra.mxu0 0
      %3804 = vmatprep.subr.bf16.mxu0 0
      %3805 = vmatpush1.bf16.msra.mxu0 0
      %3806 = vmatprep.subr.bf16.mxu0 0
      %3807 = vmatpush1.bf16.msra.mxu0 0
      %3808 = vmatprep.subr.bf16.mxu0 0
      %3809 = vmatpush1.bf16.msra.mxu0 0
      %3810 = vmatprep.subr.bf16.mxu0 0
      %3811 = vmatpush1.bf16.msra.mxu0 0
      %3812 = vmatprep.subr.bf16.mxu0 0
      %3813 = vmatpush1.bf16.msra.mxu0 0
      %3814 = vmatprep.subr.bf16.mxu0 0
      %3815 = vmatpush1.bf16.msra.mxu0 0
      %3816 = vmatprep.subr.bf16.mxu0 0
      %3817 = vmatpush1.bf16.msra.mxu0 0
      %3818 = vmatprep.subr.bf16.mxu0 0
      %3819 = vmatpush1.bf16.msra.mxu0 0
      %3820 = vmatprep.subr.bf16.mxu0 0
      %3821 = vmatpush1.bf16.msra.mxu0 0
      %3822 = vmatprep.subr.bf16.mxu0 0
      %3823 = vmatpush1.bf16.msra.mxu0 0
      %3824 = vmatprep.mubr.bf16.mxu0 0
      %3825 = vmatmul.mubr.bf16.gmra.mrb[0].mxu0 %v3756
      %v3826 = vpop.f32.mrb[0].mxu0
      %v3827 = vadd.f32 %v3738, %v3826
      %v3828 = vpop.f32.mrb[0].mxu0
      %v3829 = vpop.f32.mrb[0].mxu0
      %v3830 = vadd.f32 %v3738, %v3829
      %v3831 = vpop.f32.mrb[0].mxu0
      %3832 = vmatprep.mubr.bf16.mxu0 0
      %3833 = vmatmul.mubr.bf16.gmra.mrb[0].mxu0 %v3758
      %v3834 = vpop.f32.mrb[0].mxu0
      %v3835 = vadd.f32 %v3738, %v3834
      %v3836 = vpop.f32.mrb[0].mxu0
      %v3837 = vpop.f32.mrb[0].mxu0
      %v3838 = vadd.f32 %v3738, %v3837
      %v3839 = vpop.f32.mrb[0].mxu0
      %3840 = vmatprep.mubr.bf16.mxu0 0
      %3841 = vmatmul.mubr.bf16.gmra.mrb[0].mxu0 %v3760
      %v3842 = vpop.f32.mrb[0].mxu0
      %v3843 = vadd.f32 %v3738, %v3842
      %v3844 = vpop.f32.mrb[0].mxu0
      %v3845 = vpop.f32.mrb[0].mxu0
      %v3846 = vadd.f32 %v3738, %v3845
      %v3847 = vpop.f32.mrb[0].mxu0
      %3848 = vmatprep.mubr.bf16.mxu0 0
      %3849 = vmatmul.mubr.bf16.gmra.mrb[0].mxu0 %v3762
      %v3850 = vpop.f32.mrb[0].mxu0
      %v3851 = vadd.f32 %v3738, %v3850
      %v3852 = vpop.f32.mrb[0].mxu0
      %v3853 = vpop.f32.mrb[0].mxu0
      %v3854 = vadd.f32 %v3738, %v3853
      %v3855 = vpop.f32.mrb[0].mxu0
      %3856 = vmatprep.mubr.bf16.mxu0 0
      %3857 = vmatmul.mubr.bf16.gmra.mrb[0].mxu0 %v3764
      %v3858 = vpop.f32.mrb[0].mxu0
      %v3859 = vadd.f32 %v3738, %v3858
      %v3860 = vpop.f32.mrb[0].mxu0
      %v3861 = vpop.f32.mrb[0].mxu0
      %v3862 = vadd.f32 %v3738, %v3861
      %v3863 = vpop.f32.mrb[0].mxu0
      %3864 = vmatprep.mubr.bf16.mxu0 0
      %3865 = vmatmul.mubr.bf16.gmra.mrb[0].mxu0 %v3766
      %v3866 = vpop.f32.mrb[0].mxu0
      %v3867 = vadd.f32 %v3738, %v3866
      %v3868 = vpop.f32.mrb[0].mxu0
      %v3869 = vpop.f32.mrb[0].mxu0
      %v3870 = vadd.f32 %v3738, %v3869
      %v3871 = vpop.f32.mrb[0].mxu0
      %3872 = vmatprep.mubr.bf16.mxu0 0
      %3873 = vmatmul.mubr.bf16.gmra.mrb[0].mxu0 %v3768
      %v3874 = vpop.f32.mrb[0].mxu0
      %v3875 = vadd.f32 %v3738, %v3874
      %v3876 = vpop.f32.mrb[0].mxu0
      %v3877 = vpop.f32.mrb[0].mxu0
      %v3878 = vadd.f32 %v3738, %v3877
      %v3879 = vpop.f32.mrb[0].mxu0
      %3880 = vmatprep.mubr.bf16.mxu0 0
      %3881 = vmatmul.mubr.bf16.gmra.mrb[0].mxu0 %v3770
      %v3882 = vpop.f32.mrb[0].mxu0
      %v3883 = vadd.f32 %v3738, %v3882
      %v3884 = vpop.f32.mrb[0].mxu0
      %v3885 = vpop.f32.mrb[0].mxu0
      %v3886 = vadd.f32 %v3738, %v3885
      %v3887 = vpop.f32.mrb[0].mxu0
      %3888 = vmatprep.mubr.bf16.mxu0 0
      %3889 = vmatmul.mubr.bf16.gmra.mrb[0].mxu0 %v3772
      %v3890 = vpop.f32.mrb[0].mxu0
      %v3891 = vadd.f32 %v3738, %v3890
      %v3892 = vpop.f32.mrb[0].mxu0
      %v3893 = vpop.f32.mrb[0].mxu0
      %v3894 = vadd.f32 %v3738, %v3893
      %v3895 = vpop.f32.mrb[0].mxu0
      %3896 = vmatprep.mubr.bf16.mxu0 0
      %3897 = vmatmul.mubr.bf16.gmra.mrb[0].mxu0 %v3774
      %v3898 = vpop.f32.mrb[0].mxu0
      %v3899 = vadd.f32 %v3738, %v3898
      %v3900 = vpop.f32.mrb[0].mxu0
      %v3901 = vpop.f32.mrb[0].mxu0
      %v3902 = vadd.f32 %v3738, %v3901
      %v3903 = vpop.f32.mrb[0].mxu0
      %3904 = vmatprep.mubr.bf16.mxu0 0
      %3905 = vmatmul.mubr.bf16.gmra.mrb[0].mxu0 %v3776
      %v3906 = vpop.f32.mrb[0].mxu0
      %v3907 = vadd.f32 %v3738, %v3906
      %v3908 = vpop.f32.mrb[0].mxu0
      %v3909 = vpop.f32.mrb[0].mxu0
      %v3910 = vadd.f32 %v3738, %v3909
      %v3911 = vpop.f32.mrb[0].mxu0
      %3912 = vmatprep.mubr.bf16.mxu0 0
      %3913 = vmatmul.mubr.bf16.gmra.mrb[0].mxu0 %v3778
      %v3914 = vpop.f32.mrb[0].mxu0
      %v3915 = vadd.f32 %v3738, %v3914
      %v3916 = vpop.f32.mrb[0].mxu0
      %v3917 = vpop.f32.mrb[0].mxu0
      %v3918 = vadd.f32 %v3738, %v3917
      %v3919 = vpop.f32.mrb[0].mxu0
      %3920 = vmatprep.mubr.bf16.mxu0 0
      %3921 = vmatmul.mubr.bf16.gmra.mrb[0].mxu0 %v3780
      %v3922 = vpop.f32.mrb[0].mxu0
      %v3923 = vadd.f32 %v3738, %v3922
      %v3924 = vpop.f32.mrb[0].mxu0
      %v3925 = vpop.f32.mrb[0].mxu0
      %v3926 = vadd.f32 %v3738, %v3925
      %v3927 = vpop.f32.mrb[0].mxu0
      %3928 = vmatprep.mubr.bf16.mxu0 0
      %3929 = vmatmul.mubr.bf16.gmra.mrb[0].mxu0 %v3782
      %v3930 = vpop.f32.mrb[0].mxu0
      %v3931 = vadd.f32 %v3738, %v3930
      %v3932 = vpop.f32.mrb[0].mxu0
      %v3933 = vpop.f32.mrb[0].mxu0
      %v3934 = vadd.f32 %v3738, %v3933
      %v3935 = vpop.f32.mrb[0].mxu0
      %3936 = vmatprep.mubr.bf16.mxu0 0
      %3937 = vmatmul.mubr.bf16.gmra.mrb[0].mxu0 %v3784
      %v3938 = vpop.f32.mrb[0].mxu0
      %v3939 = vadd.f32 %v3738, %v3938
      %v3940 = vpop.f32.mrb[0].mxu0
      %v3941 = vpop.f32.mrb[0].mxu0
      %v3942 = vadd.f32 %v3738, %v3941
      %v3943 = vpop.f32.mrb[0].mxu0
      %3944 = vmatprep.mubr.bf16.mxu0 0
      %3945 = vmatmul.mubr.bf16.gmra.mrb[0].mxu0 %v3786
      %v3946 = vpop.f32.mrb[0].mxu0
      %v3947 = vadd.f32 %v3738, %v3946
      %v3948 = vpop.f32.mrb[0].mxu0
      %v3949 = vpop.f32.mrb[0].mxu0
      %v3950 = vadd.f32 %v3738, %v3949
      %v3951 = vpop.f32.mrb[0].mxu0
      %3952 = vdwg.mxu0
      %v3953 = vmax.f32 %v3827, 0.0
      %v3954 = vmax.f32 %v3830, 0.0
      %v3955 = vmax.f32 %v3835, 0.0
      %v3956 = vmax.f32 %v3838, 0.0
      %v3957 = vmax.f32 %v3843, 0.0
      %v3958 = vmax.f32 %v3846, 0.0
      %v3959 = vmax.f32 %v3851, 0.0
      %v3960 = vmax.f32 %v3854, 0.0
      %v3961 = vmax.f32 %v3859, 0.0
      %v3962 = vmax.f32 %v3862, 0.0
      %v3963 = vmax.f32 %v3867, 0.0
      %v3964 = vmax.f32 %v3870, 0.0
      %v3965 = vmax.f32 %v3875, 0.0
      %v3966 = vmax.f32 %v3878, 0.0
      %v3967 = vmax.f32 %v3883, 0.0
      %v3968 = vmax.f32 %v3886, 0.0
      %v3969 = vmax.f32 %v3891, 0.0
      %v3970 = vmax.f32 %v3894, 0.0
      %v3971 = vmax.f32 %v3899, 0.0
      %v3972 = vmax.f32 %v3902, 0.0
      %v3973 = vmax.f32 %v3907, 0.0
      %v3974 = vmax.f32 %v3910, 0.0
      %v3975 = vmax.f32 %v3915, 0.0
      %v3976 = vmax.f32 %v3918, 0.0
      %v3977 = vmax.f32 %v3923, 0.0
      %v3978 = vmax.f32 %v3926, 0.0
      %v3979 = vmax.f32 %v3931, 0.0
      %v3980 = vmax.f32 %v3934, 0.0
      %v3981 = vmax.f32 %v3939, 0.0
      %v3982 = vmax.f32 %v3942, 0.0
      %v3983 = vmax.f32 %v3947, 0.0
      %v3984 = vmax.f32 %v3950, 0.0
      %v3985 = vpack.c.bf16 %v3954, %v3953
      %v3986 = vpack.c.bf16 %v3956, %v3955
      %v3987 = vpack.c.bf16 %v3958, %v3957
      %v3988 = vpack.c.bf16 %v3960, %v3959
      %v3989 = vpack.c.bf16 %v3962, %v3961
      %v3990 = vpack.c.bf16 %v3964, %v3963
      %v3991 = vpack.c.bf16 %v3966, %v3965
      %v3992 = vpack.c.bf16 %v3968, %v3967
      %v3993 = vpack.c.bf16 %v3970, %v3969
      %v3994 = vpack.c.bf16 %v3972, %v3971
      %v3995 = vpack.c.bf16 %v3974, %v3973
      %v3996 = vpack.c.bf16 %v3976, %v3975
      %v3997 = vpack.c.bf16 %v3978, %v3977
      %v3998 = vpack.c.bf16 %v3980, %v3979
      %v3999 = vpack.c.bf16 %v3982, %v3981
      %v4000 = vpack.c.bf16 %v3984, %v3983
      %v4017 = vunpack.c.l.b16 %v3985
      %v4018 = vunpack.c.h.b16 %v3985
      %v4019 = vunpack.c.l.b16 %v3986
      %v4020 = vunpack.c.h.b16 %v3986
      %v4021 = vunpack.c.l.b16 %v3987
      %v4022 = vunpack.c.h.b16 %v3987
      %v4023 = vunpack.c.l.b16 %v3988
      %v4024 = vunpack.c.h.b16 %v3988
      %v4025 = vunpack.c.l.b16 %v3989
      %v4026 = vunpack.c.h.b16 %v3989
      %v4027 = vunpack.c.l.b16 %v3990
      %v4028 = vunpack.c.h.b16 %v3990
      %v4029 = vunpack.c.l.b16 %v3991
      %v4030 = vunpack.c.h.b16 %v3991
      %v4031 = vunpack.c.l.b16 %v3992
      %v4032 = vunpack.c.h.b16 %v3992
      %v4033 = vunpack.c.l.b16 %v3993
      %v4034 = vunpack.c.h.b16 %v3993
      %v4035 = vunpack.c.l.b16 %v3994
      %v4036 = vunpack.c.h.b16 %v3994
      %v4037 = vunpack.c.l.b16 %v3995
      %v4038 = vunpack.c.h.b16 %v3995
      %v4039 = vunpack.c.l.b16 %v3996
      %v4040 = vunpack.c.h.b16 %v3996
      %v4041 = vunpack.c.l.b16 %v3997
      %v4042 = vunpack.c.h.b16 %v3997
      %v4043 = vunpack.c.l.b16 %v3998
      %v4044 = vunpack.c.h.b16 %v3998
      %v4045 = vunpack.c.l.b16 %v3999
      %v4046 = vunpack.c.h.b16 %v3999
      %v4047 = vunpack.c.l.b16 %v4000
      %v4048 = vunpack.c.h.b16 %v4000
      %v4049 = vpack.c.b16 %v4017, %v4017
      %v4050 = vpack.c.b16 %v4018, %v4018
      %v4051 = vpack.c.b16 %v4019, %v4019
      %v4052 = vpack.c.b16 %v4020, %v4020
      %v4053 = vpack.c.b16 %v4021, %v4021
      %v4054 = vpack.c.b16 %v4022, %v4022
      %v4055 = vpack.c.b16 %v4023, %v4023
      %v4056 = vpack.c.b16 %v4024, %v4024
      %v4057 = vpack.c.b16 %v4025, %v4025
      %v4058 = vpack.c.b16 %v4026, %v4026
      %v4059 = vpack.c.b16 %v4027, %v4027
      %v4060 = vpack.c.b16 %v4028, %v4028
      %v4061 = vpack.c.b16 %v4029, %v4029
      %v4062 = vpack.c.b16 %v4030, %v4030
      %v4063 = vpack.c.b16 %v4031, %v4031
      %v4064 = vpack.c.b16 %v4032, %v4032
      %v4065 = vpack.c.b16 %v4033, %v4033
      %v4066 = vpack.c.b16 %v4034, %v4034
      %v4067 = vpack.c.b16 %v4035, %v4035
      %v4068 = vpack.c.b16 %v4036, %v4036
      %v4069 = vpack.c.b16 %v4037, %v4037
      %v4070 = vpack.c.b16 %v4038, %v4038
      %v4071 = vpack.c.b16 %v4039, %v4039
      %v4072 = vpack.c.b16 %v4040, %v4040
      %v4073 = vpack.c.b16 %v4041, %v4041
      %v4074 = vpack.c.b16 %v4042, %v4042
      %v4075 = vpack.c.b16 %v4043, %v4043
      %v4076 = vpack.c.b16 %v4044, %v4044
      %v4077 = vpack.c.b16 %v4045, %v4045
      %v4078 = vpack.c.b16 %v4046, %v4046
      %v4079 = vpack.c.b16 %v4047, %v4047
      %v4080 = vpack.c.b16 %v4048, %v4048
      %vm4113 = vcmask 60416
      %4114 = vst.msk [vmem:[%s194] sm:$0xf] %vm4113, %v4049
      %4115 = vst.msk [vmem:[%s194 + $0x4] sm:$0xf] %vm4113, %v4050
      %4116 = vst.msk [vmem:[%s194 + $0x8] sm:$0xf] %vm4113, %v4051
      %4117 = vst.msk [vmem:[%s194 + $0xc] sm:$0xf] %vm4113, %v4052
      %4118 = vst.msk [vmem:[%s194 + $0x10] sm:$0xf] %vm4113, %v4053
      %4119 = vst.msk [vmem:[%s194 + $0x14] sm:$0xf] %vm4113, %v4054
      %4120 = vst.msk [vmem:[%s194 + $0x18] sm:$0xf] %vm4113, %v4055
      %4121 = vst.msk [vmem:[%s194 + $0x1c] sm:$0xf] %vm4113, %v4056
      %4122 = vst.msk [vmem:[%s194 + $0x20] sm:$0xf] %vm4113, %v4057
      %4123 = vst.msk [vmem:[%s194 + $0x24] sm:$0xf] %vm4113, %v4058
      %4124 = vst.msk [vmem:[%s194 + $0x28] sm:$0xf] %vm4113, %v4059
      %4125 = vst.msk [vmem:[%s194 + $0x2c] sm:$0xf] %vm4113, %v4060
      %4126 = vst.msk [vmem:[%s194 + $0x30] sm:$0xf] %vm4113, %v4061
      %4127 = vst.msk [vmem:[%s194 + $0x34] sm:$0xf] %vm4113, %v4062
      %4128 = vst.msk [vmem:[%s194 + $0x38] sm:$0xf] %vm4113, %v4063
      %4129 = vst.msk [vmem:[%s194 + $0x3c] sm:$0xf] %vm4113, %v4064
      %4130 = vst.msk [vmem:[%s194 + $0x40] sm:$0xf] %vm4113, %v4065
      %4131 = vst.msk [vmem:[%s194 + $0x44] sm:$0xf] %vm4113, %v4066
      %4132 = vst.msk [vmem:[%s194 + $0x48] sm:$0xf] %vm4113, %v4067
      %4133 = vst.msk [vmem:[%s194 + $0x4c] sm:$0xf] %vm4113, %v4068
      %4134 = vst.msk [vmem:[%s194 + $0x50] sm:$0xf] %vm4113, %v4069
      %4135 = vst.msk [vmem:[%s194 + $0x54] sm:$0xf] %vm4113, %v4070
      %4136 = vst.msk [vmem:[%s194 + $0x58] sm:$0xf] %vm4113, %v4071
      %4137 = vst.msk [vmem:[%s194 + $0x5c] sm:$0xf] %vm4113, %v4072
      %4138 = vst.msk [vmem:[%s194 + $0x60] sm:$0xf] %vm4113, %v4073
      %4139 = vst.msk [vmem:[%s194 + $0x64] sm:$0xf] %vm4113, %v4074
      %4140 = vst.msk [vmem:[%s194 + $0x68] sm:$0xf] %vm4113, %v4075
      %4141 = vst.msk [vmem:[%s194 + $0x6c] sm:$0xf] %vm4113, %v4076
      %4142 = vst.msk [vmem:[%s194 + $0x70] sm:$0xf] %vm4113, %v4077
      %4143 = vst.msk [vmem:[%s194 + $0x74] sm:$0xf] %vm4113, %v4078
      %4144 = vst.msk [vmem:[%s194 + $0x78] sm:$0xf] %vm4113, %v4079
      %4145 = vst.msk [vmem:[%s194 + $0x7c] sm:$0xf] %vm4113, %v4080
      %s4146 = smul.u32 16, %s19
      %p4147 = scmp.lt.s32.totalorder %s18, 1
      %s4148 = scalar_select %p4147, %s18, 1
      %p4149 = scmp.lt.s32.totalorder %s4146, 15
      %s4150 = scalar_select %p4149, %s4146, 15
      %s4151 = smul.addr %s4150, 2
      %s4152 = smul.addr %s4148, 32
      %s4153 = sadd.s32 %s4151, %s4152
      %s4154 = smul.addr %s4153, 4
      %s4155 = scalar_lea.vmem %s3, %s4154
      // Predicated region
      $region45: #{tpu_custom_call.1} parent=31 // pred_check
        %p4156 = pneg %p114
      $region46: #{tpu_custom_call.1} parent=31 // pred_check_branch
        %4158 = sbr.rel (%p4156) target = $region48
      $region47: #{tpu_custom_call.1} parent=31 // pred_region
        %s4159 = smul.u32 16, %s19
      $region48: #{tpu_custom_call.1} parent=31 // pred_fallthru
        _
    $region32: #{tpu_custom_call.1} parent=5 // pred_fallthru
      _
    %p4160 = scmp.le.s32.totalorder 2, %s9
    // Predicated region
    $region49: #{tpu_custom_call.1} parent=5 // pred_check
      %p4161 = pneg %p4160
    $region50: #{tpu_custom_call.1} parent=5 // pred_check_branch
      %4163 = sbr.rel (%p4161) target = $region52
    $region51: #{tpu_custom_call.1} parent=5 // pred_region
      %s4164 = ssub.s32 %s9, 2
      // Predicated region
      $region53: #{tpu_custom_call.1} parent=51 // pred_check
        %p4165 = pneg %p120
      $region54: #{tpu_custom_call.1} parent=51 // pred_check_branch
        %4167 = sbr.rel (%p4165) target = $region56
      $region55: #{tpu_custom_call.1} parent=51 // pred_region
        %s4168 = smul.u32 16, %s21
        %p4169 = scmp.lt.s32.totalorder %s20, 1
        %s4170 = scalar_select %p4169, %s20, 1
        %p4171 = scmp.lt.s32.totalorder %s4168, 15
        %s4172 = scalar_select %p4171, %s4168, 15
        %s4173 = smul.addr %s4172, 2
        %s4174 = smul.addr %s4170, 32
        %s4175 = sadd.s32 %s4173, %s4174
        %s4176 = smul.addr %s4175, 4
        %s4177 = scalar_lea.vmem %s3, %s4176
      $region56: #{tpu_custom_call.1} parent=51 // pred_fallthru
        _
    $region52: #{tpu_custom_call.1} parent=5 // pred_fallthru
      _
  $region6: #{tpu_custom_call.1} parent=0 // loop_footer
    %s13 = sadd.s32 1, %s9
  $region7: #{tpu_custom_call.1} parent=0 // loop_footer_branch
    %8 = sbr.rel target = $region3
  $region8: #{tpu_custom_call.1} parent=0 // loop_exit
    _

</llo_original>
